<compile_context>
chip_gen: v7x
topology: tpu7x:2x2x1
jax: 0.10.0
libtpu: 0.0.40
codegen_flags: <defaults>
</compile_context>

<pallas_src>
import jax
import jax.numpy as jnp
from jax.experimental import pallas as pl
from jax.experimental.pallas import tpu as pltpu

NUM_SCAN_SAMPLES = 128   # laser samples; state_size = NUM_SCAN_SAMPLES + 4
LINEAR = 0
ANGULAR = 1
BN_EPS = 1e-5

C1_CH, C2_CH, C3_CH = 32, 32, 16     # conv output channels


def conv1d_out_len(L, k, s):
    return (L - k) // s + 1


L0 = NUM_SCAN_SAMPLES                 # 128
L1 = conv1d_out_len(L0, 5, 3)         # 42  (conv1)
L2 = conv1d_out_len(L1, 3, 2)         # 20  (maxpool1)
L3 = conv1d_out_len(L2, 2, 2)         # 10  (conv2)
L4 = conv1d_out_len(L3, 3, 2)         # 4   (maxpool2)
L5 = conv1d_out_len(L4, 2, 2)         # 2   (conv3)
CONV_OUT = C3_CH * L5                 # 32  (Flatten(1,2) width)


# ----------------------------- fused Pallas kernel --------------------------

def _actor_fused_kernel(st_ref,
                        w1_ref, b1_ref, g1_ref, bt1_ref,
                        w2_ref, b2_ref, g2_ref, bt2_ref,
                        w3_ref, b3_ref,
                        wf1_ref, bf1_ref, wf2_ref, bf2_ref, wf3_ref, bf3_ref,
                        o_ref):
    f32 = jnp.float32
    B = st_ref.shape[0]
    laser = st_ref[:, :NUM_SCAN_SAMPLES]                        # (B, 128)
    other = st_ref[:, NUM_SCAN_SAMPLES:NUM_SCAN_SAMPLES + 4]    # (B, 4)

    def bn_scale_shift(x, L, C, gamma, beta):
        # training-mode BatchNorm1d: per-channel batch stats over (batch, position),
        # biased variance.  x is a (B, L*C) position-major slab.
        n = float(B * L)
        colsum = jnp.sum(x, axis=0, keepdims=True)              # (1, L*C)
        s = jnp.zeros((1, C), f32)
        for i in range(L):
            s = s + colsum[:, i * C:(i + 1) * C]
        mean = s / n                                            # (1, C)
        v = jnp.zeros((B, C), f32)
        for i in range(L):
            d = x[:, i * C:(i + 1) * C] - mean
            v = v + d * d
        var = jnp.sum(v, axis=0, keepdims=True) / n             # (1, C)
        scale = gamma * jax.lax.rsqrt(var + BN_EPS)
        shift = beta - mean * scale
        return scale, shift

    def bn_maxpool3(x, L_out, C, scale, shift):
        # normalize each tap, then MaxPool1d(kernel=3, stride=2) over positions.
        blocks = []
        for i in range(L_out):
            t0 = x[:, (2 * i) * C:(2 * i + 1) * C] * scale + shift
            t1 = x[:, (2 * i + 1) * C:(2 * i + 2) * C] * scale + shift
            t2 = x[:, (2 * i + 2) * C:(2 * i + 3) * C] * scale + shift
            blocks.append(jnp.maximum(jnp.maximum(t0, t1), t2))
        return jnp.concatenate(blocks, axis=1)

    # conv1 (1->32, k=5, s=3) + relu, then bn1 + maxpool1
    c1 = jnp.maximum(
        jnp.dot(laser, w1_ref[...], preferred_element_type=f32) + b1_ref[...], 0.0)
    sc1, sh1 = bn_scale_shift(c1, L1, C1_CH, g1_ref[...], bt1_ref[...])
    p1 = bn_maxpool3(c1, L2, C1_CH, sc1, sh1)                   # (B, L2*32)

    # conv2 (32->32, k=2, s=2) + relu, then bn2 + maxpool2
    c3 = jnp.maximum(
        jnp.dot(p1, w2_ref[...], preferred_element_type=f32) + b2_ref[...], 0.0)
    sc2, sh2 = bn_scale_shift(c3, L3, C2_CH, g2_ref[...], bt2_ref[...])
    p2 = bn_maxpool3(c3, L4, C2_CH, sc2, sh2)                   # (B, L4*32)

    # conv3 (32->16, k=2, s=2) + relu.  Output stays position-major; the Flatten(1,2)
    # channel-major permutation is already folded into wf1's rows.
    c5 = jnp.maximum(
        jnp.dot(p2, w3_ref[...], preferred_element_type=f32) + b3_ref[...], 0.0)

    # MLP head: fa1 -> relu -> fa2 -> relu -> fa3 -> tanh on LINEAR/ANGULAR columns
    comb = jnp.concatenate([c5, other], axis=1)                 # (B, CONV_OUT + 4)
    x1 = jnp.maximum(
        jnp.dot(comb, wf1_ref[...], preferred_element_type=f32) + bf1_ref[...], 0.0)
    x2 = jnp.maximum(
        jnp.dot(x1, wf2_ref[...], preferred_element_type=f32) + bf2_ref[...], 0.0)
    a = jnp.dot(x2, wf3_ref[...], preferred_element_type=f32) + bf3_ref[...]
    col = jax.lax.broadcasted_iota(jnp.int32, a.shape, 1)
    o_ref[...] = jnp.where(col <= ANGULAR, jnp.tanh(a), a)


_PREP_ORDER = ('w1', 'b1', 'g1', 'bt1', 'w2', 'b2', 'g2', 'bt2',
               'w3', 'b3', 'wf1', 'bf1', 'wf2', 'bf2', 'wf3', 'bf3')


def actor_forward(prep, states):
    B = states.shape[0]
    action_size = prep['wf3'].shape[1]
    args = (states,) + tuple(prep[k] for k in _PREP_ORDER)
    return pl.pallas_call(
        _actor_fused_kernel,
        out_shape=jax.ShapeDtypeStruct((B, action_size), jnp.float32),
        in_specs=[pl.BlockSpec(memory_space=pltpu.MemorySpace.VMEM)] * len(args),
        out_specs=pl.BlockSpec(memory_space=pltpu.MemorySpace.VMEM),
    )(*args)


# ----------------------------- one-time weight layout ------------------------

def prepare_params(params):
    """Trace/init-time only: fold im2col into conv weights, pre-broadcast biases,
    fold the Flatten(1,2) permutation into fa1's weight."""
    f32 = jnp.float32

    def fold_conv(w, stride, L_in, L_out):
        # w: (C_out, C_in, K).  Returns M (L_in*C_in, L_out*C_out) so that
        # act_out = act_in @ M implements the strided valid conv on position-major,
        # channel-minor activation slabs (column index = position*C + channel).
        C_out, C_in, K = w.shape
        W = jnp.zeros((L_in, C_in, L_out, C_out), f32)
        cols = jnp.arange(L_out)
        for j in range(K):
            rows = stride * cols + j
            W = W.at[rows, :, cols, :].add(jnp.transpose(w[:, :, j])[None, :, :])
        return W.reshape(L_in * C_in, L_out * C_out)

    # kernel-side conv3 output column r = i*16 + c; PyTorch Flatten index = c*L5 + i.
    perm = jnp.array([(r % C3_CH) * L5 + (r // C3_CH) for r in range(CONV_OUT)],
                     jnp.int32)
    wf1 = jnp.concatenate(
        [params['fa1_w'][:, perm], params['fa1_w'][:, CONV_OUT:]], axis=1).T

    return {
        'w1': fold_conv(params['conv1_w'], 3, L0, L1),              # (128, L1*32)
        'b1': jnp.tile(params['conv1_b'], L1)[None, :].astype(f32),
        'g1': params['bn1_g'][None, :],
        'bt1': params['bn1_b'][None, :],
        'w2': fold_conv(params['conv2_w'], 2, L2, L3),              # (L2*32, L3*32)
        'b2': jnp.tile(params['conv2_b'], L3)[None, :].astype(f32),
        'g2': params['bn2_g'][None, :],
        'bt2': params['bn2_b'][None, :],
        'w3': fold_conv(params['conv3_w'], 2, L4, L5),              # (L4*32, L5*16)
        'b3': jnp.tile(params['conv3_b'], L5)[None, :].astype(f32),
        'wf1': wf1,
        'bf1': params['fa1_b'][None, :],
        'wf2': params['fa2_w'].T,
        'bf2': params['fa2_b'][None, :],
        'wf3': params['fa3_w'].T,
        'bf3': params['fa3_b'][None, :],
    }


# ----------------------------- parameters (PyTorch conventions) --------------

def init_params(key, state_size, action_size, hidden_size):
    L = state_size - 4
    l1 = conv1d_out_len(L, 5, 3)
    l2 = conv1d_out_len(l1, 3, 2)
    l3 = conv1d_out_len(l2, 2, 2)
    l4 = conv1d_out_len(l3, 3, 2)
    l5 = conv1d_out_len(l4, 2, 2)
    conv_out = 16 * l5

    ks = jax.random.split(key, 12)

    def xavier(k, out_f, in_f):
        lim = (6.0 / (in_f + out_f)) ** 0.5
        return jax.random.uniform(k, (out_f, in_f), jnp.float32, -lim, lim)

    def conv_w(k, out_c, in_c, ksz):
        lim = 1.0 / (in_c * ksz) ** 0.5
        return jax.random.uniform(k, (out_c, in_c, ksz), jnp.float32, -lim, lim)

    def conv_b(k, out_c, in_c, ksz):
        lim = 1.0 / (in_c * ksz) ** 0.5
        return jax.random.uniform(k, (out_c,), jnp.float32, -lim, lim)

    return {
        'conv1_w': conv_w(ks[0], 32, 1, 5),
        'conv1_b': conv_b(ks[1], 32, 1, 5),
        'bn1_g': jnp.ones((32,), jnp.float32),
        'bn1_b': jnp.zeros((32,), jnp.float32),
        'conv2_w': conv_w(ks[2], 32, 32, 2),
        'conv2_b': conv_b(ks[3], 32, 32, 2),
        'bn2_g': jnp.ones((32,), jnp.float32),
        'bn2_b': jnp.zeros((32,), jnp.float32),
        'conv3_w': conv_w(ks[4], 16, 32, 2),
        'conv3_b': conv_b(ks[5], 16, 32, 2),
        'fa1_w': xavier(ks[6], hidden_size, conv_out + 4),
        'fa1_b': jnp.full((hidden_size,), 0.01, jnp.float32),
        'fa2_w': xavier(ks[7], hidden_size, hidden_size),
        'fa2_b': jnp.full((hidden_size,), 0.01, jnp.float32),
        'fa3_w': xavier(ks[8], action_size, hidden_size),
        'fa3_b': jnp.full((action_size,), 0.01, jnp.float32),
    }


# ----------------------------- pure-JAX reference ----------------------------

def reference_forward(params, states):
    laser = states[:, :NUM_SCAN_SAMPLES]
    other = states[:, NUM_SCAN_SAMPLES:NUM_SCAN_SAMPLES + 4]
    x = laser[:, None, :]

    def conv1d(x, w, b, stride):
        y = jax.lax.conv_general_dilated(
            x, w, (stride,), 'VALID', dimension_numbers=('NCH', 'OIH', 'NCH'))
        return y + b[None, :, None]

    def bn(x, g, bt):
        mean = jnp.mean(x, axis=(0, 2), keepdims=True)
        var = jnp.mean((x - mean) ** 2, axis=(0, 2), keepdims=True)
        return (x - mean) * jax.lax.rsqrt(var + BN_EPS) * g[None, :, None] + bt[None, :, None]

    def maxpool(x):
        return jax.lax.reduce_window(x, -jnp.inf, jax.lax.max,
                                     (1, 1, 3), (1, 1, 2), 'VALID')

    c1 = bn(jax.nn.relu(conv1d(x, params['conv1_w'], params['conv1_b'], 3)),
            params['bn1_g'], params['bn1_b'])
    c2 = maxpool(c1)
    c3 = bn(jax.nn.relu(conv1d(c2, params['conv2_w'], params['conv2_b'], 2)),
            params['bn2_g'], params['bn2_b'])
    c4 = maxpool(c3)
    c5 = jax.nn.relu(conv1d(c4, params['conv3_w'], params['conv3_b'], 2))
    flat = c5.reshape(c5.shape[0], -1)
    comb = jnp.concatenate([flat, other], axis=1)
    x1 = jax.nn.relu(comb @ params['fa1_w'].T + params['fa1_b'])
    x2 = jax.nn.relu(x1 @ params['fa2_w'].T + params['fa2_b'])
    a = x2 @ params['fa3_w'].T + params['fa3_b']
    return a.at[:, :2].set(jnp.tanh(a[:, :2]))


# ----------------------------- main ------------------------------------------

if __name__ == "__main__":
    batch = 4
    state_size = NUM_SCAN_SAMPLES + 4   # 132
    action_size = 2
    hidden_size = 64

    key = jax.random.PRNGKey(0)
    k_par, k_in = jax.random.split(key)
    params = init_params(k_par, state_size, action_size, hidden_size)
    prep = prepare_params(params)       # one-time weight layout
    states = jax.random.uniform(k_in, (batch, state_size), jnp.float32, 0.0, 3.5)

    action = jax.block_until_ready(actor_forward(prep, states))
    ref = jax.block_until_ready(reference_forward(params, states))

    assert action.shape == (batch, action_size)
    assert bool(jnp.all(jnp.isfinite(action)))
    assert bool(jnp.allclose(action, ref, rtol=1e-4, atol=1e-4)), (action, ref)
    print("KERNEL_OK")
</pallas_src>

<mosaic_0001>
module attributes {stable_mosaic.version = 11 : i64} {
  func.func @_actor_fused_kernel(%arg0: memref<4x132xf32, #tpu.memory_space<vmem>>, %arg1: memref<128x1344xf32, #tpu.memory_space<vmem>>, %arg2: memref<1x1344xf32, #tpu.memory_space<vmem>>, %arg3: memref<1x32xf32, #tpu.memory_space<vmem>>, %arg4: memref<1x32xf32, #tpu.memory_space<vmem>>, %arg5: memref<640x320xf32, #tpu.memory_space<vmem>>, %arg6: memref<1x320xf32, #tpu.memory_space<vmem>>, %arg7: memref<1x32xf32, #tpu.memory_space<vmem>>, %arg8: memref<1x32xf32, #tpu.memory_space<vmem>>, %arg9: memref<128x32xf32, #tpu.memory_space<vmem>>, %arg10: memref<1x32xf32, #tpu.memory_space<vmem>>, %arg11: memref<36x64xf32, #tpu.memory_space<vmem>>, %arg12: memref<1x64xf32, #tpu.memory_space<vmem>>, %arg13: memref<64x64xf32, #tpu.memory_space<vmem>>, %arg14: memref<1x64xf32, #tpu.memory_space<vmem>>, %arg15: memref<64x2xf32, #tpu.memory_space<vmem>>, %arg16: memref<1x2xf32, #tpu.memory_space<vmem>>, %arg17: memref<4x2xf32, #tpu.memory_space<vmem>>) attributes {dimension_semantics = [], scalar_prefetch = 0 : i64, scratch_operands = 0 : i64, tpu.core_type = #tpu.core_type<tc>} {
    %c0 = arith.constant 0 : index
    %c0_0 = arith.constant 0 : index
    %0 = vector.load %arg0[%c0, %c0_0] : memref<4x132xf32, #tpu.memory_space<vmem>>, vector<4x128xf32>
    %c0_1 = arith.constant 0 : index
    %c128 = arith.constant 128 : index
    %1 = vector.load %arg0[%c0_1, %c128] : memref<4x132xf32, #tpu.memory_space<vmem>>, vector<4x4xf32>
    %c0_2 = arith.constant 0 : index
    %c0_3 = arith.constant 0 : index
    %2 = vector.load %arg1[%c0_2, %c0_3] : memref<128x1344xf32, #tpu.memory_space<vmem>>, vector<128x1344xf32>
    %cst = arith.constant dense<0.000000e+00> : vector<4x1344xf32>
    %3 = tpu.matmul %0, %2, %cst {dimension_numbers = #tpu.dot_dimension_numbers<[1], [0], [0], [1], [0, 0, 1, 1], [], []>} : vector<4x128xf32>, vector<128x1344xf32>, vector<4x1344xf32> -> vector<4x1344xf32>
    %c0_4 = arith.constant 0 : index
    %c0_5 = arith.constant 0 : index
    %4 = vector.load %arg2[%c0_4, %c0_5] : memref<1x1344xf32, #tpu.memory_space<vmem>>, vector<1x1344xf32>
    %5 = vector.broadcast %4 : vector<1x1344xf32> to vector<4x1344xf32>
    %6 = arith.addf %3, %5 : vector<4x1344xf32>
    %cst_6 = arith.constant 0.000000e+00 : f32
    %7 = vector.broadcast %cst_6 : f32 to vector<4x1344xf32>
    %8 = arith.maximumf %6, %7 : vector<4x1344xf32>
    %c0_7 = arith.constant 0 : index
    %c0_8 = arith.constant 0 : index
    %9 = vector.load %arg3[%c0_7, %c0_8] : memref<1x32xf32, #tpu.memory_space<vmem>>, vector<1x32xf32>
    %c0_9 = arith.constant 0 : index
    %c0_10 = arith.constant 0 : index
    %10 = vector.load %arg4[%c0_9, %c0_10] : memref<1x32xf32, #tpu.memory_space<vmem>>, vector<1x32xf32>
    %cst_11 = arith.constant dense<0.000000e+00> : vector<1344xf32>
    %11 = vector.multi_reduction <add>, %8, %cst_11 [0] : vector<4x1344xf32> to vector<1344xf32>
    %12 = vector.shape_cast %11 : vector<1344xf32> to vector<1x1344xf32>
    %cst_12 = arith.constant 0.000000e+00 : f32
    %13 = vector.broadcast %cst_12 : f32 to vector<1x32xf32>
    %14 = vector.extract_strided_slice %12 {offsets = [0, 0], sizes = [1, 32], strides = [1, 1]} : vector<1x1344xf32> to vector<1x32xf32>
    %15 = arith.addf %13, %14 : vector<1x32xf32>
    %16 = vector.extract_strided_slice %12 {offsets = [0, 32], sizes = [1, 32], strides = [1, 1]} : vector<1x1344xf32> to vector<1x32xf32>
    %17 = arith.addf %15, %16 : vector<1x32xf32>
    %18 = vector.extract_strided_slice %12 {offsets = [0, 64], sizes = [1, 32], strides = [1, 1]} : vector<1x1344xf32> to vector<1x32xf32>
    %19 = arith.addf %17, %18 : vector<1x32xf32>
    %20 = vector.extract_strided_slice %12 {offsets = [0, 96], sizes = [1, 32], strides = [1, 1]} : vector<1x1344xf32> to vector<1x32xf32>
    %21 = arith.addf %19, %20 : vector<1x32xf32>
    %22 = vector.extract_strided_slice %12 {offsets = [0, 128], sizes = [1, 32], strides = [1, 1]} : vector<1x1344xf32> to vector<1x32xf32>
    %23 = arith.addf %21, %22 : vector<1x32xf32>
    %24 = vector.extract_strided_slice %12 {offsets = [0, 160], sizes = [1, 32], strides = [1, 1]} : vector<1x1344xf32> to vector<1x32xf32>
    %25 = arith.addf %23, %24 : vector<1x32xf32>
    %26 = vector.extract_strided_slice %12 {offsets = [0, 192], sizes = [1, 32], strides = [1, 1]} : vector<1x1344xf32> to vector<1x32xf32>
    %27 = arith.addf %25, %26 : vector<1x32xf32>
    %28 = vector.extract_strided_slice %12 {offsets = [0, 224], sizes = [1, 32], strides = [1, 1]} : vector<1x1344xf32> to vector<1x32xf32>
    %29 = arith.addf %27, %28 : vector<1x32xf32>
    %30 = vector.extract_strided_slice %12 {offsets = [0, 256], sizes = [1, 32], strides = [1, 1]} : vector<1x1344xf32> to vector<1x32xf32>
    %31 = arith.addf %29, %30 : vector<1x32xf32>
    %32 = vector.extract_strided_slice %12 {offsets = [0, 288], sizes = [1, 32], strides = [1, 1]} : vector<1x1344xf32> to vector<1x32xf32>
    %33 = arith.addf %31, %32 : vector<1x32xf32>
    %34 = vector.extract_strided_slice %12 {offsets = [0, 320], sizes = [1, 32], strides = [1, 1]} : vector<1x1344xf32> to vector<1x32xf32>
    %35 = arith.addf %33, %34 : vector<1x32xf32>
    %36 = vector.extract_strided_slice %12 {offsets = [0, 352], sizes = [1, 32], strides = [1, 1]} : vector<1x1344xf32> to vector<1x32xf32>
    %37 = arith.addf %35, %36 : vector<1x32xf32>
    %38 = vector.extract_strided_slice %12 {offsets = [0, 384], sizes = [1, 32], strides = [1, 1]} : vector<1x1344xf32> to vector<1x32xf32>
    %39 = arith.addf %37, %38 : vector<1x32xf32>
    %40 = vector.extract_strided_slice %12 {offsets = [0, 416], sizes = [1, 32], strides = [1, 1]} : vector<1x1344xf32> to vector<1x32xf32>
    %41 = arith.addf %39, %40 : vector<1x32xf32>
    %42 = vector.extract_strided_slice %12 {offsets = [0, 448], sizes = [1, 32], strides = [1, 1]} : vector<1x1344xf32> to vector<1x32xf32>
    %43 = arith.addf %41, %42 : vector<1x32xf32>
    %44 = vector.extract_strided_slice %12 {offsets = [0, 480], sizes = [1, 32], strides = [1, 1]} : vector<1x1344xf32> to vector<1x32xf32>
    %45 = arith.addf %43, %44 : vector<1x32xf32>
    %46 = vector.extract_strided_slice %12 {offsets = [0, 512], sizes = [1, 32], strides = [1, 1]} : vector<1x1344xf32> to vector<1x32xf32>
    %47 = arith.addf %45, %46 : vector<1x32xf32>
    %48 = vector.extract_strided_slice %12 {offsets = [0, 544], sizes = [1, 32], strides = [1, 1]} : vector<1x1344xf32> to vector<1x32xf32>
    %49 = arith.addf %47, %48 : vector<1x32xf32>
    %50 = vector.extract_strided_slice %12 {offsets = [0, 576], sizes = [1, 32], strides = [1, 1]} : vector<1x1344xf32> to vector<1x32xf32>
    %51 = arith.addf %49, %50 : vector<1x32xf32>
    %52 = vector.extract_strided_slice %12 {offsets = [0, 608], sizes = [1, 32], strides = [1, 1]} : vector<1x1344xf32> to vector<1x32xf32>
    %53 = arith.addf %51, %52 : vector<1x32xf32>
    %54 = vector.extract_strided_slice %12 {offsets = [0, 640], sizes = [1, 32], strides = [1, 1]} : vector<1x1344xf32> to vector<1x32xf32>
    %55 = arith.addf %53, %54 : vector<1x32xf32>
    %56 = vector.extract_strided_slice %12 {offsets = [0, 672], sizes = [1, 32], strides = [1, 1]} : vector<1x1344xf32> to vector<1x32xf32>
    %57 = arith.addf %55, %56 : vector<1x32xf32>
    %58 = vector.extract_strided_slice %12 {offsets = [0, 704], sizes = [1, 32], strides = [1, 1]} : vector<1x1344xf32> to vector<1x32xf32>
    %59 = arith.addf %57, %58 : vector<1x32xf32>
    %60 = vector.extract_strided_slice %12 {offsets = [0, 736], sizes = [1, 32], strides = [1, 1]} : vector<1x1344xf32> to vector<1x32xf32>
    %61 = arith.addf %59, %60 : vector<1x32xf32>
    %62 = vector.extract_strided_slice %12 {offsets = [0, 768], sizes = [1, 32], strides = [1, 1]} : vector<1x1344xf32> to vector<1x32xf32>
    %63 = arith.addf %61, %62 : vector<1x32xf32>
    %64 = vector.extract_strided_slice %12 {offsets = [0, 800], sizes = [1, 32], strides = [1, 1]} : vector<1x1344xf32> to vector<1x32xf32>
    %65 = arith.addf %63, %64 : vector<1x32xf32>
    %66 = vector.extract_strided_slice %12 {offsets = [0, 832], sizes = [1, 32], strides = [1, 1]} : vector<1x1344xf32> to vector<1x32xf32>
    %67 = arith.addf %65, %66 : vector<1x32xf32>
    %68 = vector.extract_strided_slice %12 {offsets = [0, 864], sizes = [1, 32], strides = [1, 1]} : vector<1x1344xf32> to vector<1x32xf32>
    %69 = arith.addf %67, %68 : vector<1x32xf32>
    %70 = vector.extract_strided_slice %12 {offsets = [0, 896], sizes = [1, 32], strides = [1, 1]} : vector<1x1344xf32> to vector<1x32xf32>
    %71 = arith.addf %69, %70 : vector<1x32xf32>
    %72 = vector.extract_strided_slice %12 {offsets = [0, 928], sizes = [1, 32], strides = [1, 1]} : vector<1x1344xf32> to vector<1x32xf32>
    %73 = arith.addf %71, %72 : vector<1x32xf32>
    %74 = vector.extract_strided_slice %12 {offsets = [0, 960], sizes = [1, 32], strides = [1, 1]} : vector<1x1344xf32> to vector<1x32xf32>
    %75 = arith.addf %73, %74 : vector<1x32xf32>
    %76 = vector.extract_strided_slice %12 {offsets = [0, 992], sizes = [1, 32], strides = [1, 1]} : vector<1x1344xf32> to vector<1x32xf32>
    %77 = arith.addf %75, %76 : vector<1x32xf32>
    %78 = vector.extract_strided_slice %12 {offsets = [0, 1024], sizes = [1, 32], strides = [1, 1]} : vector<1x1344xf32> to vector<1x32xf32>
    %79 = arith.addf %77, %78 : vector<1x32xf32>
    %80 = vector.extract_strided_slice %12 {offsets = [0, 1056], sizes = [1, 32], strides = [1, 1]} : vector<1x1344xf32> to vector<1x32xf32>
    %81 = arith.addf %79, %80 : vector<1x32xf32>
    %82 = vector.extract_strided_slice %12 {offsets = [0, 1088], sizes = [1, 32], strides = [1, 1]} : vector<1x1344xf32> to vector<1x32xf32>
    %83 = arith.addf %81, %82 : vector<1x32xf32>
    %84 = vector.extract_strided_slice %12 {offsets = [0, 1120], sizes = [1, 32], strides = [1, 1]} : vector<1x1344xf32> to vector<1x32xf32>
    %85 = arith.addf %83, %84 : vector<1x32xf32>
    %86 = vector.extract_strided_slice %12 {offsets = [0, 1152], sizes = [1, 32], strides = [1, 1]} : vector<1x1344xf32> to vector<1x32xf32>
    %87 = arith.addf %85, %86 : vector<1x32xf32>
    %88 = vector.extract_strided_slice %12 {offsets = [0, 1184], sizes = [1, 32], strides = [1, 1]} : vector<1x1344xf32> to vector<1x32xf32>
    %89 = arith.addf %87, %88 : vector<1x32xf32>
    %90 = vector.extract_strided_slice %12 {offsets = [0, 1216], sizes = [1, 32], strides = [1, 1]} : vector<1x1344xf32> to vector<1x32xf32>
    %91 = arith.addf %89, %90 : vector<1x32xf32>
    %92 = vector.extract_strided_slice %12 {offsets = [0, 1248], sizes = [1, 32], strides = [1, 1]} : vector<1x1344xf32> to vector<1x32xf32>
    %93 = arith.addf %91, %92 : vector<1x32xf32>
    %94 = vector.extract_strided_slice %12 {offsets = [0, 1280], sizes = [1, 32], strides = [1, 1]} : vector<1x1344xf32> to vector<1x32xf32>
    %95 = arith.addf %93, %94 : vector<1x32xf32>
    %96 = vector.extract_strided_slice %12 {offsets = [0, 1312], sizes = [1, 32], strides = [1, 1]} : vector<1x1344xf32> to vector<1x32xf32>
    %97 = arith.addf %95, %96 : vector<1x32xf32>
    %cst_13 = arith.constant 1.680000e+02 : f32
    %98 = vector.broadcast %cst_13 : f32 to vector<1x32xf32>
    %99 = arith.divf %97, %98 : vector<1x32xf32>
    %cst_14 = arith.constant 0.000000e+00 : f32
    %100 = vector.broadcast %cst_14 : f32 to vector<4x32xf32>
    %101 = vector.extract_strided_slice %8 {offsets = [0, 0], sizes = [4, 32], strides = [1, 1]} : vector<4x1344xf32> to vector<4x32xf32>
    %102 = vector.broadcast %99 : vector<1x32xf32> to vector<4x32xf32>
    %103 = arith.subf %101, %102 : vector<4x32xf32>
    %104 = arith.mulf %103, %103 : vector<4x32xf32>
    %105 = arith.addf %100, %104 : vector<4x32xf32>
    %106 = vector.extract_strided_slice %8 {offsets = [0, 32], sizes = [4, 32], strides = [1, 1]} : vector<4x1344xf32> to vector<4x32xf32>
    %107 = vector.broadcast %99 : vector<1x32xf32> to vector<4x32xf32>
    %108 = arith.subf %106, %107 : vector<4x32xf32>
    %109 = arith.mulf %108, %108 : vector<4x32xf32>
    %110 = arith.addf %105, %109 : vector<4x32xf32>
    %111 = vector.extract_strided_slice %8 {offsets = [0, 64], sizes = [4, 32], strides = [1, 1]} : vector<4x1344xf32> to vector<4x32xf32>
    %112 = vector.broadcast %99 : vector<1x32xf32> to vector<4x32xf32>
    %113 = arith.subf %111, %112 : vector<4x32xf32>
    %114 = arith.mulf %113, %113 : vector<4x32xf32>
    %115 = arith.addf %110, %114 : vector<4x32xf32>
    %116 = vector.extract_strided_slice %8 {offsets = [0, 96], sizes = [4, 32], strides = [1, 1]} : vector<4x1344xf32> to vector<4x32xf32>
    %117 = vector.broadcast %99 : vector<1x32xf32> to vector<4x32xf32>
    %118 = arith.subf %116, %117 : vector<4x32xf32>
    %119 = arith.mulf %118, %118 : vector<4x32xf32>
    %120 = arith.addf %115, %119 : vector<4x32xf32>
    %121 = vector.extract_strided_slice %8 {offsets = [0, 128], sizes = [4, 32], strides = [1, 1]} : vector<4x1344xf32> to vector<4x32xf32>
    %122 = vector.broadcast %99 : vector<1x32xf32> to vector<4x32xf32>
    %123 = arith.subf %121, %122 : vector<4x32xf32>
    %124 = arith.mulf %123, %123 : vector<4x32xf32>
    %125 = arith.addf %120, %124 : vector<4x32xf32>
    %126 = vector.extract_strided_slice %8 {offsets = [0, 160], sizes = [4, 32], strides = [1, 1]} : vector<4x1344xf32> to vector<4x32xf32>
    %127 = vector.broadcast %99 : vector<1x32xf32> to vector<4x32xf32>
    %128 = arith.subf %126, %127 : vector<4x32xf32>
    %129 = arith.mulf %128, %128 : vector<4x32xf32>
    %130 = arith.addf %125, %129 : vector<4x32xf32>
    %131 = vector.extract_strided_slice %8 {offsets = [0, 192], sizes = [4, 32], strides = [1, 1]} : vector<4x1344xf32> to vector<4x32xf32>
    %132 = vector.broadcast %99 : vector<1x32xf32> to vector<4x32xf32>
    %133 = arith.subf %131, %132 : vector<4x32xf32>
    %134 = arith.mulf %133, %133 : vector<4x32xf32>
    %135 = arith.addf %130, %134 : vector<4x32xf32>
    %136 = vector.extract_strided_slice %8 {offsets = [0, 224], sizes = [4, 32], strides = [1, 1]} : vector<4x1344xf32> to vector<4x32xf32>
    %137 = vector.broadcast %99 : vector<1x32xf32> to vector<4x32xf32>
    %138 = arith.subf %136, %137 : vector<4x32xf32>
    %139 = arith.mulf %138, %138 : vector<4x32xf32>
    %140 = arith.addf %135, %139 : vector<4x32xf32>
    %141 = vector.extract_strided_slice %8 {offsets = [0, 256], sizes = [4, 32], strides = [1, 1]} : vector<4x1344xf32> to vector<4x32xf32>
    %142 = vector.broadcast %99 : vector<1x32xf32> to vector<4x32xf32>
    %143 = arith.subf %141, %142 : vector<4x32xf32>
    %144 = arith.mulf %143, %143 : vector<4x32xf32>
    %145 = arith.addf %140, %144 : vector<4x32xf32>
    %146 = vector.extract_strided_slice %8 {offsets = [0, 288], sizes = [4, 32], strides = [1, 1]} : vector<4x1344xf32> to vector<4x32xf32>
    %147 = vector.broadcast %99 : vector<1x32xf32> to vector<4x32xf32>
    %148 = arith.subf %146, %147 : vector<4x32xf32>
    %149 = arith.mulf %148, %148 : vector<4x32xf32>
    %150 = arith.addf %145, %149 : vector<4x32xf32>
    %151 = vector.extract_strided_slice %8 {offsets = [0, 320], sizes = [4, 32], strides = [1, 1]} : vector<4x1344xf32> to vector<4x32xf32>
    %152 = vector.broadcast %99 : vector<1x32xf32> to vector<4x32xf32>
    %153 = arith.subf %151, %152 : vector<4x32xf32>
    %154 = arith.mulf %153, %153 : vector<4x32xf32>
    %155 = arith.addf %150, %154 : vector<4x32xf32>
    %156 = vector.extract_strided_slice %8 {offsets = [0, 352], sizes = [4, 32], strides = [1, 1]} : vector<4x1344xf32> to vector<4x32xf32>
    %157 = vector.broadcast %99 : vector<1x32xf32> to vector<4x32xf32>
    %158 = arith.subf %156, %157 : vector<4x32xf32>
    %159 = arith.mulf %158, %158 : vector<4x32xf32>
    %160 = arith.addf %155, %159 : vector<4x32xf32>
    %161 = vector.extract_strided_slice %8 {offsets = [0, 384], sizes = [4, 32], strides = [1, 1]} : vector<4x1344xf32> to vector<4x32xf32>
    %162 = vector.broadcast %99 : vector<1x32xf32> to vector<4x32xf32>
    %163 = arith.subf %161, %162 : vector<4x32xf32>
    %164 = arith.mulf %163, %163 : vector<4x32xf32>
    %165 = arith.addf %160, %164 : vector<4x32xf32>
    %166 = vector.extract_strided_slice %8 {offsets = [0, 416], sizes = [4, 32], strides = [1, 1]} : vector<4x1344xf32> to vector<4x32xf32>
    %167 = vector.broadcast %99 : vector<1x32xf32> to vector<4x32xf32>
    %168 = arith.subf %166, %167 : vector<4x32xf32>
    %169 = arith.mulf %168, %168 : vector<4x32xf32>
    %170 = arith.addf %165, %169 : vector<4x32xf32>
    %171 = vector.extract_strided_slice %8 {offsets = [0, 448], sizes = [4, 32], strides = [1, 1]} : vector<4x1344xf32> to vector<4x32xf32>
    %172 = vector.broadcast %99 : vector<1x32xf32> to vector<4x32xf32>
    %173 = arith.subf %171, %172 : vector<4x32xf32>
    %174 = arith.mulf %173, %173 : vector<4x32xf32>
    %175 = arith.addf %170, %174 : vector<4x32xf32>
    %176 = vector.extract_strided_slice %8 {offsets = [0, 480], sizes = [4, 32], strides = [1, 1]} : vector<4x1344xf32> to vector<4x32xf32>
    %177 = vector.broadcast %99 : vector<1x32xf32> to vector<4x32xf32>
    %178 = arith.subf %176, %177 : vector<4x32xf32>
    %179 = arith.mulf %178, %178 : vector<4x32xf32>
    %180 = arith.addf %175, %179 : vector<4x32xf32>
    %181 = vector.extract_strided_slice %8 {offsets = [0, 512], sizes = [4, 32], strides = [1, 1]} : vector<4x1344xf32> to vector<4x32xf32>
    %182 = vector.broadcast %99 : vector<1x32xf32> to vector<4x32xf32>
    %183 = arith.subf %181, %182 : vector<4x32xf32>
    %184 = arith.mulf %183, %183 : vector<4x32xf32>
    %185 = arith.addf %180, %184 : vector<4x32xf32>
    %186 = vector.extract_strided_slice %8 {offsets = [0, 544], sizes = [4, 32], strides = [1, 1]} : vector<4x1344xf32> to vector<4x32xf32>
    %187 = vector.broadcast %99 : vector<1x32xf32> to vector<4x32xf32>
    %188 = arith.subf %186, %187 : vector<4x32xf32>
    %189 = arith.mulf %188, %188 : vector<4x32xf32>
    %190 = arith.addf %185, %189 : vector<4x32xf32>
    %191 = vector.extract_strided_slice %8 {offsets = [0, 576], sizes = [4, 32], strides = [1, 1]} : vector<4x1344xf32> to vector<4x32xf32>
    %192 = vector.broadcast %99 : vector<1x32xf32> to vector<4x32xf32>
    %193 = arith.subf %191, %192 : vector<4x32xf32>
    %194 = arith.mulf %193, %193 : vector<4x32xf32>
    %195 = arith.addf %190, %194 : vector<4x32xf32>
    %196 = vector.extract_strided_slice %8 {offsets = [0, 608], sizes = [4, 32], strides = [1, 1]} : vector<4x1344xf32> to vector<4x32xf32>
    %197 = vector.broadcast %99 : vector<1x32xf32> to vector<4x32xf32>
    %198 = arith.subf %196, %197 : vector<4x32xf32>
    %199 = arith.mulf %198, %198 : vector<4x32xf32>
    %200 = arith.addf %195, %199 : vector<4x32xf32>
    %201 = vector.extract_strided_slice %8 {offsets = [0, 640], sizes = [4, 32], strides = [1, 1]} : vector<4x1344xf32> to vector<4x32xf32>
    %202 = vector.broadcast %99 : vector<1x32xf32> to vector<4x32xf32>
    %203 = arith.subf %201, %202 : vector<4x32xf32>
    %204 = arith.mulf %203, %203 : vector<4x32xf32>
    %205 = arith.addf %200, %204 : vector<4x32xf32>
    %206 = vector.extract_strided_slice %8 {offsets = [0, 672], sizes = [4, 32], strides = [1, 1]} : vector<4x1344xf32> to vector<4x32xf32>
    %207 = vector.broadcast %99 : vector<1x32xf32> to vector<4x32xf32>
    %208 = arith.subf %206, %207 : vector<4x32xf32>
    %209 = arith.mulf %208, %208 : vector<4x32xf32>
    %210 = arith.addf %205, %209 : vector<4x32xf32>
    %211 = vector.extract_strided_slice %8 {offsets = [0, 704], sizes = [4, 32], strides = [1, 1]} : vector<4x1344xf32> to vector<4x32xf32>
    %212 = vector.broadcast %99 : vector<1x32xf32> to vector<4x32xf32>
    %213 = arith.subf %211, %212 : vector<4x32xf32>
    %214 = arith.mulf %213, %213 : vector<4x32xf32>
    %215 = arith.addf %210, %214 : vector<4x32xf32>
    %216 = vector.extract_strided_slice %8 {offsets = [0, 736], sizes = [4, 32], strides = [1, 1]} : vector<4x1344xf32> to vector<4x32xf32>
    %217 = vector.broadcast %99 : vector<1x32xf32> to vector<4x32xf32>
    %218 = arith.subf %216, %217 : vector<4x32xf32>
    %219 = arith.mulf %218, %218 : vector<4x32xf32>
    %220 = arith.addf %215, %219 : vector<4x32xf32>
    %221 = vector.extract_strided_slice %8 {offsets = [0, 768], sizes = [4, 32], strides = [1, 1]} : vector<4x1344xf32> to vector<4x32xf32>
    %222 = vector.broadcast %99 : vector<1x32xf32> to vector<4x32xf32>
    %223 = arith.subf %221, %222 : vector<4x32xf32>
    %224 = arith.mulf %223, %223 : vector<4x32xf32>
    %225 = arith.addf %220, %224 : vector<4x32xf32>
    %226 = vector.extract_strided_slice %8 {offsets = [0, 800], sizes = [4, 32], strides = [1, 1]} : vector<4x1344xf32> to vector<4x32xf32>
    %227 = vector.broadcast %99 : vector<1x32xf32> to vector<4x32xf32>
    %228 = arith.subf %226, %227 : vector<4x32xf32>
    %229 = arith.mulf %228, %228 : vector<4x32xf32>
    %230 = arith.addf %225, %229 : vector<4x32xf32>
    %231 = vector.extract_strided_slice %8 {offsets = [0, 832], sizes = [4, 32], strides = [1, 1]} : vector<4x1344xf32> to vector<4x32xf32>
    %232 = vector.broadcast %99 : vector<1x32xf32> to vector<4x32xf32>
    %233 = arith.subf %231, %232 : vector<4x32xf32>
    %234 = arith.mulf %233, %233 : vector<4x32xf32>
    %235 = arith.addf %230, %234 : vector<4x32xf32>
    %236 = vector.extract_strided_slice %8 {offsets = [0, 864], sizes = [4, 32], strides = [1, 1]} : vector<4x1344xf32> to vector<4x32xf32>
    %237 = vector.broadcast %99 : vector<1x32xf32> to vector<4x32xf32>
    %238 = arith.subf %236, %237 : vector<4x32xf32>
    %239 = arith.mulf %238, %238 : vector<4x32xf32>
    %240 = arith.addf %235, %239 : vector<4x32xf32>
    %241 = vector.extract_strided_slice %8 {offsets = [0, 896], sizes = [4, 32], strides = [1, 1]} : vector<4x1344xf32> to vector<4x32xf32>
    %242 = vector.broadcast %99 : vector<1x32xf32> to vector<4x32xf32>
    %243 = arith.subf %241, %242 : vector<4x32xf32>
    %244 = arith.mulf %243, %243 : vector<4x32xf32>
    %245 = arith.addf %240, %244 : vector<4x32xf32>
    %246 = vector.extract_strided_slice %8 {offsets = [0, 928], sizes = [4, 32], strides = [1, 1]} : vector<4x1344xf32> to vector<4x32xf32>
    %247 = vector.broadcast %99 : vector<1x32xf32> to vector<4x32xf32>
    %248 = arith.subf %246, %247 : vector<4x32xf32>
    %249 = arith.mulf %248, %248 : vector<4x32xf32>
    %250 = arith.addf %245, %249 : vector<4x32xf32>
    %251 = vector.extract_strided_slice %8 {offsets = [0, 960], sizes = [4, 32], strides = [1, 1]} : vector<4x1344xf32> to vector<4x32xf32>
    %252 = vector.broadcast %99 : vector<1x32xf32> to vector<4x32xf32>
    %253 = arith.subf %251, %252 : vector<4x32xf32>
    %254 = arith.mulf %253, %253 : vector<4x32xf32>
    %255 = arith.addf %250, %254 : vector<4x32xf32>
    %256 = vector.extract_strided_slice %8 {offsets = [0, 992], sizes = [4, 32], strides = [1, 1]} : vector<4x1344xf32> to vector<4x32xf32>
    %257 = vector.broadcast %99 : vector<1x32xf32> to vector<4x32xf32>
    %258 = arith.subf %256, %257 : vector<4x32xf32>
    %259 = arith.mulf %258, %258 : vector<4x32xf32>
    %260 = arith.addf %255, %259 : vector<4x32xf32>
    %261 = vector.extract_strided_slice %8 {offsets = [0, 1024], sizes = [4, 32], strides = [1, 1]} : vector<4x1344xf32> to vector<4x32xf32>
    %262 = vector.broadcast %99 : vector<1x32xf32> to vector<4x32xf32>
    %263 = arith.subf %261, %262 : vector<4x32xf32>
    %264 = arith.mulf %263, %263 : vector<4x32xf32>
    %265 = arith.addf %260, %264 : vector<4x32xf32>
    %266 = vector.extract_strided_slice %8 {offsets = [0, 1056], sizes = [4, 32], strides = [1, 1]} : vector<4x1344xf32> to vector<4x32xf32>
    %267 = vector.broadcast %99 : vector<1x32xf32> to vector<4x32xf32>
    %268 = arith.subf %266, %267 : vector<4x32xf32>
    %269 = arith.mulf %268, %268 : vector<4x32xf32>
    %270 = arith.addf %265, %269 : vector<4x32xf32>
    %271 = vector.extract_strided_slice %8 {offsets = [0, 1088], sizes = [4, 32], strides = [1, 1]} : vector<4x1344xf32> to vector<4x32xf32>
    %272 = vector.broadcast %99 : vector<1x32xf32> to vector<4x32xf32>
    %273 = arith.subf %271, %272 : vector<4x32xf32>
    %274 = arith.mulf %273, %273 : vector<4x32xf32>
    %275 = arith.addf %270, %274 : vector<4x32xf32>
    %276 = vector.extract_strided_slice %8 {offsets = [0, 1120], sizes = [4, 32], strides = [1, 1]} : vector<4x1344xf32> to vector<4x32xf32>
    %277 = vector.broadcast %99 : vector<1x32xf32> to vector<4x32xf32>
    %278 = arith.subf %276, %277 : vector<4x32xf32>
    %279 = arith.mulf %278, %278 : vector<4x32xf32>
    %280 = arith.addf %275, %279 : vector<4x32xf32>
    %281 = vector.extract_strided_slice %8 {offsets = [0, 1152], sizes = [4, 32], strides = [1, 1]} : vector<4x1344xf32> to vector<4x32xf32>
    %282 = vector.broadcast %99 : vector<1x32xf32> to vector<4x32xf32>
    %283 = arith.subf %281, %282 : vector<4x32xf32>
    %284 = arith.mulf %283, %283 : vector<4x32xf32>
    %285 = arith.addf %280, %284 : vector<4x32xf32>
    %286 = vector.extract_strided_slice %8 {offsets = [0, 1184], sizes = [4, 32], strides = [1, 1]} : vector<4x1344xf32> to vector<4x32xf32>
    %287 = vector.broadcast %99 : vector<1x32xf32> to vector<4x32xf32>
    %288 = arith.subf %286, %287 : vector<4x32xf32>
    %289 = arith.mulf %288, %288 : vector<4x32xf32>
    %290 = arith.addf %285, %289 : vector<4x32xf32>
    %291 = vector.extract_strided_slice %8 {offsets = [0, 1216], sizes = [4, 32], strides = [1, 1]} : vector<4x1344xf32> to vector<4x32xf32>
    %292 = vector.broadcast %99 : vector<1x32xf32> to vector<4x32xf32>
    %293 = arith.subf %291, %292 : vector<4x32xf32>
    %294 = arith.mulf %293, %293 : vector<4x32xf32>
    %295 = arith.addf %290, %294 : vector<4x32xf32>
    %296 = vector.extract_strided_slice %8 {offsets = [0, 1248], sizes = [4, 32], strides = [1, 1]} : vector<4x1344xf32> to vector<4x32xf32>
    %297 = vector.broadcast %99 : vector<1x32xf32> to vector<4x32xf32>
    %298 = arith.subf %296, %297 : vector<4x32xf32>
    %299 = arith.mulf %298, %298 : vector<4x32xf32>
    %300 = arith.addf %295, %299 : vector<4x32xf32>
    %301 = vector.extract_strided_slice %8 {offsets = [0, 1280], sizes = [4, 32], strides = [1, 1]} : vector<4x1344xf32> to vector<4x32xf32>
    %302 = vector.broadcast %99 : vector<1x32xf32> to vector<4x32xf32>
    %303 = arith.subf %301, %302 : vector<4x32xf32>
    %304 = arith.mulf %303, %303 : vector<4x32xf32>
    %305 = arith.addf %300, %304 : vector<4x32xf32>
    %306 = vector.extract_strided_slice %8 {offsets = [0, 1312], sizes = [4, 32], strides = [1, 1]} : vector<4x1344xf32> to vector<4x32xf32>
    %307 = vector.broadcast %99 : vector<1x32xf32> to vector<4x32xf32>
    %308 = arith.subf %306, %307 : vector<4x32xf32>
    %309 = arith.mulf %308, %308 : vector<4x32xf32>
    %310 = arith.addf %305, %309 : vector<4x32xf32>
    %cst_15 = arith.constant dense<0.000000e+00> : vector<32xf32>
    %311 = vector.multi_reduction <add>, %310, %cst_15 [0] : vector<4x32xf32> to vector<32xf32>
    %312 = vector.shape_cast %311 : vector<32xf32> to vector<1x32xf32>
    %cst_16 = arith.constant 1.680000e+02 : f32
    %313 = vector.broadcast %cst_16 : f32 to vector<1x32xf32>
    %314 = arith.divf %312, %313 : vector<1x32xf32>
    %cst_17 = arith.constant 9.99999974E-6 : f32
    %315 = vector.broadcast %cst_17 : f32 to vector<1x32xf32>
    %316 = arith.addf %314, %315 : vector<1x32xf32>
    %317 = math.rsqrt %316 : vector<1x32xf32>
    %318 = arith.mulf %9, %317 : vector<1x32xf32>
    %319 = arith.mulf %99, %318 : vector<1x32xf32>
    %320 = arith.subf %10, %319 : vector<1x32xf32>
    %321 = vector.extract_strided_slice %8 {offsets = [0, 0], sizes = [4, 32], strides = [1, 1]} : vector<4x1344xf32> to vector<4x32xf32>
    %322 = vector.broadcast %318 : vector<1x32xf32> to vector<4x32xf32>
    %323 = arith.mulf %321, %322 : vector<4x32xf32>
    %324 = vector.broadcast %320 : vector<1x32xf32> to vector<4x32xf32>
    %325 = arith.addf %323, %324 : vector<4x32xf32>
    %326 = vector.extract_strided_slice %8 {offsets = [0, 32], sizes = [4, 32], strides = [1, 1]} : vector<4x1344xf32> to vector<4x32xf32>
    %327 = vector.broadcast %318 : vector<1x32xf32> to vector<4x32xf32>
    %328 = arith.mulf %326, %327 : vector<4x32xf32>
    %329 = vector.broadcast %320 : vector<1x32xf32> to vector<4x32xf32>
    %330 = arith.addf %328, %329 : vector<4x32xf32>
    %331 = vector.extract_strided_slice %8 {offsets = [0, 64], sizes = [4, 32], strides = [1, 1]} : vector<4x1344xf32> to vector<4x32xf32>
    %332 = vector.broadcast %318 : vector<1x32xf32> to vector<4x32xf32>
    %333 = arith.mulf %331, %332 : vector<4x32xf32>
    %334 = vector.broadcast %320 : vector<1x32xf32> to vector<4x32xf32>
    %335 = arith.addf %333, %334 : vector<4x32xf32>
    %336 = arith.maximumf %325, %330 : vector<4x32xf32>
    %337 = arith.maximumf %336, %335 : vector<4x32xf32>
    %338 = vector.extract_strided_slice %8 {offsets = [0, 64], sizes = [4, 32], strides = [1, 1]} : vector<4x1344xf32> to vector<4x32xf32>
    %339 = vector.broadcast %318 : vector<1x32xf32> to vector<4x32xf32>
    %340 = arith.mulf %338, %339 : vector<4x32xf32>
    %341 = vector.broadcast %320 : vector<1x32xf32> to vector<4x32xf32>
    %342 = arith.addf %340, %341 : vector<4x32xf32>
    %343 = vector.extract_strided_slice %8 {offsets = [0, 96], sizes = [4, 32], strides = [1, 1]} : vector<4x1344xf32> to vector<4x32xf32>
    %344 = vector.broadcast %318 : vector<1x32xf32> to vector<4x32xf32>
    %345 = arith.mulf %343, %344 : vector<4x32xf32>
    %346 = vector.broadcast %320 : vector<1x32xf32> to vector<4x32xf32>
    %347 = arith.addf %345, %346 : vector<4x32xf32>
    %348 = vector.extract_strided_slice %8 {offsets = [0, 128], sizes = [4, 32], strides = [1, 1]} : vector<4x1344xf32> to vector<4x32xf32>
    %349 = vector.broadcast %318 : vector<1x32xf32> to vector<4x32xf32>
    %350 = arith.mulf %348, %349 : vector<4x32xf32>
    %351 = vector.broadcast %320 : vector<1x32xf32> to vector<4x32xf32>
    %352 = arith.addf %350, %351 : vector<4x32xf32>
    %353 = arith.maximumf %342, %347 : vector<4x32xf32>
    %354 = arith.maximumf %353, %352 : vector<4x32xf32>
    %355 = vector.extract_strided_slice %8 {offsets = [0, 128], sizes = [4, 32], strides = [1, 1]} : vector<4x1344xf32> to vector<4x32xf32>
    %356 = vector.broadcast %318 : vector<1x32xf32> to vector<4x32xf32>
    %357 = arith.mulf %355, %356 : vector<4x32xf32>
    %358 = vector.broadcast %320 : vector<1x32xf32> to vector<4x32xf32>
    %359 = arith.addf %357, %358 : vector<4x32xf32>
    %360 = vector.extract_strided_slice %8 {offsets = [0, 160], sizes = [4, 32], strides = [1, 1]} : vector<4x1344xf32> to vector<4x32xf32>
    %361 = vector.broadcast %318 : vector<1x32xf32> to vector<4x32xf32>
    %362 = arith.mulf %360, %361 : vector<4x32xf32>
    %363 = vector.broadcast %320 : vector<1x32xf32> to vector<4x32xf32>
    %364 = arith.addf %362, %363 : vector<4x32xf32>
    %365 = vector.extract_strided_slice %8 {offsets = [0, 192], sizes = [4, 32], strides = [1, 1]} : vector<4x1344xf32> to vector<4x32xf32>
    %366 = vector.broadcast %318 : vector<1x32xf32> to vector<4x32xf32>
    %367 = arith.mulf %365, %366 : vector<4x32xf32>
    %368 = vector.broadcast %320 : vector<1x32xf32> to vector<4x32xf32>
    %369 = arith.addf %367, %368 : vector<4x32xf32>
    %370 = arith.maximumf %359, %364 : vector<4x32xf32>
    %371 = arith.maximumf %370, %369 : vector<4x32xf32>
    %372 = vector.extract_strided_slice %8 {offsets = [0, 192], sizes = [4, 32], strides = [1, 1]} : vector<4x1344xf32> to vector<4x32xf32>
    %373 = vector.broadcast %318 : vector<1x32xf32> to vector<4x32xf32>
    %374 = arith.mulf %372, %373 : vector<4x32xf32>
    %375 = vector.broadcast %320 : vector<1x32xf32> to vector<4x32xf32>
    %376 = arith.addf %374, %375 : vector<4x32xf32>
    %377 = vector.extract_strided_slice %8 {offsets = [0, 224], sizes = [4, 32], strides = [1, 1]} : vector<4x1344xf32> to vector<4x32xf32>
    %378 = vector.broadcast %318 : vector<1x32xf32> to vector<4x32xf32>
    %379 = arith.mulf %377, %378 : vector<4x32xf32>
    %380 = vector.broadcast %320 : vector<1x32xf32> to vector<4x32xf32>
    %381 = arith.addf %379, %380 : vector<4x32xf32>
    %382 = vector.extract_strided_slice %8 {offsets = [0, 256], sizes = [4, 32], strides = [1, 1]} : vector<4x1344xf32> to vector<4x32xf32>
    %383 = vector.broadcast %318 : vector<1x32xf32> to vector<4x32xf32>
    %384 = arith.mulf %382, %383 : vector<4x32xf32>
    %385 = vector.broadcast %320 : vector<1x32xf32> to vector<4x32xf32>
    %386 = arith.addf %384, %385 : vector<4x32xf32>
    %387 = arith.maximumf %376, %381 : vector<4x32xf32>
    %388 = arith.maximumf %387, %386 : vector<4x32xf32>
    %389 = vector.extract_strided_slice %8 {offsets = [0, 256], sizes = [4, 32], strides = [1, 1]} : vector<4x1344xf32> to vector<4x32xf32>
    %390 = vector.broadcast %318 : vector<1x32xf32> to vector<4x32xf32>
    %391 = arith.mulf %389, %390 : vector<4x32xf32>
    %392 = vector.broadcast %320 : vector<1x32xf32> to vector<4x32xf32>
    %393 = arith.addf %391, %392 : vector<4x32xf32>
    %394 = vector.extract_strided_slice %8 {offsets = [0, 288], sizes = [4, 32], strides = [1, 1]} : vector<4x1344xf32> to vector<4x32xf32>
    %395 = vector.broadcast %318 : vector<1x32xf32> to vector<4x32xf32>
    %396 = arith.mulf %394, %395 : vector<4x32xf32>
    %397 = vector.broadcast %320 : vector<1x32xf32> to vector<4x32xf32>
    %398 = arith.addf %396, %397 : vector<4x32xf32>
    %399 = vector.extract_strided_slice %8 {offsets = [0, 320], sizes = [4, 32], strides = [1, 1]} : vector<4x1344xf32> to vector<4x32xf32>
    %400 = vector.broadcast %318 : vector<1x32xf32> to vector<4x32xf32>
    %401 = arith.mulf %399, %400 : vector<4x32xf32>
    %402 = vector.broadcast %320 : vector<1x32xf32> to vector<4x32xf32>
    %403 = arith.addf %401, %402 : vector<4x32xf32>
    %404 = arith.maximumf %393, %398 : vector<4x32xf32>
    %405 = arith.maximumf %404, %403 : vector<4x32xf32>
    %406 = vector.extract_strided_slice %8 {offsets = [0, 320], sizes = [4, 32], strides = [1, 1]} : vector<4x1344xf32> to vector<4x32xf32>
    %407 = vector.broadcast %318 : vector<1x32xf32> to vector<4x32xf32>
    %408 = arith.mulf %406, %407 : vector<4x32xf32>
    %409 = vector.broadcast %320 : vector<1x32xf32> to vector<4x32xf32>
    %410 = arith.addf %408, %409 : vector<4x32xf32>
    %411 = vector.extract_strided_slice %8 {offsets = [0, 352], sizes = [4, 32], strides = [1, 1]} : vector<4x1344xf32> to vector<4x32xf32>
    %412 = vector.broadcast %318 : vector<1x32xf32> to vector<4x32xf32>
    %413 = arith.mulf %411, %412 : vector<4x32xf32>
    %414 = vector.broadcast %320 : vector<1x32xf32> to vector<4x32xf32>
    %415 = arith.addf %413, %414 : vector<4x32xf32>
    %416 = vector.extract_strided_slice %8 {offsets = [0, 384], sizes = [4, 32], strides = [1, 1]} : vector<4x1344xf32> to vector<4x32xf32>
    %417 = vector.broadcast %318 : vector<1x32xf32> to vector<4x32xf32>
    %418 = arith.mulf %416, %417 : vector<4x32xf32>
    %419 = vector.broadcast %320 : vector<1x32xf32> to vector<4x32xf32>
    %420 = arith.addf %418, %419 : vector<4x32xf32>
    %421 = arith.maximumf %410, %415 : vector<4x32xf32>
    %422 = arith.maximumf %421, %420 : vector<4x32xf32>
    %423 = vector.extract_strided_slice %8 {offsets = [0, 384], sizes = [4, 32], strides = [1, 1]} : vector<4x1344xf32> to vector<4x32xf32>
    %424 = vector.broadcast %318 : vector<1x32xf32> to vector<4x32xf32>
    %425 = arith.mulf %423, %424 : vector<4x32xf32>
    %426 = vector.broadcast %320 : vector<1x32xf32> to vector<4x32xf32>
    %427 = arith.addf %425, %426 : vector<4x32xf32>
    %428 = vector.extract_strided_slice %8 {offsets = [0, 416], sizes = [4, 32], strides = [1, 1]} : vector<4x1344xf32> to vector<4x32xf32>
    %429 = vector.broadcast %318 : vector<1x32xf32> to vector<4x32xf32>
    %430 = arith.mulf %428, %429 : vector<4x32xf32>
    %431 = vector.broadcast %320 : vector<1x32xf32> to vector<4x32xf32>
    %432 = arith.addf %430, %431 : vector<4x32xf32>
    %433 = vector.extract_strided_slice %8 {offsets = [0, 448], sizes = [4, 32], strides = [1, 1]} : vector<4x1344xf32> to vector<4x32xf32>
    %434 = vector.broadcast %318 : vector<1x32xf32> to vector<4x32xf32>
    %435 = arith.mulf %433, %434 : vector<4x32xf32>
    %436 = vector.broadcast %320 : vector<1x32xf32> to vector<4x32xf32>
    %437 = arith.addf %435, %436 : vector<4x32xf32>
    %438 = arith.maximumf %427, %432 : vector<4x32xf32>
    %439 = arith.maximumf %438, %437 : vector<4x32xf32>
    %440 = vector.extract_strided_slice %8 {offsets = [0, 448], sizes = [4, 32], strides = [1, 1]} : vector<4x1344xf32> to vector<4x32xf32>
    %441 = vector.broadcast %318 : vector<1x32xf32> to vector<4x32xf32>
    %442 = arith.mulf %440, %441 : vector<4x32xf32>
    %443 = vector.broadcast %320 : vector<1x32xf32> to vector<4x32xf32>
    %444 = arith.addf %442, %443 : vector<4x32xf32>
    %445 = vector.extract_strided_slice %8 {offsets = [0, 480], sizes = [4, 32], strides = [1, 1]} : vector<4x1344xf32> to vector<4x32xf32>
    %446 = vector.broadcast %318 : vector<1x32xf32> to vector<4x32xf32>
    %447 = arith.mulf %445, %446 : vector<4x32xf32>
    %448 = vector.broadcast %320 : vector<1x32xf32> to vector<4x32xf32>
    %449 = arith.addf %447, %448 : vector<4x32xf32>
    %450 = vector.extract_strided_slice %8 {offsets = [0, 512], sizes = [4, 32], strides = [1, 1]} : vector<4x1344xf32> to vector<4x32xf32>
    %451 = vector.broadcast %318 : vector<1x32xf32> to vector<4x32xf32>
    %452 = arith.mulf %450, %451 : vector<4x32xf32>
    %453 = vector.broadcast %320 : vector<1x32xf32> to vector<4x32xf32>
    %454 = arith.addf %452, %453 : vector<4x32xf32>
    %455 = arith.maximumf %444, %449 : vector<4x32xf32>
    %456 = arith.maximumf %455, %454 : vector<4x32xf32>
    %457 = vector.extract_strided_slice %8 {offsets = [0, 512], sizes = [4, 32], strides = [1, 1]} : vector<4x1344xf32> to vector<4x32xf32>
    %458 = vector.broadcast %318 : vector<1x32xf32> to vector<4x32xf32>
    %459 = arith.mulf %457, %458 : vector<4x32xf32>
    %460 = vector.broadcast %320 : vector<1x32xf32> to vector<4x32xf32>
    %461 = arith.addf %459, %460 : vector<4x32xf32>
    %462 = vector.extract_strided_slice %8 {offsets = [0, 544], sizes = [4, 32], strides = [1, 1]} : vector<4x1344xf32> to vector<4x32xf32>
    %463 = vector.broadcast %318 : vector<1x32xf32> to vector<4x32xf32>
    %464 = arith.mulf %462, %463 : vector<4x32xf32>
    %465 = vector.broadcast %320 : vector<1x32xf32> to vector<4x32xf32>
    %466 = arith.addf %464, %465 : vector<4x32xf32>
    %467 = vector.extract_strided_slice %8 {offsets = [0, 576], sizes = [4, 32], strides = [1, 1]} : vector<4x1344xf32> to vector<4x32xf32>
    %468 = vector.broadcast %318 : vector<1x32xf32> to vector<4x32xf32>
    %469 = arith.mulf %467, %468 : vector<4x32xf32>
    %470 = vector.broadcast %320 : vector<1x32xf32> to vector<4x32xf32>
    %471 = arith.addf %469, %470 : vector<4x32xf32>
    %472 = arith.maximumf %461, %466 : vector<4x32xf32>
    %473 = arith.maximumf %472, %471 : vector<4x32xf32>
    %474 = vector.extract_strided_slice %8 {offsets = [0, 576], sizes = [4, 32], strides = [1, 1]} : vector<4x1344xf32> to vector<4x32xf32>
    %475 = vector.broadcast %318 : vector<1x32xf32> to vector<4x32xf32>
    %476 = arith.mulf %474, %475 : vector<4x32xf32>
    %477 = vector.broadcast %320 : vector<1x32xf32> to vector<4x32xf32>
    %478 = arith.addf %476, %477 : vector<4x32xf32>
    %479 = vector.extract_strided_slice %8 {offsets = [0, 608], sizes = [4, 32], strides = [1, 1]} : vector<4x1344xf32> to vector<4x32xf32>
    %480 = vector.broadcast %318 : vector<1x32xf32> to vector<4x32xf32>
    %481 = arith.mulf %479, %480 : vector<4x32xf32>
    %482 = vector.broadcast %320 : vector<1x32xf32> to vector<4x32xf32>
    %483 = arith.addf %481, %482 : vector<4x32xf32>
    %484 = vector.extract_strided_slice %8 {offsets = [0, 640], sizes = [4, 32], strides = [1, 1]} : vector<4x1344xf32> to vector<4x32xf32>
    %485 = vector.broadcast %318 : vector<1x32xf32> to vector<4x32xf32>
    %486 = arith.mulf %484, %485 : vector<4x32xf32>
    %487 = vector.broadcast %320 : vector<1x32xf32> to vector<4x32xf32>
    %488 = arith.addf %486, %487 : vector<4x32xf32>
    %489 = arith.maximumf %478, %483 : vector<4x32xf32>
    %490 = arith.maximumf %489, %488 : vector<4x32xf32>
    %491 = vector.extract_strided_slice %8 {offsets = [0, 640], sizes = [4, 32], strides = [1, 1]} : vector<4x1344xf32> to vector<4x32xf32>
    %492 = vector.broadcast %318 : vector<1x32xf32> to vector<4x32xf32>
    %493 = arith.mulf %491, %492 : vector<4x32xf32>
    %494 = vector.broadcast %320 : vector<1x32xf32> to vector<4x32xf32>
    %495 = arith.addf %493, %494 : vector<4x32xf32>
    %496 = vector.extract_strided_slice %8 {offsets = [0, 672], sizes = [4, 32], strides = [1, 1]} : vector<4x1344xf32> to vector<4x32xf32>
    %497 = vector.broadcast %318 : vector<1x32xf32> to vector<4x32xf32>
    %498 = arith.mulf %496, %497 : vector<4x32xf32>
    %499 = vector.broadcast %320 : vector<1x32xf32> to vector<4x32xf32>
    %500 = arith.addf %498, %499 : vector<4x32xf32>
    %501 = vector.extract_strided_slice %8 {offsets = [0, 704], sizes = [4, 32], strides = [1, 1]} : vector<4x1344xf32> to vector<4x32xf32>
    %502 = vector.broadcast %318 : vector<1x32xf32> to vector<4x32xf32>
    %503 = arith.mulf %501, %502 : vector<4x32xf32>
    %504 = vector.broadcast %320 : vector<1x32xf32> to vector<4x32xf32>
    %505 = arith.addf %503, %504 : vector<4x32xf32>
    %506 = arith.maximumf %495, %500 : vector<4x32xf32>
    %507 = arith.maximumf %506, %505 : vector<4x32xf32>
    %508 = vector.extract_strided_slice %8 {offsets = [0, 704], sizes = [4, 32], strides = [1, 1]} : vector<4x1344xf32> to vector<4x32xf32>
    %509 = vector.broadcast %318 : vector<1x32xf32> to vector<4x32xf32>
    %510 = arith.mulf %508, %509 : vector<4x32xf32>
    %511 = vector.broadcast %320 : vector<1x32xf32> to vector<4x32xf32>
    %512 = arith.addf %510, %511 : vector<4x32xf32>
    %513 = vector.extract_strided_slice %8 {offsets = [0, 736], sizes = [4, 32], strides = [1, 1]} : vector<4x1344xf32> to vector<4x32xf32>
    %514 = vector.broadcast %318 : vector<1x32xf32> to vector<4x32xf32>
    %515 = arith.mulf %513, %514 : vector<4x32xf32>
    %516 = vector.broadcast %320 : vector<1x32xf32> to vector<4x32xf32>
    %517 = arith.addf %515, %516 : vector<4x32xf32>
    %518 = vector.extract_strided_slice %8 {offsets = [0, 768], sizes = [4, 32], strides = [1, 1]} : vector<4x1344xf32> to vector<4x32xf32>
    %519 = vector.broadcast %318 : vector<1x32xf32> to vector<4x32xf32>
    %520 = arith.mulf %518, %519 : vector<4x32xf32>
    %521 = vector.broadcast %320 : vector<1x32xf32> to vector<4x32xf32>
    %522 = arith.addf %520, %521 : vector<4x32xf32>
    %523 = arith.maximumf %512, %517 : vector<4x32xf32>
    %524 = arith.maximumf %523, %522 : vector<4x32xf32>
    %525 = vector.extract_strided_slice %8 {offsets = [0, 768], sizes = [4, 32], strides = [1, 1]} : vector<4x1344xf32> to vector<4x32xf32>
    %526 = vector.broadcast %318 : vector<1x32xf32> to vector<4x32xf32>
    %527 = arith.mulf %525, %526 : vector<4x32xf32>
    %528 = vector.broadcast %320 : vector<1x32xf32> to vector<4x32xf32>
    %529 = arith.addf %527, %528 : vector<4x32xf32>
    %530 = vector.extract_strided_slice %8 {offsets = [0, 800], sizes = [4, 32], strides = [1, 1]} : vector<4x1344xf32> to vector<4x32xf32>
    %531 = vector.broadcast %318 : vector<1x32xf32> to vector<4x32xf32>
    %532 = arith.mulf %530, %531 : vector<4x32xf32>
    %533 = vector.broadcast %320 : vector<1x32xf32> to vector<4x32xf32>
    %534 = arith.addf %532, %533 : vector<4x32xf32>
    %535 = vector.extract_strided_slice %8 {offsets = [0, 832], sizes = [4, 32], strides = [1, 1]} : vector<4x1344xf32> to vector<4x32xf32>
    %536 = vector.broadcast %318 : vector<1x32xf32> to vector<4x32xf32>
    %537 = arith.mulf %535, %536 : vector<4x32xf32>
    %538 = vector.broadcast %320 : vector<1x32xf32> to vector<4x32xf32>
    %539 = arith.addf %537, %538 : vector<4x32xf32>
    %540 = arith.maximumf %529, %534 : vector<4x32xf32>
    %541 = arith.maximumf %540, %539 : vector<4x32xf32>
    %542 = vector.extract_strided_slice %8 {offsets = [0, 832], sizes = [4, 32], strides = [1, 1]} : vector<4x1344xf32> to vector<4x32xf32>
    %543 = vector.broadcast %318 : vector<1x32xf32> to vector<4x32xf32>
    %544 = arith.mulf %542, %543 : vector<4x32xf32>
    %545 = vector.broadcast %320 : vector<1x32xf32> to vector<4x32xf32>
    %546 = arith.addf %544, %545 : vector<4x32xf32>
    %547 = vector.extract_strided_slice %8 {offsets = [0, 864], sizes = [4, 32], strides = [1, 1]} : vector<4x1344xf32> to vector<4x32xf32>
    %548 = vector.broadcast %318 : vector<1x32xf32> to vector<4x32xf32>
    %549 = arith.mulf %547, %548 : vector<4x32xf32>
    %550 = vector.broadcast %320 : vector<1x32xf32> to vector<4x32xf32>
    %551 = arith.addf %549, %550 : vector<4x32xf32>
    %552 = vector.extract_strided_slice %8 {offsets = [0, 896], sizes = [4, 32], strides = [1, 1]} : vector<4x1344xf32> to vector<4x32xf32>
    %553 = vector.broadcast %318 : vector<1x32xf32> to vector<4x32xf32>
    %554 = arith.mulf %552, %553 : vector<4x32xf32>
    %555 = vector.broadcast %320 : vector<1x32xf32> to vector<4x32xf32>
    %556 = arith.addf %554, %555 : vector<4x32xf32>
    %557 = arith.maximumf %546, %551 : vector<4x32xf32>
    %558 = arith.maximumf %557, %556 : vector<4x32xf32>
    %559 = vector.extract_strided_slice %8 {offsets = [0, 896], sizes = [4, 32], strides = [1, 1]} : vector<4x1344xf32> to vector<4x32xf32>
    %560 = vector.broadcast %318 : vector<1x32xf32> to vector<4x32xf32>
    %561 = arith.mulf %559, %560 : vector<4x32xf32>
    %562 = vector.broadcast %320 : vector<1x32xf32> to vector<4x32xf32>
    %563 = arith.addf %561, %562 : vector<4x32xf32>
    %564 = vector.extract_strided_slice %8 {offsets = [0, 928], sizes = [4, 32], strides = [1, 1]} : vector<4x1344xf32> to vector<4x32xf32>
    %565 = vector.broadcast %318 : vector<1x32xf32> to vector<4x32xf32>
    %566 = arith.mulf %564, %565 : vector<4x32xf32>
    %567 = vector.broadcast %320 : vector<1x32xf32> to vector<4x32xf32>
    %568 = arith.addf %566, %567 : vector<4x32xf32>
    %569 = vector.extract_strided_slice %8 {offsets = [0, 960], sizes = [4, 32], strides = [1, 1]} : vector<4x1344xf32> to vector<4x32xf32>
    %570 = vector.broadcast %318 : vector<1x32xf32> to vector<4x32xf32>
    %571 = arith.mulf %569, %570 : vector<4x32xf32>
    %572 = vector.broadcast %320 : vector<1x32xf32> to vector<4x32xf32>
    %573 = arith.addf %571, %572 : vector<4x32xf32>
    %574 = arith.maximumf %563, %568 : vector<4x32xf32>
    %575 = arith.maximumf %574, %573 : vector<4x32xf32>
    %576 = vector.extract_strided_slice %8 {offsets = [0, 960], sizes = [4, 32], strides = [1, 1]} : vector<4x1344xf32> to vector<4x32xf32>
    %577 = vector.broadcast %318 : vector<1x32xf32> to vector<4x32xf32>
    %578 = arith.mulf %576, %577 : vector<4x32xf32>
    %579 = vector.broadcast %320 : vector<1x32xf32> to vector<4x32xf32>
    %580 = arith.addf %578, %579 : vector<4x32xf32>
    %581 = vector.extract_strided_slice %8 {offsets = [0, 992], sizes = [4, 32], strides = [1, 1]} : vector<4x1344xf32> to vector<4x32xf32>
    %582 = vector.broadcast %318 : vector<1x32xf32> to vector<4x32xf32>
    %583 = arith.mulf %581, %582 : vector<4x32xf32>
    %584 = vector.broadcast %320 : vector<1x32xf32> to vector<4x32xf32>
    %585 = arith.addf %583, %584 : vector<4x32xf32>
    %586 = vector.extract_strided_slice %8 {offsets = [0, 1024], sizes = [4, 32], strides = [1, 1]} : vector<4x1344xf32> to vector<4x32xf32>
    %587 = vector.broadcast %318 : vector<1x32xf32> to vector<4x32xf32>
    %588 = arith.mulf %586, %587 : vector<4x32xf32>
    %589 = vector.broadcast %320 : vector<1x32xf32> to vector<4x32xf32>
    %590 = arith.addf %588, %589 : vector<4x32xf32>
    %591 = arith.maximumf %580, %585 : vector<4x32xf32>
    %592 = arith.maximumf %591, %590 : vector<4x32xf32>
    %593 = vector.extract_strided_slice %8 {offsets = [0, 1024], sizes = [4, 32], strides = [1, 1]} : vector<4x1344xf32> to vector<4x32xf32>
    %594 = vector.broadcast %318 : vector<1x32xf32> to vector<4x32xf32>
    %595 = arith.mulf %593, %594 : vector<4x32xf32>
    %596 = vector.broadcast %320 : vector<1x32xf32> to vector<4x32xf32>
    %597 = arith.addf %595, %596 : vector<4x32xf32>
    %598 = vector.extract_strided_slice %8 {offsets = [0, 1056], sizes = [4, 32], strides = [1, 1]} : vector<4x1344xf32> to vector<4x32xf32>
    %599 = vector.broadcast %318 : vector<1x32xf32> to vector<4x32xf32>
    %600 = arith.mulf %598, %599 : vector<4x32xf32>
    %601 = vector.broadcast %320 : vector<1x32xf32> to vector<4x32xf32>
    %602 = arith.addf %600, %601 : vector<4x32xf32>
    %603 = vector.extract_strided_slice %8 {offsets = [0, 1088], sizes = [4, 32], strides = [1, 1]} : vector<4x1344xf32> to vector<4x32xf32>
    %604 = vector.broadcast %318 : vector<1x32xf32> to vector<4x32xf32>
    %605 = arith.mulf %603, %604 : vector<4x32xf32>
    %606 = vector.broadcast %320 : vector<1x32xf32> to vector<4x32xf32>
    %607 = arith.addf %605, %606 : vector<4x32xf32>
    %608 = arith.maximumf %597, %602 : vector<4x32xf32>
    %609 = arith.maximumf %608, %607 : vector<4x32xf32>
    %610 = vector.extract_strided_slice %8 {offsets = [0, 1088], sizes = [4, 32], strides = [1, 1]} : vector<4x1344xf32> to vector<4x32xf32>
    %611 = vector.broadcast %318 : vector<1x32xf32> to vector<4x32xf32>
    %612 = arith.mulf %610, %611 : vector<4x32xf32>
    %613 = vector.broadcast %320 : vector<1x32xf32> to vector<4x32xf32>
    %614 = arith.addf %612, %613 : vector<4x32xf32>
    %615 = vector.extract_strided_slice %8 {offsets = [0, 1120], sizes = [4, 32], strides = [1, 1]} : vector<4x1344xf32> to vector<4x32xf32>
    %616 = vector.broadcast %318 : vector<1x32xf32> to vector<4x32xf32>
    %617 = arith.mulf %615, %616 : vector<4x32xf32>
    %618 = vector.broadcast %320 : vector<1x32xf32> to vector<4x32xf32>
    %619 = arith.addf %617, %618 : vector<4x32xf32>
    %620 = vector.extract_strided_slice %8 {offsets = [0, 1152], sizes = [4, 32], strides = [1, 1]} : vector<4x1344xf32> to vector<4x32xf32>
    %621 = vector.broadcast %318 : vector<1x32xf32> to vector<4x32xf32>
    %622 = arith.mulf %620, %621 : vector<4x32xf32>
    %623 = vector.broadcast %320 : vector<1x32xf32> to vector<4x32xf32>
    %624 = arith.addf %622, %623 : vector<4x32xf32>
    %625 = arith.maximumf %614, %619 : vector<4x32xf32>
    %626 = arith.maximumf %625, %624 : vector<4x32xf32>
    %627 = vector.extract_strided_slice %8 {offsets = [0, 1152], sizes = [4, 32], strides = [1, 1]} : vector<4x1344xf32> to vector<4x32xf32>
    %628 = vector.broadcast %318 : vector<1x32xf32> to vector<4x32xf32>
    %629 = arith.mulf %627, %628 : vector<4x32xf32>
    %630 = vector.broadcast %320 : vector<1x32xf32> to vector<4x32xf32>
    %631 = arith.addf %629, %630 : vector<4x32xf32>
    %632 = vector.extract_strided_slice %8 {offsets = [0, 1184], sizes = [4, 32], strides = [1, 1]} : vector<4x1344xf32> to vector<4x32xf32>
    %633 = vector.broadcast %318 : vector<1x32xf32> to vector<4x32xf32>
    %634 = arith.mulf %632, %633 : vector<4x32xf32>
    %635 = vector.broadcast %320 : vector<1x32xf32> to vector<4x32xf32>
    %636 = arith.addf %634, %635 : vector<4x32xf32>
    %637 = vector.extract_strided_slice %8 {offsets = [0, 1216], sizes = [4, 32], strides = [1, 1]} : vector<4x1344xf32> to vector<4x32xf32>
    %638 = vector.broadcast %318 : vector<1x32xf32> to vector<4x32xf32>
    %639 = arith.mulf %637, %638 : vector<4x32xf32>
    %640 = vector.broadcast %320 : vector<1x32xf32> to vector<4x32xf32>
    %641 = arith.addf %639, %640 : vector<4x32xf32>
    %642 = arith.maximumf %631, %636 : vector<4x32xf32>
    %643 = arith.maximumf %642, %641 : vector<4x32xf32>
    %644 = vector.extract_strided_slice %8 {offsets = [0, 1216], sizes = [4, 32], strides = [1, 1]} : vector<4x1344xf32> to vector<4x32xf32>
    %645 = vector.broadcast %318 : vector<1x32xf32> to vector<4x32xf32>
    %646 = arith.mulf %644, %645 : vector<4x32xf32>
    %647 = vector.broadcast %320 : vector<1x32xf32> to vector<4x32xf32>
    %648 = arith.addf %646, %647 : vector<4x32xf32>
    %649 = vector.extract_strided_slice %8 {offsets = [0, 1248], sizes = [4, 32], strides = [1, 1]} : vector<4x1344xf32> to vector<4x32xf32>
    %650 = vector.broadcast %318 : vector<1x32xf32> to vector<4x32xf32>
    %651 = arith.mulf %649, %650 : vector<4x32xf32>
    %652 = vector.broadcast %320 : vector<1x32xf32> to vector<4x32xf32>
    %653 = arith.addf %651, %652 : vector<4x32xf32>
    %654 = vector.extract_strided_slice %8 {offsets = [0, 1280], sizes = [4, 32], strides = [1, 1]} : vector<4x1344xf32> to vector<4x32xf32>
    %655 = vector.broadcast %318 : vector<1x32xf32> to vector<4x32xf32>
    %656 = arith.mulf %654, %655 : vector<4x32xf32>
    %657 = vector.broadcast %320 : vector<1x32xf32> to vector<4x32xf32>
    %658 = arith.addf %656, %657 : vector<4x32xf32>
    %659 = arith.maximumf %648, %653 : vector<4x32xf32>
    %660 = arith.maximumf %659, %658 : vector<4x32xf32>
    %661 = tpu.concatenate %337, %354, %371, %388, %405, %422, %439, %456, %473, %490, %507, %524, %541, %558, %575, %592 in 1 : vector<4x32xf32>, vector<4x32xf32>, vector<4x32xf32>, vector<4x32xf32>, vector<4x32xf32>, vector<4x32xf32>, vector<4x32xf32>, vector<4x32xf32>, vector<4x32xf32>, vector<4x32xf32>, vector<4x32xf32>, vector<4x32xf32>, vector<4x32xf32>, vector<4x32xf32>, vector<4x32xf32>, vector<4x32xf32> -> vector<4x512xf32>
    %662 = tpu.concatenate %609, %626, %643, %660 in 1 : vector<4x32xf32>, vector<4x32xf32>, vector<4x32xf32>, vector<4x32xf32> -> vector<4x128xf32>
    %663 = tpu.concatenate %661, %662 in 1 : vector<4x512xf32>, vector<4x128xf32> -> vector<4x640xf32>
    %c0_18 = arith.constant 0 : index
    %c0_19 = arith.constant 0 : index
    %664 = vector.load %arg5[%c0_18, %c0_19] : memref<640x320xf32, #tpu.memory_space<vmem>>, vector<640x320xf32>
    %cst_20 = arith.constant dense<0.000000e+00> : vector<4x320xf32>
    %665 = tpu.matmul %663, %664, %cst_20 {dimension_numbers = #tpu.dot_dimension_numbers<[1], [0], [0], [1], [0, 0, 1, 1], [], []>} : vector<4x640xf32>, vector<640x320xf32>, vector<4x320xf32> -> vector<4x320xf32>
    %c0_21 = arith.constant 0 : index
    %c0_22 = arith.constant 0 : index
    %666 = vector.load %arg6[%c0_21, %c0_22] : memref<1x320xf32, #tpu.memory_space<vmem>>, vector<1x320xf32>
    %667 = vector.broadcast %666 : vector<1x320xf32> to vector<4x320xf32>
    %668 = arith.addf %665, %667 : vector<4x320xf32>
    %cst_23 = arith.constant 0.000000e+00 : f32
    %669 = vector.broadcast %cst_23 : f32 to vector<4x320xf32>
    %670 = arith.maximumf %668, %669 : vector<4x320xf32>
    %c0_24 = arith.constant 0 : index
    %c0_25 = arith.constant 0 : index
    %671 = vector.load %arg7[%c0_24, %c0_25] : memref<1x32xf32, #tpu.memory_space<vmem>>, vector<1x32xf32>
    %c0_26 = arith.constant 0 : index
    %c0_27 = arith.constant 0 : index
    %672 = vector.load %arg8[%c0_26, %c0_27] : memref<1x32xf32, #tpu.memory_space<vmem>>, vector<1x32xf32>
    %cst_28 = arith.constant dense<0.000000e+00> : vector<320xf32>
    %673 = vector.multi_reduction <add>, %670, %cst_28 [0] : vector<4x320xf32> to vector<320xf32>
    %674 = vector.shape_cast %673 : vector<320xf32> to vector<1x320xf32>
    %cst_29 = arith.constant 0.000000e+00 : f32
    %675 = vector.broadcast %cst_29 : f32 to vector<1x32xf32>
    %676 = vector.extract_strided_slice %674 {offsets = [0, 0], sizes = [1, 32], strides = [1, 1]} : vector<1x320xf32> to vector<1x32xf32>
    %677 = arith.addf %675, %676 : vector<1x32xf32>
    %678 = vector.extract_strided_slice %674 {offsets = [0, 32], sizes = [1, 32], strides = [1, 1]} : vector<1x320xf32> to vector<1x32xf32>
    %679 = arith.addf %677, %678 : vector<1x32xf32>
    %680 = vector.extract_strided_slice %674 {offsets = [0, 64], sizes = [1, 32], strides = [1, 1]} : vector<1x320xf32> to vector<1x32xf32>
    %681 = arith.addf %679, %680 : vector<1x32xf32>
    %682 = vector.extract_strided_slice %674 {offsets = [0, 96], sizes = [1, 32], strides = [1, 1]} : vector<1x320xf32> to vector<1x32xf32>
    %683 = arith.addf %681, %682 : vector<1x32xf32>
    %684 = vector.extract_strided_slice %674 {offsets = [0, 128], sizes = [1, 32], strides = [1, 1]} : vector<1x320xf32> to vector<1x32xf32>
    %685 = arith.addf %683, %684 : vector<1x32xf32>
    %686 = vector.extract_strided_slice %674 {offsets = [0, 160], sizes = [1, 32], strides = [1, 1]} : vector<1x320xf32> to vector<1x32xf32>
    %687 = arith.addf %685, %686 : vector<1x32xf32>
    %688 = vector.extract_strided_slice %674 {offsets = [0, 192], sizes = [1, 32], strides = [1, 1]} : vector<1x320xf32> to vector<1x32xf32>
    %689 = arith.addf %687, %688 : vector<1x32xf32>
    %690 = vector.extract_strided_slice %674 {offsets = [0, 224], sizes = [1, 32], strides = [1, 1]} : vector<1x320xf32> to vector<1x32xf32>
    %691 = arith.addf %689, %690 : vector<1x32xf32>
    %692 = vector.extract_strided_slice %674 {offsets = [0, 256], sizes = [1, 32], strides = [1, 1]} : vector<1x320xf32> to vector<1x32xf32>
    %693 = arith.addf %691, %692 : vector<1x32xf32>
    %694 = vector.extract_strided_slice %674 {offsets = [0, 288], sizes = [1, 32], strides = [1, 1]} : vector<1x320xf32> to vector<1x32xf32>
    %695 = arith.addf %693, %694 : vector<1x32xf32>
    %cst_30 = arith.constant 4.000000e+01 : f32
    %696 = vector.broadcast %cst_30 : f32 to vector<1x32xf32>
    %697 = arith.divf %695, %696 : vector<1x32xf32>
    %cst_31 = arith.constant 0.000000e+00 : f32
    %698 = vector.broadcast %cst_31 : f32 to vector<4x32xf32>
    %699 = vector.extract_strided_slice %670 {offsets = [0, 0], sizes = [4, 32], strides = [1, 1]} : vector<4x320xf32> to vector<4x32xf32>
    %700 = vector.broadcast %697 : vector<1x32xf32> to vector<4x32xf32>
    %701 = arith.subf %699, %700 : vector<4x32xf32>
    %702 = arith.mulf %701, %701 : vector<4x32xf32>
    %703 = arith.addf %698, %702 : vector<4x32xf32>
    %704 = vector.extract_strided_slice %670 {offsets = [0, 32], sizes = [4, 32], strides = [1, 1]} : vector<4x320xf32> to vector<4x32xf32>
    %705 = vector.broadcast %697 : vector<1x32xf32> to vector<4x32xf32>
    %706 = arith.subf %704, %705 : vector<4x32xf32>
    %707 = arith.mulf %706, %706 : vector<4x32xf32>
    %708 = arith.addf %703, %707 : vector<4x32xf32>
    %709 = vector.extract_strided_slice %670 {offsets = [0, 64], sizes = [4, 32], strides = [1, 1]} : vector<4x320xf32> to vector<4x32xf32>
    %710 = vector.broadcast %697 : vector<1x32xf32> to vector<4x32xf32>
    %711 = arith.subf %709, %710 : vector<4x32xf32>
    %712 = arith.mulf %711, %711 : vector<4x32xf32>
    %713 = arith.addf %708, %712 : vector<4x32xf32>
    %714 = vector.extract_strided_slice %670 {offsets = [0, 96], sizes = [4, 32], strides = [1, 1]} : vector<4x320xf32> to vector<4x32xf32>
    %715 = vector.broadcast %697 : vector<1x32xf32> to vector<4x32xf32>
    %716 = arith.subf %714, %715 : vector<4x32xf32>
    %717 = arith.mulf %716, %716 : vector<4x32xf32>
    %718 = arith.addf %713, %717 : vector<4x32xf32>
    %719 = vector.extract_strided_slice %670 {offsets = [0, 128], sizes = [4, 32], strides = [1, 1]} : vector<4x320xf32> to vector<4x32xf32>
    %720 = vector.broadcast %697 : vector<1x32xf32> to vector<4x32xf32>
    %721 = arith.subf %719, %720 : vector<4x32xf32>
    %722 = arith.mulf %721, %721 : vector<4x32xf32>
    %723 = arith.addf %718, %722 : vector<4x32xf32>
    %724 = vector.extract_strided_slice %670 {offsets = [0, 160], sizes = [4, 32], strides = [1, 1]} : vector<4x320xf32> to vector<4x32xf32>
    %725 = vector.broadcast %697 : vector<1x32xf32> to vector<4x32xf32>
    %726 = arith.subf %724, %725 : vector<4x32xf32>
    %727 = arith.mulf %726, %726 : vector<4x32xf32>
    %728 = arith.addf %723, %727 : vector<4x32xf32>
    %729 = vector.extract_strided_slice %670 {offsets = [0, 192], sizes = [4, 32], strides = [1, 1]} : vector<4x320xf32> to vector<4x32xf32>
    %730 = vector.broadcast %697 : vector<1x32xf32> to vector<4x32xf32>
    %731 = arith.subf %729, %730 : vector<4x32xf32>
    %732 = arith.mulf %731, %731 : vector<4x32xf32>
    %733 = arith.addf %728, %732 : vector<4x32xf32>
    %734 = vector.extract_strided_slice %670 {offsets = [0, 224], sizes = [4, 32], strides = [1, 1]} : vector<4x320xf32> to vector<4x32xf32>
    %735 = vector.broadcast %697 : vector<1x32xf32> to vector<4x32xf32>
    %736 = arith.subf %734, %735 : vector<4x32xf32>
    %737 = arith.mulf %736, %736 : vector<4x32xf32>
    %738 = arith.addf %733, %737 : vector<4x32xf32>
    %739 = vector.extract_strided_slice %670 {offsets = [0, 256], sizes = [4, 32], strides = [1, 1]} : vector<4x320xf32> to vector<4x32xf32>
    %740 = vector.broadcast %697 : vector<1x32xf32> to vector<4x32xf32>
    %741 = arith.subf %739, %740 : vector<4x32xf32>
    %742 = arith.mulf %741, %741 : vector<4x32xf32>
    %743 = arith.addf %738, %742 : vector<4x32xf32>
    %744 = vector.extract_strided_slice %670 {offsets = [0, 288], sizes = [4, 32], strides = [1, 1]} : vector<4x320xf32> to vector<4x32xf32>
    %745 = vector.broadcast %697 : vector<1x32xf32> to vector<4x32xf32>
    %746 = arith.subf %744, %745 : vector<4x32xf32>
    %747 = arith.mulf %746, %746 : vector<4x32xf32>
    %748 = arith.addf %743, %747 : vector<4x32xf32>
    %cst_32 = arith.constant dense<0.000000e+00> : vector<32xf32>
    %749 = vector.multi_reduction <add>, %748, %cst_32 [0] : vector<4x32xf32> to vector<32xf32>
    %750 = vector.shape_cast %749 : vector<32xf32> to vector<1x32xf32>
    %cst_33 = arith.constant 4.000000e+01 : f32
    %751 = vector.broadcast %cst_33 : f32 to vector<1x32xf32>
    %752 = arith.divf %750, %751 : vector<1x32xf32>
    %cst_34 = arith.constant 9.99999974E-6 : f32
    %753 = vector.broadcast %cst_34 : f32 to vector<1x32xf32>
    %754 = arith.addf %752, %753 : vector<1x32xf32>
    %755 = math.rsqrt %754 : vector<1x32xf32>
    %756 = arith.mulf %671, %755 : vector<1x32xf32>
    %757 = arith.mulf %697, %756 : vector<1x32xf32>
    %758 = arith.subf %672, %757 : vector<1x32xf32>
    %759 = vector.extract_strided_slice %670 {offsets = [0, 0], sizes = [4, 32], strides = [1, 1]} : vector<4x320xf32> to vector<4x32xf32>
    %760 = vector.broadcast %756 : vector<1x32xf32> to vector<4x32xf32>
    %761 = arith.mulf %759, %760 : vector<4x32xf32>
    %762 = vector.broadcast %758 : vector<1x32xf32> to vector<4x32xf32>
    %763 = arith.addf %761, %762 : vector<4x32xf32>
    %764 = vector.extract_strided_slice %670 {offsets = [0, 32], sizes = [4, 32], strides = [1, 1]} : vector<4x320xf32> to vector<4x32xf32>
    %765 = vector.broadcast %756 : vector<1x32xf32> to vector<4x32xf32>
    %766 = arith.mulf %764, %765 : vector<4x32xf32>
    %767 = vector.broadcast %758 : vector<1x32xf32> to vector<4x32xf32>
    %768 = arith.addf %766, %767 : vector<4x32xf32>
    %769 = vector.extract_strided_slice %670 {offsets = [0, 64], sizes = [4, 32], strides = [1, 1]} : vector<4x320xf32> to vector<4x32xf32>
    %770 = vector.broadcast %756 : vector<1x32xf32> to vector<4x32xf32>
    %771 = arith.mulf %769, %770 : vector<4x32xf32>
    %772 = vector.broadcast %758 : vector<1x32xf32> to vector<4x32xf32>
    %773 = arith.addf %771, %772 : vector<4x32xf32>
    %774 = arith.maximumf %763, %768 : vector<4x32xf32>
    %775 = arith.maximumf %774, %773 : vector<4x32xf32>
    %776 = vector.extract_strided_slice %670 {offsets = [0, 64], sizes = [4, 32], strides = [1, 1]} : vector<4x320xf32> to vector<4x32xf32>
    %777 = vector.broadcast %756 : vector<1x32xf32> to vector<4x32xf32>
    %778 = arith.mulf %776, %777 : vector<4x32xf32>
    %779 = vector.broadcast %758 : vector<1x32xf32> to vector<4x32xf32>
    %780 = arith.addf %778, %779 : vector<4x32xf32>
    %781 = vector.extract_strided_slice %670 {offsets = [0, 96], sizes = [4, 32], strides = [1, 1]} : vector<4x320xf32> to vector<4x32xf32>
    %782 = vector.broadcast %756 : vector<1x32xf32> to vector<4x32xf32>
    %783 = arith.mulf %781, %782 : vector<4x32xf32>
    %784 = vector.broadcast %758 : vector<1x32xf32> to vector<4x32xf32>
    %785 = arith.addf %783, %784 : vector<4x32xf32>
    %786 = vector.extract_strided_slice %670 {offsets = [0, 128], sizes = [4, 32], strides = [1, 1]} : vector<4x320xf32> to vector<4x32xf32>
    %787 = vector.broadcast %756 : vector<1x32xf32> to vector<4x32xf32>
    %788 = arith.mulf %786, %787 : vector<4x32xf32>
    %789 = vector.broadcast %758 : vector<1x32xf32> to vector<4x32xf32>
    %790 = arith.addf %788, %789 : vector<4x32xf32>
    %791 = arith.maximumf %780, %785 : vector<4x32xf32>
    %792 = arith.maximumf %791, %790 : vector<4x32xf32>
    %793 = vector.extract_strided_slice %670 {offsets = [0, 128], sizes = [4, 32], strides = [1, 1]} : vector<4x320xf32> to vector<4x32xf32>
    %794 = vector.broadcast %756 : vector<1x32xf32> to vector<4x32xf32>
    %795 = arith.mulf %793, %794 : vector<4x32xf32>
    %796 = vector.broadcast %758 : vector<1x32xf32> to vector<4x32xf32>
    %797 = arith.addf %795, %796 : vector<4x32xf32>
    %798 = vector.extract_strided_slice %670 {offsets = [0, 160], sizes = [4, 32], strides = [1, 1]} : vector<4x320xf32> to vector<4x32xf32>
    %799 = vector.broadcast %756 : vector<1x32xf32> to vector<4x32xf32>
    %800 = arith.mulf %798, %799 : vector<4x32xf32>
    %801 = vector.broadcast %758 : vector<1x32xf32> to vector<4x32xf32>
    %802 = arith.addf %800, %801 : vector<4x32xf32>
    %803 = vector.extract_strided_slice %670 {offsets = [0, 192], sizes = [4, 32], strides = [1, 1]} : vector<4x320xf32> to vector<4x32xf32>
    %804 = vector.broadcast %756 : vector<1x32xf32> to vector<4x32xf32>
    %805 = arith.mulf %803, %804 : vector<4x32xf32>
    %806 = vector.broadcast %758 : vector<1x32xf32> to vector<4x32xf32>
    %807 = arith.addf %805, %806 : vector<4x32xf32>
    %808 = arith.maximumf %797, %802 : vector<4x32xf32>
    %809 = arith.maximumf %808, %807 : vector<4x32xf32>
    %810 = vector.extract_strided_slice %670 {offsets = [0, 192], sizes = [4, 32], strides = [1, 1]} : vector<4x320xf32> to vector<4x32xf32>
    %811 = vector.broadcast %756 : vector<1x32xf32> to vector<4x32xf32>
    %812 = arith.mulf %810, %811 : vector<4x32xf32>
    %813 = vector.broadcast %758 : vector<1x32xf32> to vector<4x32xf32>
    %814 = arith.addf %812, %813 : vector<4x32xf32>
    %815 = vector.extract_strided_slice %670 {offsets = [0, 224], sizes = [4, 32], strides = [1, 1]} : vector<4x320xf32> to vector<4x32xf32>
    %816 = vector.broadcast %756 : vector<1x32xf32> to vector<4x32xf32>
    %817 = arith.mulf %815, %816 : vector<4x32xf32>
    %818 = vector.broadcast %758 : vector<1x32xf32> to vector<4x32xf32>
    %819 = arith.addf %817, %818 : vector<4x32xf32>
    %820 = vector.extract_strided_slice %670 {offsets = [0, 256], sizes = [4, 32], strides = [1, 1]} : vector<4x320xf32> to vector<4x32xf32>
    %821 = vector.broadcast %756 : vector<1x32xf32> to vector<4x32xf32>
    %822 = arith.mulf %820, %821 : vector<4x32xf32>
    %823 = vector.broadcast %758 : vector<1x32xf32> to vector<4x32xf32>
    %824 = arith.addf %822, %823 : vector<4x32xf32>
    %825 = arith.maximumf %814, %819 : vector<4x32xf32>
    %826 = arith.maximumf %825, %824 : vector<4x32xf32>
    %827 = tpu.concatenate %775, %792, %809, %826 in 1 : vector<4x32xf32>, vector<4x32xf32>, vector<4x32xf32>, vector<4x32xf32> -> vector<4x128xf32>
    %c0_35 = arith.constant 0 : index
    %c0_36 = arith.constant 0 : index
    %828 = vector.load %arg9[%c0_35, %c0_36] : memref<128x32xf32, #tpu.memory_space<vmem>>, vector<128x32xf32>
    %cst_37 = arith.constant dense<0.000000e+00> : vector<4x32xf32>
    %829 = tpu.matmul %827, %828, %cst_37 {dimension_numbers = #tpu.dot_dimension_numbers<[1], [0], [0], [1], [0, 0, 1, 1], [], []>} : vector<4x128xf32>, vector<128x32xf32>, vector<4x32xf32> -> vector<4x32xf32>
    %c0_38 = arith.constant 0 : index
    %c0_39 = arith.constant 0 : index
    %830 = vector.load %arg10[%c0_38, %c0_39] : memref<1x32xf32, #tpu.memory_space<vmem>>, vector<1x32xf32>
    %831 = vector.broadcast %830 : vector<1x32xf32> to vector<4x32xf32>
    %832 = arith.addf %829, %831 : vector<4x32xf32>
    %cst_40 = arith.constant 0.000000e+00 : f32
    %833 = vector.broadcast %cst_40 : f32 to vector<4x32xf32>
    %834 = arith.maximumf %832, %833 : vector<4x32xf32>
    %835 = tpu.concatenate %834, %1 in 1 : vector<4x32xf32>, vector<4x4xf32> -> vector<4x36xf32>
    %c0_41 = arith.constant 0 : index
    %c0_42 = arith.constant 0 : index
    %836 = vector.load %arg11[%c0_41, %c0_42] : memref<36x64xf32, #tpu.memory_space<vmem>>, vector<36x64xf32>
    %cst_43 = arith.constant dense<0.000000e+00> : vector<4x64xf32>
    %837 = tpu.matmul %835, %836, %cst_43 {dimension_numbers = #tpu.dot_dimension_numbers<[1], [0], [0], [1], [0, 0, 1, 1], [], []>} : vector<4x36xf32>, vector<36x64xf32>, vector<4x64xf32> -> vector<4x64xf32>
    %c0_44 = arith.constant 0 : index
    %c0_45 = arith.constant 0 : index
    %838 = vector.load %arg12[%c0_44, %c0_45] : memref<1x64xf32, #tpu.memory_space<vmem>>, vector<1x64xf32>
    %839 = vector.broadcast %838 : vector<1x64xf32> to vector<4x64xf32>
    %840 = arith.addf %837, %839 : vector<4x64xf32>
    %cst_46 = arith.constant 0.000000e+00 : f32
    %841 = vector.broadcast %cst_46 : f32 to vector<4x64xf32>
    %842 = arith.maximumf %840, %841 : vector<4x64xf32>
    %c0_47 = arith.constant 0 : index
    %c0_48 = arith.constant 0 : index
    %843 = vector.load %arg13[%c0_47, %c0_48] : memref<64x64xf32, #tpu.memory_space<vmem>>, vector<64x64xf32>
    %cst_49 = arith.constant dense<0.000000e+00> : vector<4x64xf32>
    %844 = tpu.matmul %842, %843, %cst_49 {dimension_numbers = #tpu.dot_dimension_numbers<[1], [0], [0], [1], [0, 0, 1, 1], [], []>} : vector<4x64xf32>, vector<64x64xf32>, vector<4x64xf32> -> vector<4x64xf32>
    %c0_50 = arith.constant 0 : index
    %c0_51 = arith.constant 0 : index
    %845 = vector.load %arg14[%c0_50, %c0_51] : memref<1x64xf32, #tpu.memory_space<vmem>>, vector<1x64xf32>
    %846 = vector.broadcast %845 : vector<1x64xf32> to vector<4x64xf32>
    %847 = arith.addf %844, %846 : vector<4x64xf32>
    %cst_52 = arith.constant 0.000000e+00 : f32
    %848 = vector.broadcast %cst_52 : f32 to vector<4x64xf32>
    %849 = arith.maximumf %847, %848 : vector<4x64xf32>
    %c0_53 = arith.constant 0 : index
    %c0_54 = arith.constant 0 : index
    %850 = vector.load %arg15[%c0_53, %c0_54] : memref<64x2xf32, #tpu.memory_space<vmem>>, vector<64x2xf32>
    %cst_55 = arith.constant dense<0.000000e+00> : vector<4x2xf32>
    %851 = tpu.matmul %849, %850, %cst_55 {dimension_numbers = #tpu.dot_dimension_numbers<[1], [0], [0], [1], [0, 0, 1, 1], [], []>} : vector<4x64xf32>, vector<64x2xf32>, vector<4x2xf32> -> vector<4x2xf32>
    %c0_56 = arith.constant 0 : index
    %c0_57 = arith.constant 0 : index
    %852 = vector.load %arg16[%c0_56, %c0_57] : memref<1x2xf32, #tpu.memory_space<vmem>>, vector<1x2xf32>
    %853 = vector.broadcast %852 : vector<1x2xf32> to vector<4x2xf32>
    %854 = arith.addf %851, %853 : vector<4x2xf32>
    %855 = tpu.iota {dimensions = array<i32: 1>} : vector<4x2xi32>
    %c1_i32 = arith.constant 1 : i32
    %856 = vector.broadcast %c1_i32 : i32 to vector<4x2xi32>
    %857 = arith.cmpi sle, %855, %856 : vector<4x2xi32>
    %858 = math.tanh %854 : vector<4x2xf32>
    %859 = arith.select %857, %858, %854 : vector<4x2xi1>, vector<4x2xf32>
    %c0_58 = arith.constant 0 : index
    %c0_59 = arith.constant 0 : index
    %860 = vector.load %arg17[%c0_58, %c0_59] : memref<4x2xf32, #tpu.memory_space<vmem>>, vector<4x2xf32>
    tpu.vector_store %arg17[%c0_58, %c0_59], %859 {strides = array<i32>} : memref<4x2xf32, #tpu.memory_space<vmem>>, vector<4x2xf32>,
    return
  }
}

</mosaic_0001>

<llo_original>
// kernel: tpu_custom_call.1
$region0: #{tpu_custom_call.1}
  #allocation0 [shape = 'u32[]', space=smem, size = 0x4, offset = 0x4, fixed_abs, tag = 'smem constant byte address 0x4 - core index']
  #allocation1 [shape = 'u32[144,128]{1,0:T(1,128)}', space=vmem, size = 0x12000, scoped, tag = 'internal scratch']
  %s0 = inlined_call_operand.vmem [shape: f32[4,132], index: 0, kind: input, shape index: {}]
  %s1 = inlined_call_operand.vmem [shape: f32[128,1344], index: 1, kind: input, shape index: {}]
  %s2 = inlined_call_operand.vmem [shape: f32[1,1344], index: 2, kind: input, shape index: {}]
  %s3 = inlined_call_operand.vmem [shape: f32[1,32], index: 3, kind: input, shape index: {}]
  %s4 = inlined_call_operand.vmem [shape: f32[1,32], index: 4, kind: input, shape index: {}]
  %s5 = inlined_call_operand.vmem [shape: f32[640,320], index: 5, kind: input, shape index: {}]
  %s6 = inlined_call_operand.vmem [shape: f32[1,320], index: 6, kind: input, shape index: {}]
  %s7 = inlined_call_operand.vmem [shape: f32[1,32], index: 7, kind: input, shape index: {}]
  %s8 = inlined_call_operand.vmem [shape: f32[1,32], index: 8, kind: input, shape index: {}]
  %s9 = inlined_call_operand.vmem [shape: f32[128,32], index: 9, kind: input, shape index: {}]
  %s10 = inlined_call_operand.vmem [shape: f32[1,32], index: 10, kind: input, shape index: {}]
  %s11 = inlined_call_operand.vmem [shape: f32[36,64], index: 11, kind: input, shape index: {}]
  %s12 = inlined_call_operand.vmem [shape: f32[1,64], index: 12, kind: input, shape index: {}]
  %s13 = inlined_call_operand.vmem [shape: f32[64,64], index: 13, kind: input, shape index: {}]
  %s14 = inlined_call_operand.vmem [shape: f32[1,64], index: 14, kind: input, shape index: {}]
  %s15 = inlined_call_operand.vmem [shape: f32[64,2], index: 15, kind: input, shape index: {}]
  %s16 = inlined_call_operand.vmem [shape: f32[1,2], index: 16, kind: input, shape index: {}]
  %s17 = inlined_call_operand.vmem [shape: f32[4,2], index: 17, kind: output, shape index: {}]
  %s18 = sld [smem:[#allocation0]]
  $region78: #{tpu_custom_call.1} parent=0
    _
  %s20 = ssub.s32 1, %s18
  %s21 = scalar_select 0, %s20, %s18
  // Predicated region
  $region2: #{tpu_custom_call.1} parent=0 // pred_check
    _
  $region3: #{tpu_custom_call.1} parent=0 // pred_check_branch
    %23 = sbr.rel (0) target = $region5
  $region4: #{tpu_custom_call.1} parent=0 // pred_region
    _
  $region5: #{tpu_custom_call.1} parent=0 // pred_fallthru
    _
  // Predicated region
  $region6: #{tpu_custom_call.1} parent=0 // pred_check
    _
  $region7: #{tpu_custom_call.1} parent=0 // pred_check_branch
    %25 = sbr.rel (0) target = $region9
  $region8: #{tpu_custom_call.1} parent=0 // pred_region
    _
  $region9: #{tpu_custom_call.1} parent=0 // pred_fallthru
    _
  // Predicated region
  $region10: #{tpu_custom_call.1} parent=0 // pred_check
    _
  $region11: #{tpu_custom_call.1} parent=0 // pred_check_branch
    %27 = sbr.rel (0) target = $region13
  $region12: #{tpu_custom_call.1} parent=0 // pred_region
    _
  $region13: #{tpu_custom_call.1} parent=0 // pred_fallthru
    _
  // Predicated region
  $region14: #{tpu_custom_call.1} parent=0 // pred_check
    _
  $region15: #{tpu_custom_call.1} parent=0 // pred_check_branch
    %29 = sbr.rel (0) target = $region17
  $region16: #{tpu_custom_call.1} parent=0 // pred_region
    _
  $region17: #{tpu_custom_call.1} parent=0 // pred_fallthru
    _
  // Predicated region
  $region18: #{tpu_custom_call.1} parent=0 // pred_check
    _
  $region19: #{tpu_custom_call.1} parent=0 // pred_check_branch
    %31 = sbr.rel (0) target = $region21
  $region20: #{tpu_custom_call.1} parent=0 // pred_region
    _
  $region21: #{tpu_custom_call.1} parent=0 // pred_fallthru
    _
  // Predicated region
  $region22: #{tpu_custom_call.1} parent=0 // pred_check
    _
  $region23: #{tpu_custom_call.1} parent=0 // pred_check_branch
    %33 = sbr.rel (0) target = $region25
  $region24: #{tpu_custom_call.1} parent=0 // pred_region
    _
  $region25: #{tpu_custom_call.1} parent=0 // pred_fallthru
    _
  // Predicated region
  $region26: #{tpu_custom_call.1} parent=0 // pred_check
    _
  $region27: #{tpu_custom_call.1} parent=0 // pred_check_branch
    %35 = sbr.rel (0) target = $region29
  $region28: #{tpu_custom_call.1} parent=0 // pred_region
    _
  $region29: #{tpu_custom_call.1} parent=0 // pred_fallthru
    _
  // Predicated region
  $region30: #{tpu_custom_call.1} parent=0 // pred_check
    _
  $region31: #{tpu_custom_call.1} parent=0 // pred_check_branch
    %37 = sbr.rel (0) target = $region33
  $region32: #{tpu_custom_call.1} parent=0 // pred_region
    _
  $region33: #{tpu_custom_call.1} parent=0 // pred_fallthru
    _
  // Predicated region
  $region34: #{tpu_custom_call.1} parent=0 // pred_check
    _
  $region35: #{tpu_custom_call.1} parent=0 // pred_check_branch
    %39 = sbr.rel (0) target = $region37
  $region36: #{tpu_custom_call.1} parent=0 // pred_region
    _
  $region37: #{tpu_custom_call.1} parent=0 // pred_fallthru
    _
  // Predicated region
  $region38: #{tpu_custom_call.1} parent=0 // pred_check
    _
  $region39: #{tpu_custom_call.1} parent=0 // pred_check_branch
    %41 = sbr.rel (0) target = $region41
  $region40: #{tpu_custom_call.1} parent=0 // pred_region
    _
  $region41: #{tpu_custom_call.1} parent=0 // pred_fallthru
    _
  // Predicated region
  $region42: #{tpu_custom_call.1} parent=0 // pred_check
    _
  $region43: #{tpu_custom_call.1} parent=0 // pred_check_branch
    %43 = sbr.rel (0) target = $region45
  $region44: #{tpu_custom_call.1} parent=0 // pred_region
    _
  $region45: #{tpu_custom_call.1} parent=0 // pred_fallthru
    _
  // Predicated region
  $region46: #{tpu_custom_call.1} parent=0 // pred_check
    _
  $region47: #{tpu_custom_call.1} parent=0 // pred_check_branch
    %45 = sbr.rel (0) target = $region49
  $region48: #{tpu_custom_call.1} parent=0 // pred_region
    _
  $region49: #{tpu_custom_call.1} parent=0 // pred_fallthru
    _
  // Predicated region
  $region50: #{tpu_custom_call.1} parent=0 // pred_check
    _
  $region51: #{tpu_custom_call.1} parent=0 // pred_check_branch
    %47 = sbr.rel (0) target = $region53
  $region52: #{tpu_custom_call.1} parent=0 // pred_region
    _
  $region53: #{tpu_custom_call.1} parent=0 // pred_fallthru
    _
  // Predicated region
  $region54: #{tpu_custom_call.1} parent=0 // pred_check
    _
  $region55: #{tpu_custom_call.1} parent=0 // pred_check_branch
    %49 = sbr.rel (0) target = $region57
  $region56: #{tpu_custom_call.1} parent=0 // pred_region
    _
  $region57: #{tpu_custom_call.1} parent=0 // pred_fallthru
    _
  // Predicated region
  $region58: #{tpu_custom_call.1} parent=0 // pred_check
    _
  $region59: #{tpu_custom_call.1} parent=0 // pred_check_branch
    %51 = sbr.rel (0) target = $region61
  $region60: #{tpu_custom_call.1} parent=0 // pred_region
    _
  $region61: #{tpu_custom_call.1} parent=0 // pred_fallthru
    _
  // Predicated region
  $region62: #{tpu_custom_call.1} parent=0 // pred_check
    _
  $region63: #{tpu_custom_call.1} parent=0 // pred_check_branch
    %53 = sbr.rel (0) target = $region65
  $region64: #{tpu_custom_call.1} parent=0 // pred_region
    _
  $region65: #{tpu_custom_call.1} parent=0 // pred_fallthru
    _
  // Predicated region
  $region66: #{tpu_custom_call.1} parent=0 // pred_check
    _
  $region67: #{tpu_custom_call.1} parent=0 // pred_check_branch
    %55 = sbr.rel (0) target = $region69
  $region68: #{tpu_custom_call.1} parent=0 // pred_region
    _
  $region69: #{tpu_custom_call.1} parent=0 // pred_fallthru
    _
  %v56 = vld [vmem:[%s0] sm:$0xf]
  %v57 = vld [vmem:[%s0 + $0x4] sm:$0xf]
  %v58 = vld [vmem:[%s1] sm:$0xff]
  %v59 = vld [vmem:[%s1 + $0x8] sm:$0xff]
  %v60 = vld [vmem:[%s1 + $0x10] sm:$0xff]
  %v61 = vld [vmem:[%s1 + $0x18] sm:$0xff]
  %v62 = vld [vmem:[%s1 + $0x20] sm:$0xff]
  %v63 = vld [vmem:[%s1 + $0x28] sm:$0xff]
  %v64 = vld [vmem:[%s1 + $0x30] sm:$0xff]
  %v65 = vld [vmem:[%s1 + $0x38] sm:$0xff]
  %v66 = vld [vmem:[%s1 + $0x40] sm:$0xff]
  %v67 = vld [vmem:[%s1 + $0x48] sm:$0xff]
  %v68 = vld [vmem:[%s1 + $0x50] sm:$0xff]
  %v69 = vld [vmem:[%s1 + $0x58] sm:$0xff]
  %v70 = vld [vmem:[%s1 + $0x60] sm:$0xff]
  %v71 = vld [vmem:[%s1 + $0x68] sm:$0xff]
  %v72 = vld [vmem:[%s1 + $0x70] sm:$0xff]
  %v73 = vld [vmem:[%s1 + $0x78] sm:$0xff]
  %v74 = vld [vmem:[%s1 + $0x80] sm:$0xff]
  %v75 = vld [vmem:[%s1 + $0x88] sm:$0xff]
  %v76 = vld [vmem:[%s1 + $0x90] sm:$0xff]
  %v77 = vld [vmem:[%s1 + $0x98] sm:$0xff]
  %v78 = vld [vmem:[%s1 + $0xa0] sm:$0xff]
  %v79 = vld [vmem:[%s1 + $0xa8] sm:$0xff]
  %v80 = vld [vmem:[%s1 + $0xb0] sm:$0xff]
  %v81 = vld [vmem:[%s1 + $0xb8] sm:$0xff]
  %v82 = vld [vmem:[%s1 + $0xc0] sm:$0xff]
  %v83 = vld [vmem:[%s1 + $0xc8] sm:$0xff]
  %v84 = vld [vmem:[%s1 + $0xd0] sm:$0xff]
  %v85 = vld [vmem:[%s1 + $0xd8] sm:$0xff]
  %v86 = vld [vmem:[%s1 + $0xe0] sm:$0xff]
  %v87 = vld [vmem:[%s1 + $0xe8] sm:$0xff]
  %v88 = vld [vmem:[%s1 + $0xf0] sm:$0xff]
  %v89 = vld [vmem:[%s1 + $0xf8] sm:$0xff]
  %v90 = vld [vmem:[%s1 + $0x100] sm:$0xff]
  %v91 = vld [vmem:[%s1 + $0x108] sm:$0xff]
  %v92 = vld [vmem:[%s1 + $0x110] sm:$0xff]
  %v93 = vld [vmem:[%s1 + $0x118] sm:$0xff]
  %v94 = vld [vmem:[%s1 + $0x120] sm:$0xff]
  %v95 = vld [vmem:[%s1 + $0x128] sm:$0xff]
  %v96 = vld [vmem:[%s1 + $0x130] sm:$0xff]
  %v97 = vld [vmem:[%s1 + $0x138] sm:$0xff]
  %v98 = vld [vmem:[%s1 + $0x140] sm:$0xff]
  %v99 = vld [vmem:[%s1 + $0x148] sm:$0xff]
  %v100 = vld [vmem:[%s1 + $0x150] sm:$0xff]
  %v101 = vld [vmem:[%s1 + $0x158] sm:$0xff]
  %v102 = vld [vmem:[%s1 + $0x160] sm:$0xff]
  %v103 = vld [vmem:[%s1 + $0x168] sm:$0xff]
  %v104 = vld [vmem:[%s1 + $0x170] sm:$0xff]
  %v105 = vld [vmem:[%s1 + $0x178] sm:$0xff]
  %v106 = vld [vmem:[%s1 + $0x180] sm:$0xff]
  %v107 = vld [vmem:[%s1 + $0x188] sm:$0xff]
  %v108 = vld [vmem:[%s1 + $0x190] sm:$0xff]
  %v109 = vld [vmem:[%s1 + $0x198] sm:$0xff]
  %v110 = vld [vmem:[%s1 + $0x1a0] sm:$0xff]
  %v111 = vld [vmem:[%s1 + $0x1a8] sm:$0xff]
  %v112 = vld [vmem:[%s1 + $0x1b0] sm:$0xff]
  %v113 = vld [vmem:[%s1 + $0x1b8] sm:$0xff]
  %v114 = vld [vmem:[%s1 + $0x1c0] sm:$0xff]
  %v115 = vld [vmem:[%s1 + $0x1c8] sm:$0xff]
  %v116 = vld [vmem:[%s1 + $0x1d0] sm:$0xff]
  %v117 = vld [vmem:[%s1 + $0x1d8] sm:$0xff]
  %v118 = vld [vmem:[%s1 + $0x1e0] sm:$0xff]
  %v119 = vld [vmem:[%s1 + $0x1e8] sm:$0xff]
  %v120 = vld [vmem:[%s1 + $0x1f0] sm:$0xff]
  %v121 = vld [vmem:[%s1 + $0x1f8] sm:$0xff]
  %v122 = vld [vmem:[%s1 + $0x200] sm:$0xff]
  %v123 = vld [vmem:[%s1 + $0x208] sm:$0xff]
  %v124 = vld [vmem:[%s1 + $0x210] sm:$0xff]
  %v125 = vld [vmem:[%s1 + $0x218] sm:$0xff]
  %v126 = vld [vmem:[%s1 + $0x220] sm:$0xff]
  %v127 = vld [vmem:[%s1 + $0x228] sm:$0xff]
  %v128 = vld [vmem:[%s1 + $0x230] sm:$0xff]
  %v129 = vld [vmem:[%s1 + $0x238] sm:$0xff]
  %v130 = vld [vmem:[%s1 + $0x240] sm:$0xff]
  %v131 = vld [vmem:[%s1 + $0x248] sm:$0xff]
  %v132 = vld [vmem:[%s1 + $0x250] sm:$0xff]
  %v133 = vld [vmem:[%s1 + $0x258] sm:$0xff]
  %v134 = vld [vmem:[%s1 + $0x260] sm:$0xff]
  %v135 = vld [vmem:[%s1 + $0x268] sm:$0xff]
  %v136 = vld [vmem:[%s1 + $0x270] sm:$0xff]
  %v137 = vld [vmem:[%s1 + $0x278] sm:$0xff]
  %v138 = vld [vmem:[%s1 + $0x280] sm:$0xff]
  %v139 = vld [vmem:[%s1 + $0x288] sm:$0xff]
  %v140 = vld [vmem:[%s1 + $0x290] sm:$0xff]
  %v141 = vld [vmem:[%s1 + $0x298] sm:$0xff]
  %v142 = vld [vmem:[%s1 + $0x2a0] sm:$0xff]
  %v143 = vld [vmem:[%s1 + $0x2a8] sm:$0xff]
  %v144 = vld [vmem:[%s1 + $0x2b0] sm:$0xff]
  %v145 = vld [vmem:[%s1 + $0x2b8] sm:$0xff]
  %v146 = vld [vmem:[%s1 + $0x2c0] sm:$0xff]
  %v147 = vld [vmem:[%s1 + $0x2c8] sm:$0xff]
  %v148 = vld [vmem:[%s1 + $0x2d0] sm:$0xff]
  %v149 = vld [vmem:[%s1 + $0x2d8] sm:$0xff]
  %v150 = vld [vmem:[%s1 + $0x2e0] sm:$0xff]
  %v151 = vld [vmem:[%s1 + $0x2e8] sm:$0xff]
  %v152 = vld [vmem:[%s1 + $0x2f0] sm:$0xff]
  %v153 = vld [vmem:[%s1 + $0x2f8] sm:$0xff]
  %v154 = vld [vmem:[%s1 + $0x300] sm:$0xff]
  %v155 = vld [vmem:[%s1 + $0x308] sm:$0xff]
  %v156 = vld [vmem:[%s1 + $0x310] sm:$0xff]
  %v157 = vld [vmem:[%s1 + $0x318] sm:$0xff]
  %v158 = vld [vmem:[%s1 + $0x320] sm:$0xff]
  %v159 = vld [vmem:[%s1 + $0x328] sm:$0xff]
  %v160 = vld [vmem:[%s1 + $0x330] sm:$0xff]
  %v161 = vld [vmem:[%s1 + $0x338] sm:$0xff]
  %v162 = vld [vmem:[%s1 + $0x340] sm:$0xff]
  %v163 = vld [vmem:[%s1 + $0x348] sm:$0xff]
  %v164 = vld [vmem:[%s1 + $0x350] sm:$0xff]
  %v165 = vld [vmem:[%s1 + $0x358] sm:$0xff]
  %v166 = vld [vmem:[%s1 + $0x360] sm:$0xff]
  %v167 = vld [vmem:[%s1 + $0x368] sm:$0xff]
  %v168 = vld [vmem:[%s1 + $0x370] sm:$0xff]
  %v169 = vld [vmem:[%s1 + $0x378] sm:$0xff]
  %v170 = vld [vmem:[%s1 + $0x380] sm:$0xff]
  %v171 = vld [vmem:[%s1 + $0x388] sm:$0xff]
  %v172 = vld [vmem:[%s1 + $0x390] sm:$0xff]
  %v173 = vld [vmem:[%s1 + $0x398] sm:$0xff]
  %v174 = vld [vmem:[%s1 + $0x3a0] sm:$0xff]
  %v175 = vld [vmem:[%s1 + $0x3a8] sm:$0xff]
  %v176 = vld [vmem:[%s1 + $0x3b0] sm:$0xff]
  %v177 = vld [vmem:[%s1 + $0x3b8] sm:$0xff]
  %v178 = vld [vmem:[%s1 + $0x3c0] sm:$0xff]
  %v179 = vld [vmem:[%s1 + $0x3c8] sm:$0xff]
  %v180 = vld [vmem:[%s1 + $0x3d0] sm:$0xff]
  %v181 = vld [vmem:[%s1 + $0x3d8] sm:$0xff]
  %v182 = vld [vmem:[%s1 + $0x3e0] sm:$0xff]
  %v183 = vld [vmem:[%s1 + $0x3e8] sm:$0xff]
  %v184 = vld [vmem:[%s1 + $0x3f0] sm:$0xff]
  %v185 = vld [vmem:[%s1 + $0x3f8] sm:$0xff]
  %v186 = vld [vmem:[%s1 + $0x400] sm:$0xff]
  %v187 = vld [vmem:[%s1 + $0x408] sm:$0xff]
  %v188 = vld [vmem:[%s1 + $0x410] sm:$0xff]
  %v189 = vld [vmem:[%s1 + $0x418] sm:$0xff]
  %v190 = vld [vmem:[%s1 + $0x420] sm:$0xff]
  %v191 = vld [vmem:[%s1 + $0x428] sm:$0xff]
  %v192 = vld [vmem:[%s1 + $0x430] sm:$0xff]
  %v193 = vld [vmem:[%s1 + $0x438] sm:$0xff]
  %v194 = vld [vmem:[%s1 + $0x440] sm:$0xff]
  %v195 = vld [vmem:[%s1 + $0x448] sm:$0xff]
  %v196 = vld [vmem:[%s1 + $0x450] sm:$0xff]
  %v197 = vld [vmem:[%s1 + $0x458] sm:$0xff]
  %v198 = vld [vmem:[%s1 + $0x460] sm:$0xff]
  %v199 = vld [vmem:[%s1 + $0x468] sm:$0xff]
  %v200 = vld [vmem:[%s1 + $0x470] sm:$0xff]
  %v201 = vld [vmem:[%s1 + $0x478] sm:$0xff]
  %v202 = vld [vmem:[%s1 + $0x480] sm:$0xff]
  %v203 = vld [vmem:[%s1 + $0x488] sm:$0xff]
  %v204 = vld [vmem:[%s1 + $0x490] sm:$0xff]
  %v205 = vld [vmem:[%s1 + $0x498] sm:$0xff]
  %v206 = vld [vmem:[%s1 + $0x4a0] sm:$0xff]
  %v207 = vld [vmem:[%s1 + $0x4a8] sm:$0xff]
  %v208 = vld [vmem:[%s1 + $0x4b0] sm:$0xff]
  %v209 = vld [vmem:[%s1 + $0x4b8] sm:$0xff]
  %v210 = vld [vmem:[%s1 + $0x4c0] sm:$0xff]
  %v211 = vld [vmem:[%s1 + $0x4c8] sm:$0xff]
  %v212 = vld [vmem:[%s1 + $0x4d0] sm:$0xff]
  %v213 = vld [vmem:[%s1 + $0x4d8] sm:$0xff]
  %v214 = vld [vmem:[%s1 + $0x4e0] sm:$0xff]
  %v215 = vld [vmem:[%s1 + $0x4e8] sm:$0xff]
  %v216 = vld [vmem:[%s1 + $0x4f0] sm:$0xff]
  %v217 = vld [vmem:[%s1 + $0x4f8] sm:$0xff]
  %v218 = vld [vmem:[%s1 + $0x500] sm:$0xff]
  %v219 = vld [vmem:[%s1 + $0x508] sm:$0xff]
  %v220 = vld [vmem:[%s1 + $0x510] sm:$0xff]
  %v221 = vld [vmem:[%s1 + $0x518] sm:$0xff]
  %v222 = vld [vmem:[%s1 + $0x520] sm:$0xff]
  %v223 = vld [vmem:[%s1 + $0x528] sm:$0xff]
  %v224 = vld [vmem:[%s1 + $0x530] sm:$0xff]
  %v225 = vld [vmem:[%s1 + $0x538] sm:$0xff]
  %v226 = vld [vmem:[%s1 + $0x540] sm:$0xff]
  %v227 = vld [vmem:[%s1 + $0x548] sm:$0xff]
  %v228 = vld [vmem:[%s1 + $0x550] sm:$0xff]
  %v229 = vld [vmem:[%s1 + $0x558] sm:$0xff]
  %v230 = vld [vmem:[%s1 + $0x560] sm:$0xff]
  %v231 = vld [vmem:[%s1 + $0x568] sm:$0xff]
  %v232 = vld [vmem:[%s1 + $0x570] sm:$0xff]
  %v233 = vld [vmem:[%s1 + $0x578] sm:$0xff]
  %v234 = vld [vmem:[%s2] sm:$0xff]
  %v235 = vld [vmem:[%s2 + $0x8] sm:$0x7]
  %v238 = vlaneseq
  %v239 = vshrl.u32 %v238, 7
  %v240 = vsub.s32 0, %v239
  %v241 = vrot.slane %v234, %v240
  %v242 = vlaneseq
  %v243 = vshrl.u32 %v242, 7
  %v244 = vsub.s32 1, %v243
  %v245 = vrot.slane %v234, %v244
  %v246 = vlaneseq
  %v247 = vshrl.u32 %v246, 7
  %v248 = vsub.s32 2, %v247
  %v249 = vrot.slane %v234, %v248
  %v250 = vlaneseq
  %v251 = vshrl.u32 %v250, 7
  %v252 = vsub.s32 3, %v251
  %v253 = vrot.slane %v234, %v252
  %v254 = vlaneseq
  %v255 = vshrl.u32 %v254, 7
  %v256 = vsub.s32 4, %v255
  %v257 = vrot.slane %v234, %v256
  %v258 = vlaneseq
  %v259 = vshrl.u32 %v258, 7
  %v260 = vsub.s32 5, %v259
  %v261 = vrot.slane %v234, %v260
  %v262 = vlaneseq
  %v263 = vshrl.u32 %v262, 7
  %v264 = vsub.s32 6, %v263
  %v265 = vrot.slane %v234, %v264
  %v266 = vlaneseq
  %v267 = vshrl.u32 %v266, 7
  %v268 = vsub.s32 7, %v267
  %v269 = vrot.slane %v234, %v268
  %v270 = vlaneseq
  %v271 = vshrl.u32 %v270, 7
  %v272 = vsub.s32 0, %v271
  %v273 = vrot.slane %v235, %v272
  %v274 = vlaneseq
  %v275 = vshrl.u32 %v274, 7
  %v276 = vsub.s32 1, %v275
  %v277 = vrot.slane %v235, %v276
  %v278 = vlaneseq
  %v279 = vshrl.u32 %v278, 7
  %v280 = vsub.s32 2, %v279
  %v281 = vrot.slane %v235, %v280
  %293 = vmatprep.subr.mxu0 %v59
  %294 = vmatpush1.msra.mxu0 %v58
  %295 = vmatprep.subr.mxu0 %v70
  %296 = vmatpush1.msra.mxu0 %v69
  %297 = vmatprep.subr.mxu0 %v81
  %298 = vmatpush1.msra.mxu0 %v80
  %299 = vmatprep.subr.mxu0 %v92
  %300 = vmatpush1.msra.mxu0 %v91
  %301 = vmatprep.subr.mxu0 %v103
  %302 = vmatpush1.msra.mxu0 %v102
  %303 = vmatprep.subr.mxu0 %v114
  %304 = vmatpush1.msra.mxu0 %v113
  %305 = vmatprep.subr.mxu0 %v125
  %306 = vmatpush1.msra.mxu0 %v124
  %307 = vmatprep.subr.mxu0 %v136
  %308 = vmatpush1.msra.mxu0 %v135
  %309 = vmatprep.subr.mxu0 %v147
  %310 = vmatpush1.msra.mxu0 %v146
  %311 = vmatprep.subr.mxu0 %v158
  %312 = vmatpush1.msra.mxu0 %v157
  %313 = vmatprep.subr.mxu0 %v169
  %314 = vmatpush1.msra.mxu0 %v168
  %315 = vmatprep.subr.mxu0 %v180
  %316 = vmatpush1.msra.mxu0 %v179
  %317 = vmatprep.subr.mxu0 %v191
  %318 = vmatpush1.msra.mxu0 %v190
  %319 = vmatprep.subr.mxu0 %v202
  %320 = vmatpush1.msra.mxu0 %v201
  %321 = vmatprep.subr.mxu0 %v213
  %322 = vmatpush1.msra.mxu0 %v212
  %323 = vmatprep.subr.mxu0 %v224
  %324 = vmatpush1.msra.mxu0 %v223
  %325 = vmatprep.subr.mxu0 0.0
  %326 = vmatpush1.msra.mxu0 0.0
  %327 = vmatprep.subr.mxu0 0.0
  %328 = vmatpush1.msra.mxu0 0.0
  %329 = vmatprep.subr.mxu0 0.0
  %330 = vmatpush1.msra.mxu0 0.0
  %331 = vmatprep.subr.mxu0 0.0
  %332 = vmatpush1.msra.mxu0 0.0
  %333 = vmatprep.subr.mxu0 0.0
  %334 = vmatpush1.msra.mxu0 0.0
  %335 = vmatprep.subr.mxu0 0.0
  %336 = vmatpush1.msra.mxu0 0.0
  %337 = vmatprep.subr.mxu0 0.0
  %338 = vmatpush1.msra.mxu0 0.0
  %339 = vmatprep.subr.mxu0 0.0
  %340 = vmatpush1.msra.mxu0 0.0
  %341 = vmatprep.subr.mxu0 0.0
  %342 = vmatpush1.msra.mxu0 0.0
  %343 = vmatprep.subr.mxu0 0.0
  %344 = vmatpush1.msra.mxu0 0.0
  %345 = vmatprep.subr.mxu0 0.0
  %346 = vmatpush1.msra.mxu0 0.0
  %347 = vmatprep.subr.mxu0 0.0
  %348 = vmatpush1.msra.mxu0 0.0
  %349 = vmatprep.subr.mxu0 0.0
  %350 = vmatpush1.msra.mxu0 0.0
  %351 = vmatprep.subr.mxu0 0.0
  %352 = vmatpush1.msra.mxu0 0.0
  %353 = vmatprep.subr.mxu0 0.0
  %354 = vmatpush1.msra.mxu0 0.0
  %355 = vmatprep.subr.mxu0 0.0
  %356 = vmatpush1.msra.mxu0 0.0
  %357 = vmatprep.mubr.f32.mxu0 0.0
  %358 = vmatmul.mubr.f32.gmra.mrb[0].mxu0 %v56
  %v359 = vpop.f32.mrb[0].mxu0
  %v360 = vadd.f32 %v241, %v359
  %v361 = vpop.f32.mrb[0].mxu0
  %v362 = vadd.f32 %v245, %v361
  %363 = vdwg.mxu0
  %364 = vmatprep.subr.mxu0 %v61
  %365 = vmatpush1.msra.mxu0 %v60
  %366 = vmatprep.subr.mxu0 %v72
  %367 = vmatpush1.msra.mxu0 %v71
  %368 = vmatprep.subr.mxu0 %v83
  %369 = vmatpush1.msra.mxu0 %v82
  %370 = vmatprep.subr.mxu0 %v94
  %371 = vmatpush1.msra.mxu0 %v93
  %372 = vmatprep.subr.mxu0 %v105
  %373 = vmatpush1.msra.mxu0 %v104
  %374 = vmatprep.subr.mxu0 %v116
  %375 = vmatpush1.msra.mxu0 %v115
  %376 = vmatprep.subr.mxu0 %v127
  %377 = vmatpush1.msra.mxu0 %v126
  %378 = vmatprep.subr.mxu0 %v138
  %379 = vmatpush1.msra.mxu0 %v137
  %380 = vmatprep.subr.mxu0 %v149
  %381 = vmatpush1.msra.mxu0 %v148
  %382 = vmatprep.subr.mxu0 %v160
  %383 = vmatpush1.msra.mxu0 %v159
  %384 = vmatprep.subr.mxu0 %v171
  %385 = vmatpush1.msra.mxu0 %v170
  %386 = vmatprep.subr.mxu0 %v182
  %387 = vmatpush1.msra.mxu0 %v181
  %388 = vmatprep.subr.mxu0 %v193
  %389 = vmatpush1.msra.mxu0 %v192
  %390 = vmatprep.subr.mxu0 %v204
  %391 = vmatpush1.msra.mxu0 %v203
  %392 = vmatprep.subr.mxu0 %v215
  %393 = vmatpush1.msra.mxu0 %v214
  %394 = vmatprep.subr.mxu0 %v226
  %395 = vmatpush1.msra.mxu0 %v225
  %396 = vmatprep.subr.mxu0 0.0
  %397 = vmatpush1.msra.mxu0 0.0
  %398 = vmatprep.subr.mxu0 0.0
  %399 = vmatpush1.msra.mxu0 0.0
  %400 = vmatprep.subr.mxu0 0.0
  %401 = vmatpush1.msra.mxu0 0.0
  %402 = vmatprep.subr.mxu0 0.0
  %403 = vmatpush1.msra.mxu0 0.0
  %404 = vmatprep.subr.mxu0 0.0
  %405 = vmatpush1.msra.mxu0 0.0
  %406 = vmatprep.subr.mxu0 0.0
  %407 = vmatpush1.msra.mxu0 0.0
  %408 = vmatprep.subr.mxu0 0.0
  %409 = vmatpush1.msra.mxu0 0.0
  %410 = vmatprep.subr.mxu0 0.0
  %411 = vmatpush1.msra.mxu0 0.0
  %412 = vmatprep.subr.mxu0 0.0
  %413 = vmatpush1.msra.mxu0 0.0
  %414 = vmatprep.subr.mxu0 0.0
  %415 = vmatpush1.msra.mxu0 0.0
  %416 = vmatprep.subr.mxu0 0.0
  %417 = vmatpush1.msra.mxu0 0.0
  %418 = vmatprep.subr.mxu0 0.0
  %419 = vmatpush1.msra.mxu0 0.0
  %420 = vmatprep.subr.mxu0 0.0
  %421 = vmatpush1.msra.mxu0 0.0
  %422 = vmatprep.subr.mxu0 0.0
  %423 = vmatpush1.msra.mxu0 0.0
  %424 = vmatprep.subr.mxu0 0.0
  %425 = vmatpush1.msra.mxu0 0.0
  %426 = vmatprep.subr.mxu0 0.0
  %427 = vmatpush1.msra.mxu0 0.0
  %428 = vmatprep.mubr.f32.mxu0 0.0
  %429 = vmatmul.mubr.f32.gmra.mrb[0].mxu0 %v56
  %v430 = vpop.f32.mrb[0].mxu0
  %v431 = vadd.f32 %v249, %v430
  %v432 = vpop.f32.mrb[0].mxu0
  %v433 = vadd.f32 %v253, %v432
  %434 = vdwg.mxu0
  %435 = vmatprep.subr.mxu0 %v63
  %436 = vmatpush1.msra.mxu0 %v62
  %437 = vmatprep.subr.mxu0 %v74
  %438 = vmatpush1.msra.mxu0 %v73
  %439 = vmatprep.subr.mxu0 %v85
  %440 = vmatpush1.msra.mxu0 %v84
  %441 = vmatprep.subr.mxu0 %v96
  %442 = vmatpush1.msra.mxu0 %v95
  %443 = vmatprep.subr.mxu0 %v107
  %444 = vmatpush1.msra.mxu0 %v106
  %445 = vmatprep.subr.mxu0 %v118
  %446 = vmatpush1.msra.mxu0 %v117
  %447 = vmatprep.subr.mxu0 %v129
  %448 = vmatpush1.msra.mxu0 %v128
  %449 = vmatprep.subr.mxu0 %v140
  %450 = vmatpush1.msra.mxu0 %v139
  %451 = vmatprep.subr.mxu0 %v151
  %452 = vmatpush1.msra.mxu0 %v150
  %453 = vmatprep.subr.mxu0 %v162
  %454 = vmatpush1.msra.mxu0 %v161
  %455 = vmatprep.subr.mxu0 %v173
  %456 = vmatpush1.msra.mxu0 %v172
  %457 = vmatprep.subr.mxu0 %v184
  %458 = vmatpush1.msra.mxu0 %v183
  %459 = vmatprep.subr.mxu0 %v195
  %460 = vmatpush1.msra.mxu0 %v194
  %461 = vmatprep.subr.mxu0 %v206
  %462 = vmatpush1.msra.mxu0 %v205
  %463 = vmatprep.subr.mxu0 %v217
  %464 = vmatpush1.msra.mxu0 %v216
  %465 = vmatprep.subr.mxu0 %v228
  %466 = vmatpush1.msra.mxu0 %v227
  %467 = vmatprep.subr.mxu0 0.0
  %468 = vmatpush1.msra.mxu0 0.0
  %469 = vmatprep.subr.mxu0 0.0
  %470 = vmatpush1.msra.mxu0 0.0
  %471 = vmatprep.subr.mxu0 0.0
  %472 = vmatpush1.msra.mxu0 0.0
  %473 = vmatprep.subr.mxu0 0.0
  %474 = vmatpush1.msra.mxu0 0.0
  %475 = vmatprep.subr.mxu0 0.0
  %476 = vmatpush1.msra.mxu0 0.0
  %477 = vmatprep.subr.mxu0 0.0
  %478 = vmatpush1.msra.mxu0 0.0
  %479 = vmatprep.subr.mxu0 0.0
  %480 = vmatpush1.msra.mxu0 0.0
  %481 = vmatprep.subr.mxu0 0.0
  %482 = vmatpush1.msra.mxu0 0.0
  %483 = vmatprep.subr.mxu0 0.0
  %484 = vmatpush1.msra.mxu0 0.0
  %485 = vmatprep.subr.mxu0 0.0
  %486 = vmatpush1.msra.mxu0 0.0
  %487 = vmatprep.subr.mxu0 0.0
  %488 = vmatpush1.msra.mxu0 0.0
  %489 = vmatprep.subr.mxu0 0.0
  %490 = vmatpush1.msra.mxu0 0.0
  %491 = vmatprep.subr.mxu0 0.0
  %492 = vmatpush1.msra.mxu0 0.0
  %493 = vmatprep.subr.mxu0 0.0
  %494 = vmatpush1.msra.mxu0 0.0
  %495 = vmatprep.subr.mxu0 0.0
  %496 = vmatpush1.msra.mxu0 0.0
  %497 = vmatprep.subr.mxu0 0.0
  %498 = vmatpush1.msra.mxu0 0.0
  %499 = vmatprep.mubr.f32.mxu0 0.0
  %500 = vmatmul.mubr.f32.gmra.mrb[0].mxu0 %v56
  %v501 = vpop.f32.mrb[0].mxu0
  %v502 = vadd.f32 %v257, %v501
  %v503 = vpop.f32.mrb[0].mxu0
  %v504 = vadd.f32 %v261, %v503
  %505 = vdwg.mxu0
  %506 = vmatprep.subr.mxu0 %v65
  %507 = vmatpush1.msra.mxu0 %v64
  %508 = vmatprep.subr.mxu0 %v76
  %509 = vmatpush1.msra.mxu0 %v75
  %510 = vmatprep.subr.mxu0 %v87
  %511 = vmatpush1.msra.mxu0 %v86
  %512 = vmatprep.subr.mxu0 %v98
  %513 = vmatpush1.msra.mxu0 %v97
  %514 = vmatprep.subr.mxu0 %v109
  %515 = vmatpush1.msra.mxu0 %v108
  %516 = vmatprep.subr.mxu0 %v120
  %517 = vmatpush1.msra.mxu0 %v119
  %518 = vmatprep.subr.mxu0 %v131
  %519 = vmatpush1.msra.mxu0 %v130
  %520 = vmatprep.subr.mxu0 %v142
  %521 = vmatpush1.msra.mxu0 %v141
  %522 = vmatprep.subr.mxu0 %v153
  %523 = vmatpush1.msra.mxu0 %v152
  %524 = vmatprep.subr.mxu0 %v164
  %525 = vmatpush1.msra.mxu0 %v163
  %526 = vmatprep.subr.mxu0 %v175
  %527 = vmatpush1.msra.mxu0 %v174
  %528 = vmatprep.subr.mxu0 %v186
  %529 = vmatpush1.msra.mxu0 %v185
  %530 = vmatprep.subr.mxu0 %v197
  %531 = vmatpush1.msra.mxu0 %v196
  %532 = vmatprep.subr.mxu0 %v208
  %533 = vmatpush1.msra.mxu0 %v207
  %534 = vmatprep.subr.mxu0 %v219
  %535 = vmatpush1.msra.mxu0 %v218
  %536 = vmatprep.subr.mxu0 %v230
  %537 = vmatpush1.msra.mxu0 %v229
  %538 = vmatprep.subr.mxu0 0.0
  %539 = vmatpush1.msra.mxu0 0.0
  %540 = vmatprep.subr.mxu0 0.0
  %541 = vmatpush1.msra.mxu0 0.0
  %542 = vmatprep.subr.mxu0 0.0
  %543 = vmatpush1.msra.mxu0 0.0
  %544 = vmatprep.subr.mxu0 0.0
  %545 = vmatpush1.msra.mxu0 0.0
  %546 = vmatprep.subr.mxu0 0.0
  %547 = vmatpush1.msra.mxu0 0.0
  %548 = vmatprep.subr.mxu0 0.0
  %549 = vmatpush1.msra.mxu0 0.0
  %550 = vmatprep.subr.mxu0 0.0
  %551 = vmatpush1.msra.mxu0 0.0
  %552 = vmatprep.subr.mxu0 0.0
  %553 = vmatpush1.msra.mxu0 0.0
  %554 = vmatprep.subr.mxu0 0.0
  %555 = vmatpush1.msra.mxu0 0.0
  %556 = vmatprep.subr.mxu0 0.0
  %557 = vmatpush1.msra.mxu0 0.0
  %558 = vmatprep.subr.mxu0 0.0
  %559 = vmatpush1.msra.mxu0 0.0
  %560 = vmatprep.subr.mxu0 0.0
  %561 = vmatpush1.msra.mxu0 0.0
  %562 = vmatprep.subr.mxu0 0.0
  %563 = vmatpush1.msra.mxu0 0.0
  %564 = vmatprep.subr.mxu0 0.0
  %565 = vmatpush1.msra.mxu0 0.0
  %566 = vmatprep.subr.mxu0 0.0
  %567 = vmatpush1.msra.mxu0 0.0
  %568 = vmatprep.subr.mxu0 0.0
  %569 = vmatpush1.msra.mxu0 0.0
  %570 = vmatprep.mubr.f32.mxu0 0.0
  %571 = vmatmul.mubr.f32.gmra.mrb[0].mxu0 %v56
  %v572 = vpop.f32.mrb[0].mxu0
  %v573 = vadd.f32 %v265, %v572
  %v574 = vpop.f32.mrb[0].mxu0
  %v575 = vadd.f32 %v269, %v574
  %576 = vdwg.mxu0
  %577 = vmatprep.subr.mxu0 %v67
  %578 = vmatpush1.msra.mxu0 %v66
  %579 = vmatprep.subr.mxu0 %v78
  %580 = vmatpush1.msra.mxu0 %v77
  %581 = vmatprep.subr.mxu0 %v89
  %582 = vmatpush1.msra.mxu0 %v88
  %583 = vmatprep.subr.mxu0 %v100
  %584 = vmatpush1.msra.mxu0 %v99
  %585 = vmatprep.subr.mxu0 %v111
  %586 = vmatpush1.msra.mxu0 %v110
  %587 = vmatprep.subr.mxu0 %v122
  %588 = vmatpush1.msra.mxu0 %v121
  %589 = vmatprep.subr.mxu0 %v133
  %590 = vmatpush1.msra.mxu0 %v132
  %591 = vmatprep.subr.mxu0 %v144
  %592 = vmatpush1.msra.mxu0 %v143
  %593 = vmatprep.subr.mxu0 %v155
  %594 = vmatpush1.msra.mxu0 %v154
  %595 = vmatprep.subr.mxu0 %v166
  %596 = vmatpush1.msra.mxu0 %v165
  %597 = vmatprep.subr.mxu0 %v177
  %598 = vmatpush1.msra.mxu0 %v176
  %599 = vmatprep.subr.mxu0 %v188
  %600 = vmatpush1.msra.mxu0 %v187
  %601 = vmatprep.subr.mxu0 %v199
  %602 = vmatpush1.msra.mxu0 %v198
  %603 = vmatprep.subr.mxu0 %v210
  %604 = vmatpush1.msra.mxu0 %v209
  %605 = vmatprep.subr.mxu0 %v221
  %606 = vmatpush1.msra.mxu0 %v220
  %607 = vmatprep.subr.mxu0 %v232
  %608 = vmatpush1.msra.mxu0 %v231
  %609 = vmatprep.subr.mxu0 0.0
  %610 = vmatpush1.msra.mxu0 0.0
  %611 = vmatprep.subr.mxu0 0.0
  %612 = vmatpush1.msra.mxu0 0.0
  %613 = vmatprep.subr.mxu0 0.0
  %614 = vmatpush1.msra.mxu0 0.0
  %615 = vmatprep.subr.mxu0 0.0
  %616 = vmatpush1.msra.mxu0 0.0
  %617 = vmatprep.subr.mxu0 0.0
  %618 = vmatpush1.msra.mxu0 0.0
  %619 = vmatprep.subr.mxu0 0.0
  %620 = vmatpush1.msra.mxu0 0.0
  %621 = vmatprep.subr.mxu0 0.0
  %622 = vmatpush1.msra.mxu0 0.0
  %623 = vmatprep.subr.mxu0 0.0
  %624 = vmatpush1.msra.mxu0 0.0
  %625 = vmatprep.subr.mxu0 0.0
  %626 = vmatpush1.msra.mxu0 0.0
  %627 = vmatprep.subr.mxu0 0.0
  %628 = vmatpush1.msra.mxu0 0.0
  %629 = vmatprep.subr.mxu0 0.0
  %630 = vmatpush1.msra.mxu0 0.0
  %631 = vmatprep.subr.mxu0 0.0
  %632 = vmatpush1.msra.mxu0 0.0
  %633 = vmatprep.subr.mxu0 0.0
  %634 = vmatpush1.msra.mxu0 0.0
  %635 = vmatprep.subr.mxu0 0.0
  %636 = vmatpush1.msra.mxu0 0.0
  %637 = vmatprep.subr.mxu0 0.0
  %638 = vmatpush1.msra.mxu0 0.0
  %639 = vmatprep.subr.mxu0 0.0
  %640 = vmatpush1.msra.mxu0 0.0
  %641 = vmatprep.mubr.f32.mxu0 0.0
  %642 = vmatmul.mubr.f32.gmra.mrb[0].mxu0 %v56
  %v643 = vpop.f32.mrb[0].mxu0
  %v644 = vadd.f32 %v273, %v643
  %v645 = vpop.f32.mrb[0].mxu0
  %v646 = vadd.f32 %v277, %v645
  %647 = vdwg.mxu0
  %648 = vmatprep.subr.mxu0 0.0
  %649 = vmatpush1.msra.mxu0 %v68
  %650 = vmatprep.subr.mxu0 0.0
  %651 = vmatpush1.msra.mxu0 %v79
  %652 = vmatprep.subr.mxu0 0.0
  %653 = vmatpush1.msra.mxu0 %v90
  %654 = vmatprep.subr.mxu0 0.0
  %655 = vmatpush1.msra.mxu0 %v101
  %656 = vmatprep.subr.mxu0 0.0
  %657 = vmatpush1.msra.mxu0 %v112
  %658 = vmatprep.subr.mxu0 0.0
  %659 = vmatpush1.msra.mxu0 %v123
  %660 = vmatprep.subr.mxu0 0.0
  %661 = vmatpush1.msra.mxu0 %v134
  %662 = vmatprep.subr.mxu0 0.0
  %663 = vmatpush1.msra.mxu0 %v145
  %664 = vmatprep.subr.mxu0 0.0
  %665 = vmatpush1.msra.mxu0 %v156
  %666 = vmatprep.subr.mxu0 0.0
  %667 = vmatpush1.msra.mxu0 %v167
  %668 = vmatprep.subr.mxu0 0.0
  %669 = vmatpush1.msra.mxu0 %v178
  %670 = vmatprep.subr.mxu0 0.0
  %671 = vmatpush1.msra.mxu0 %v189
  %672 = vmatprep.subr.mxu0 0.0
  %673 = vmatpush1.msra.mxu0 %v200
  %674 = vmatprep.subr.mxu0 0.0
  %675 = vmatpush1.msra.mxu0 %v211
  %676 = vmatprep.subr.mxu0 0.0
  %677 = vmatpush1.msra.mxu0 %v222
  %678 = vmatprep.subr.mxu0 0.0
  %679 = vmatpush1.msra.mxu0 %v233
  %680 = vmatprep.subr.mxu0 0.0
  %681 = vmatpush1.msra.mxu0 0.0
  %682 = vmatprep.subr.mxu0 0.0
  %683 = vmatpush1.msra.mxu0 0.0
  %684 = vmatprep.subr.mxu0 0.0
  %685 = vmatpush1.msra.mxu0 0.0
  %686 = vmatprep.subr.mxu0 0.0
  %687 = vmatpush1.msra.mxu0 0.0
  %688 = vmatprep.subr.mxu0 0.0
  %689 = vmatpush1.msra.mxu0 0.0
  %690 = vmatprep.subr.mxu0 0.0
  %691 = vmatpush1.msra.mxu0 0.0
  %692 = vmatprep.subr.mxu0 0.0
  %693 = vmatpush1.msra.mxu0 0.0
  %694 = vmatprep.subr.mxu0 0.0
  %695 = vmatpush1.msra.mxu0 0.0
  %696 = vmatprep.subr.mxu0 0.0
  %697 = vmatpush1.msra.mxu0 0.0
  %698 = vmatprep.subr.mxu0 0.0
  %699 = vmatpush1.msra.mxu0 0.0
  %700 = vmatprep.subr.mxu0 0.0
  %701 = vmatpush1.msra.mxu0 0.0
  %702 = vmatprep.subr.mxu0 0.0
  %703 = vmatpush1.msra.mxu0 0.0
  %704 = vmatprep.subr.mxu0 0.0
  %705 = vmatpush1.msra.mxu0 0.0
  %706 = vmatprep.subr.mxu0 0.0
  %707 = vmatpush1.msra.mxu0 0.0
  %708 = vmatprep.subr.mxu0 0.0
  %709 = vmatpush1.msra.mxu0 0.0
  %710 = vmatprep.subr.mxu0 0.0
  %711 = vmatpush1.msra.mxu0 0.0
  %712 = vmatprep.mubr.f32.mxu0 0.0
  %713 = vmatmul.mubr.f32.gmra.mrb[0].mxu0 %v56
  %v714 = vpop.f32.mrb[0].mxu0
  %v715 = vadd.f32 %v281, %v714
  %v716 = vpop.f32.mrb[0].mxu0
  %717 = vdwg.mxu0
  %v718 = vmax.f32 %v360, 0.0
  %v719 = vmax.f32 %v362, 0.0
  %v720 = vmax.f32 %v431, 0.0
  %v721 = vmax.f32 %v433, 0.0
  %v722 = vmax.f32 %v502, 0.0
  %v723 = vmax.f32 %v504, 0.0
  %v724 = vmax.f32 %v573, 0.0
  %v725 = vmax.f32 %v575, 0.0
  %v726 = vmax.f32 %v644, 0.0
  %v727 = vmax.f32 %v646, 0.0
  %v728 = vmax.f32 %v715, 0.0
  %v729 = vld [vmem:[%s3] sm:$0x1]
  %v730 = vld [vmem:[%s4] sm:$0x1]
  %vm731 = vcmask 1043456
  %v732 = vsel %vm731, %v718, 0.0
  %v733 = vrot.slane %v732, 4
  %v734 = vadd.f32 %v732, %v733
  %v735 = vrot.slane %v734, 2
  %v736 = vadd.f32 %v734, %v735
  %v737 = vrot.slane %v736, 1
  %v738 = vadd.f32 %v736, %v737
  %v739 = vsel %vm731, %v719, 0.0
  %v740 = vrot.slane %v739, 4
  %v741 = vadd.f32 %v739, %v740
  %v742 = vrot.slane %v741, 2
  %v743 = vadd.f32 %v741, %v742
  %v744 = vrot.slane %v743, 1
  %v745 = vadd.f32 %v743, %v744
  %v746 = vsel %vm731, %v720, 0.0
  %v747 = vrot.slane %v746, 4
  %v748 = vadd.f32 %v746, %v747
  %v749 = vrot.slane %v748, 2
  %v750 = vadd.f32 %v748, %v749
  %v751 = vrot.slane %v750, 1
  %v752 = vadd.f32 %v750, %v751
  %v753 = vsel %vm731, %v721, 0.0
  %v754 = vrot.slane %v753, 4
  %v755 = vadd.f32 %v753, %v754
  %v756 = vrot.slane %v755, 2
  %v757 = vadd.f32 %v755, %v756
  %v758 = vrot.slane %v757, 1
  %v759 = vadd.f32 %v757, %v758
  %v760 = vsel %vm731, %v722, 0.0
  %v761 = vrot.slane %v760, 4
  %v762 = vadd.f32 %v760, %v761
  %v763 = vrot.slane %v762, 2
  %v764 = vadd.f32 %v762, %v763
  %v765 = vrot.slane %v764, 1
  %v766 = vadd.f32 %v764, %v765
  %v767 = vsel %vm731, %v723, 0.0
  %v768 = vrot.slane %v767, 4
  %v769 = vadd.f32 %v767, %v768
  %v770 = vrot.slane %v769, 2
  %v771 = vadd.f32 %v769, %v770
  %v772 = vrot.slane %v771, 1
  %v773 = vadd.f32 %v771, %v772
  %v774 = vsel %vm731, %v724, 0.0
  %v775 = vrot.slane %v774, 4
  %v776 = vadd.f32 %v774, %v775
  %v777 = vrot.slane %v776, 2
  %v778 = vadd.f32 %v776, %v777
  %v779 = vrot.slane %v778, 1
  %v780 = vadd.f32 %v778, %v779
  %v781 = vsel %vm731, %v725, 0.0
  %v782 = vrot.slane %v781, 4
  %v783 = vadd.f32 %v781, %v782
  %v784 = vrot.slane %v783, 2
  %v785 = vadd.f32 %v783, %v784
  %v786 = vrot.slane %v785, 1
  %v787 = vadd.f32 %v785, %v786
  %v788 = vsel %vm731, %v726, 0.0
  %v789 = vrot.slane %v788, 4
  %v790 = vadd.f32 %v788, %v789
  %v791 = vrot.slane %v790, 2
  %v792 = vadd.f32 %v790, %v791
  %v793 = vrot.slane %v792, 1
  %v794 = vadd.f32 %v792, %v793
  %v795 = vsel %vm731, %v727, 0.0
  %v796 = vrot.slane %v795, 4
  %v797 = vadd.f32 %v795, %v796
  %v798 = vrot.slane %v797, 2
  %v799 = vadd.f32 %v797, %v798
  %v800 = vrot.slane %v799, 1
  %v801 = vadd.f32 %v799, %v800
  %vm802 = vcmask 519168
  %v803 = vsel %vm802, %v728, 0.0
  %v804 = vrot.slane %v803, 4
  %v805 = vadd.f32 %v803, %v804
  %v806 = vrot.slane %v805, 2
  %v807 = vadd.f32 %v805, %v806
  %v808 = vrot.slane %v807, 1
  %v809 = vadd.f32 %v807, %v808
  %v810 = vadd.f32 %v738, 0.0
  %812 = vrot.lane.b32.xlu0 %v738, 96
  %v813 = vpop.permute.xlu0 %812
  %v815 = vadd.f32 %v810, %v813
  %816 = vrot.lane.b32.xlu0 %v738, 64
  %v817 = vpop.permute.xlu0 %816
  %v819 = vadd.f32 %v815, %v817
  %820 = vrot.lane.b32.xlu0 %v738, 32
  %v821 = vpop.permute.xlu0 %820
  %v823 = vadd.f32 %v819, %v821
  %v824 = vadd.f32 %v823, %v745
  %826 = vrot.lane.b32.xlu0 %v745, 96
  %v827 = vpop.permute.xlu0 %826
  %v829 = vadd.f32 %v824, %v827
  %830 = vrot.lane.b32.xlu0 %v745, 64
  %v831 = vpop.permute.xlu0 %830
  %v833 = vadd.f32 %v829, %v831
  %834 = vrot.lane.b32.xlu0 %v745, 32
  %v835 = vpop.permute.xlu0 %834
  %v837 = vadd.f32 %v833, %v835
  %v838 = vadd.f32 %v837, %v752
  %840 = vrot.lane.b32.xlu0 %v752, 96
  %v841 = vpop.permute.xlu0 %840
  %v843 = vadd.f32 %v838, %v841
  %844 = vrot.lane.b32.xlu0 %v752, 64
  %v845 = vpop.permute.xlu0 %844
  %v847 = vadd.f32 %v843, %v845
  %848 = vrot.lane.b32.xlu0 %v752, 32
  %v849 = vpop.permute.xlu0 %848
  %v851 = vadd.f32 %v847, %v849
  %v852 = vadd.f32 %v851, %v759
  %854 = vrot.lane.b32.xlu0 %v759, 96
  %v855 = vpop.permute.xlu0 %854
  %v857 = vadd.f32 %v852, %v855
  %858 = vrot.lane.b32.xlu0 %v759, 64
  %v859 = vpop.permute.xlu0 %858
  %v861 = vadd.f32 %v857, %v859
  %862 = vrot.lane.b32.xlu0 %v759, 32
  %v863 = vpop.permute.xlu0 %862
  %v865 = vadd.f32 %v861, %v863
  %v866 = vadd.f32 %v865, %v766
  %868 = vrot.lane.b32.xlu0 %v766, 96
  %v869 = vpop.permute.xlu0 %868
  %v871 = vadd.f32 %v866, %v869
  %872 = vrot.lane.b32.xlu0 %v766, 64
  %v873 = vpop.permute.xlu0 %872
  %v875 = vadd.f32 %v871, %v873
  %876 = vrot.lane.b32.xlu0 %v766, 32
  %v877 = vpop.permute.xlu0 %876
  %v879 = vadd.f32 %v875, %v877
  %v880 = vadd.f32 %v879, %v773
  %882 = vrot.lane.b32.xlu0 %v773, 96
  %v883 = vpop.permute.xlu0 %882
  %v885 = vadd.f32 %v880, %v883
  %886 = vrot.lane.b32.xlu0 %v773, 64
  %v887 = vpop.permute.xlu0 %886
  %v889 = vadd.f32 %v885, %v887
  %890 = vrot.lane.b32.xlu0 %v773, 32
  %v891 = vpop.permute.xlu0 %890
  %v893 = vadd.f32 %v889, %v891
  %v894 = vadd.f32 %v893, %v780
  %896 = vrot.lane.b32.xlu0 %v780, 96
  %v897 = vpop.permute.xlu0 %896
  %v899 = vadd.f32 %v894, %v897
  %900 = vrot.lane.b32.xlu0 %v780, 64
  %v901 = vpop.permute.xlu0 %900
  %v903 = vadd.f32 %v899, %v901
  %904 = vrot.lane.b32.xlu0 %v780, 32
  %v905 = vpop.permute.xlu0 %904
  %v907 = vadd.f32 %v903, %v905
  %v908 = vadd.f32 %v907, %v787
  %910 = vrot.lane.b32.xlu0 %v787, 96
  %v911 = vpop.permute.xlu0 %910
  %v913 = vadd.f32 %v908, %v911
  %914 = vrot.lane.b32.xlu0 %v787, 64
  %v915 = vpop.permute.xlu0 %914
  %v917 = vadd.f32 %v913, %v915
  %918 = vrot.lane.b32.xlu0 %v787, 32
  %v919 = vpop.permute.xlu0 %918
  %v921 = vadd.f32 %v917, %v919
  %v922 = vadd.f32 %v921, %v794
  %924 = vrot.lane.b32.xlu0 %v794, 96
  %v925 = vpop.permute.xlu0 %924
  %v927 = vadd.f32 %v922, %v925
  %928 = vrot.lane.b32.xlu0 %v794, 64
  %v929 = vpop.permute.xlu0 %928
  %v931 = vadd.f32 %v927, %v929
  %932 = vrot.lane.b32.xlu0 %v794, 32
  %v933 = vpop.permute.xlu0 %932
  %v935 = vadd.f32 %v931, %v933
  %v936 = vadd.f32 %v935, %v801
  %938 = vrot.lane.b32.xlu0 %v801, 96
  %v939 = vpop.permute.xlu0 %938
  %v941 = vadd.f32 %v936, %v939
  %942 = vrot.lane.b32.xlu0 %v801, 64
  %v943 = vpop.permute.xlu0 %942
  %v945 = vadd.f32 %v941, %v943
  %946 = vrot.lane.b32.xlu0 %v801, 32
  %v947 = vpop.permute.xlu0 %946
  %v949 = vadd.f32 %v945, %v947
  %v950 = vadd.f32 %v949, %v809
  %952 = vrot.lane.b32.xlu0 %v809, 96
  %v953 = vpop.permute.xlu0 %952
  %v955 = vadd.f32 %v950, %v953
  %v956 = vrcp.pop 168.0
  %v957 = vmul.f32 %v955, %v956
  %v958 = vlaneseq
  %v959 = vshrl.u32 %v958, 7
  %v960 = vsub.s32 0, %v959
  %v961 = vrot.slane %v957, %v960
  %v962 = vsub.f32 %v718, %v961
  %v963 = vmul.f32 %v962, %v962
  %v964 = vadd.f32 %v963, 0.0
  %966 = vrot.lane.b32.xlu0 %v961, 32
  %v967 = vpop.permute.xlu0 %966
  %v969 = vsub.f32 %v718, %v967
  %v970 = vmul.f32 %v969, %v969
  %972 = vrot.lane.b32.xlu0 %v970, 96
  %v973 = vpop.permute.xlu0 %972
  %v975 = vadd.f32 %v964, %v973
  %976 = vrot.lane.b32.xlu0 %v961, 64
  %v977 = vpop.permute.xlu0 %976
  %v979 = vsub.f32 %v718, %v977
  %v980 = vmul.f32 %v979, %v979
  %982 = vrot.lane.b32.xlu0 %v980, 64
  %v983 = vpop.permute.xlu0 %982
  %v985 = vadd.f32 %v975, %v983
  %986 = vrot.lane.b32.xlu0 %v961, 96
  %v987 = vpop.permute.xlu0 %986
  %v989 = vsub.f32 %v718, %v987
  %v990 = vmul.f32 %v989, %v989
  %992 = vrot.lane.b32.xlu0 %v990, 32
  %v993 = vpop.permute.xlu0 %992
  %v995 = vadd.f32 %v985, %v993
  %v996 = vsub.f32 %v719, %v961
  %v997 = vmul.f32 %v996, %v996
  %v998 = vadd.f32 %v995, %v997
  %v999 = vsub.f32 %v719, %v967
  %v1000 = vmul.f32 %v999, %v999
  %1002 = vrot.lane.b32.xlu0 %v1000, 96
  %v1003 = vpop.permute.xlu0 %1002
  %v1005 = vadd.f32 %v998, %v1003
  %v1006 = vsub.f32 %v719, %v977
  %v1007 = vmul.f32 %v1006, %v1006
  %1009 = vrot.lane.b32.xlu0 %v1007, 64
  %v1010 = vpop.permute.xlu0 %1009
  %v1012 = vadd.f32 %v1005, %v1010
  %v1013 = vsub.f32 %v719, %v987
  %v1014 = vmul.f32 %v1013, %v1013
  %1016 = vrot.lane.b32.xlu0 %v1014, 32
  %v1017 = vpop.permute.xlu0 %1016
  %v1019 = vadd.f32 %v1012, %v1017
  %v1020 = vsub.f32 %v720, %v961
  %v1021 = vmul.f32 %v1020, %v1020
  %v1022 = vadd.f32 %v1019, %v1021
  %v1023 = vsub.f32 %v720, %v967
  %v1024 = vmul.f32 %v1023, %v1023
  %1026 = vrot.lane.b32.xlu0 %v1024, 96
  %v1027 = vpop.permute.xlu0 %1026
  %v1029 = vadd.f32 %v1022, %v1027
  %v1030 = vsub.f32 %v720, %v977
  %v1031 = vmul.f32 %v1030, %v1030
  %1033 = vrot.lane.b32.xlu0 %v1031, 64
  %v1034 = vpop.permute.xlu0 %1033
  %v1036 = vadd.f32 %v1029, %v1034
  %v1037 = vsub.f32 %v720, %v987
  %v1038 = vmul.f32 %v1037, %v1037
  %1040 = vrot.lane.b32.xlu0 %v1038, 32
  %v1041 = vpop.permute.xlu0 %1040
  %v1043 = vadd.f32 %v1036, %v1041
  %v1044 = vsub.f32 %v721, %v961
  %v1045 = vmul.f32 %v1044, %v1044
  %v1046 = vadd.f32 %v1043, %v1045
  %v1047 = vsub.f32 %v721, %v967
  %v1048 = vmul.f32 %v1047, %v1047
  %1050 = vrot.lane.b32.xlu0 %v1048, 96
  %v1051 = vpop.permute.xlu0 %1050
  %v1053 = vadd.f32 %v1046, %v1051
  %v1054 = vsub.f32 %v721, %v977
  %v1055 = vmul.f32 %v1054, %v1054
  %1057 = vrot.lane.b32.xlu0 %v1055, 64
  %v1058 = vpop.permute.xlu0 %1057
  %v1060 = vadd.f32 %v1053, %v1058
  %v1061 = vsub.f32 %v721, %v987
  %v1062 = vmul.f32 %v1061, %v1061
  %1064 = vrot.lane.b32.xlu0 %v1062, 32
  %v1065 = vpop.permute.xlu0 %1064
  %v1067 = vadd.f32 %v1060, %v1065
  %v1068 = vsub.f32 %v722, %v961
  %v1069 = vmul.f32 %v1068, %v1068
  %v1070 = vadd.f32 %v1067, %v1069
  %v1071 = vsub.f32 %v722, %v967
  %v1072 = vmul.f32 %v1071, %v1071
  %1074 = vrot.lane.b32.xlu0 %v1072, 96
  %v1075 = vpop.permute.xlu0 %1074
  %v1077 = vadd.f32 %v1070, %v1075
  %v1078 = vsub.f32 %v722, %v977
  %v1079 = vmul.f32 %v1078, %v1078
  %1081 = vrot.lane.b32.xlu0 %v1079, 64
  %v1082 = vpop.permute.xlu0 %1081
  %v1084 = vadd.f32 %v1077, %v1082
  %v1085 = vsub.f32 %v722, %v987
  %v1086 = vmul.f32 %v1085, %v1085
  %1088 = vrot.lane.b32.xlu0 %v1086, 32
  %v1089 = vpop.permute.xlu0 %1088
  %v1091 = vadd.f32 %v1084, %v1089
  %v1092 = vsub.f32 %v723, %v961
  %v1093 = vmul.f32 %v1092, %v1092
  %v1094 = vadd.f32 %v1091, %v1093
  %v1095 = vsub.f32 %v723, %v967
  %v1096 = vmul.f32 %v1095, %v1095
  %1098 = vrot.lane.b32.xlu0 %v1096, 96
  %v1099 = vpop.permute.xlu0 %1098
  %v1101 = vadd.f32 %v1094, %v1099
  %v1102 = vsub.f32 %v723, %v977
  %v1103 = vmul.f32 %v1102, %v1102
  %1105 = vrot.lane.b32.xlu0 %v1103, 64
  %v1106 = vpop.permute.xlu0 %1105
  %v1108 = vadd.f32 %v1101, %v1106
  %v1109 = vsub.f32 %v723, %v987
  %v1110 = vmul.f32 %v1109, %v1109
  %1112 = vrot.lane.b32.xlu0 %v1110, 32
  %v1113 = vpop.permute.xlu0 %1112
  %v1115 = vadd.f32 %v1108, %v1113
  %v1116 = vsub.f32 %v724, %v961
  %v1117 = vmul.f32 %v1116, %v1116
  %v1118 = vadd.f32 %v1115, %v1117
  %v1119 = vsub.f32 %v724, %v967
  %v1120 = vmul.f32 %v1119, %v1119
  %1122 = vrot.lane.b32.xlu0 %v1120, 96
  %v1123 = vpop.permute.xlu0 %1122
  %v1125 = vadd.f32 %v1118, %v1123
  %v1126 = vsub.f32 %v724, %v977
  %v1127 = vmul.f32 %v1126, %v1126
  %1129 = vrot.lane.b32.xlu0 %v1127, 64
  %v1130 = vpop.permute.xlu0 %1129
  %v1132 = vadd.f32 %v1125, %v1130
  %v1133 = vsub.f32 %v724, %v987
  %v1134 = vmul.f32 %v1133, %v1133
  %1136 = vrot.lane.b32.xlu0 %v1134, 32
  %v1137 = vpop.permute.xlu0 %1136
  %v1139 = vadd.f32 %v1132, %v1137
  %v1140 = vsub.f32 %v725, %v961
  %v1141 = vmul.f32 %v1140, %v1140
  %v1142 = vadd.f32 %v1139, %v1141
  %v1143 = vsub.f32 %v725, %v967
  %v1144 = vmul.f32 %v1143, %v1143
  %1146 = vrot.lane.b32.xlu0 %v1144, 96
  %v1147 = vpop.permute.xlu0 %1146
  %v1149 = vadd.f32 %v1142, %v1147
  %v1150 = vsub.f32 %v725, %v977
  %v1151 = vmul.f32 %v1150, %v1150
  %1153 = vrot.lane.b32.xlu0 %v1151, 64
  %v1154 = vpop.permute.xlu0 %1153
  %v1156 = vadd.f32 %v1149, %v1154
  %v1157 = vsub.f32 %v725, %v987
  %v1158 = vmul.f32 %v1157, %v1157
  %1160 = vrot.lane.b32.xlu0 %v1158, 32
  %v1161 = vpop.permute.xlu0 %1160
  %v1163 = vadd.f32 %v1156, %v1161
  %v1164 = vsub.f32 %v726, %v961
  %v1165 = vmul.f32 %v1164, %v1164
  %v1166 = vadd.f32 %v1163, %v1165
  %v1167 = vsub.f32 %v726, %v967
  %v1168 = vmul.f32 %v1167, %v1167
  %1170 = vrot.lane.b32.xlu0 %v1168, 96
  %v1171 = vpop.permute.xlu0 %1170
  %v1173 = vadd.f32 %v1166, %v1171
  %v1174 = vsub.f32 %v726, %v977
  %v1175 = vmul.f32 %v1174, %v1174
  %1177 = vrot.lane.b32.xlu0 %v1175, 64
  %v1178 = vpop.permute.xlu0 %1177
  %v1180 = vadd.f32 %v1173, %v1178
  %v1181 = vsub.f32 %v726, %v987
  %v1182 = vmul.f32 %v1181, %v1181
  %1184 = vrot.lane.b32.xlu0 %v1182, 32
  %v1185 = vpop.permute.xlu0 %1184
  %v1187 = vadd.f32 %v1180, %v1185
  %v1188 = vsub.f32 %v727, %v961
  %v1189 = vmul.f32 %v1188, %v1188
  %v1190 = vadd.f32 %v1187, %v1189
  %v1191 = vsub.f32 %v727, %v967
  %v1192 = vmul.f32 %v1191, %v1191
  %1194 = vrot.lane.b32.xlu0 %v1192, 96
  %v1195 = vpop.permute.xlu0 %1194
  %v1197 = vadd.f32 %v1190, %v1195
  %v1198 = vsub.f32 %v727, %v977
  %v1199 = vmul.f32 %v1198, %v1198
  %1201 = vrot.lane.b32.xlu0 %v1199, 64
  %v1202 = vpop.permute.xlu0 %1201
  %v1204 = vadd.f32 %v1197, %v1202
  %v1205 = vsub.f32 %v727, %v987
  %v1206 = vmul.f32 %v1205, %v1205
  %1208 = vrot.lane.b32.xlu0 %v1206, 32
  %v1209 = vpop.permute.xlu0 %1208
  %v1211 = vadd.f32 %v1204, %v1209
  %v1212 = vsub.f32 %v728, %v961
  %v1213 = vmul.f32 %v1212, %v1212
  %v1214 = vadd.f32 %v1211, %v1213
  %v1215 = vsub.f32 %v728, %v967
  %v1216 = vmul.f32 %v1215, %v1215
  %1218 = vrot.lane.b32.xlu0 %v1216, 96
  %v1219 = vpop.permute.xlu0 %1218
  %v1221 = vadd.f32 %v1214, %v1219
  %vm1222 = vcmask 257024
  %v1223 = vsel %vm1222, %v1221, 0.0
  %v1224 = vrot.slane %v1223, 4
  %v1225 = vadd.f32 %v1223, %v1224
  %v1226 = vrot.slane %v1225, 2
  %v1227 = vadd.f32 %v1225, %v1226
  %v1228 = vrot.slane %v1227, 1
  %v1229 = vadd.f32 %v1227, %v1228
  %v1230 = vmul.f32 %v1229, %v956
  %v1231 = vadd.f32 %v1230, 1e-05
  %v1232 = vrsqrt.pop %v1231
  %v1233 = vmul.f32 %v729, %v1232
  %v1234 = vmul.f32 %v957, %v1233
  %v1235 = vsub.f32 %v730, %v1234
  %v1237 = vlaneseq
  %v1238 = vshrl.u32 %v1237, 7
  %v1239 = vsub.s32 0, %v1238
  %v1240 = vrot.slane %v1233, %v1239
  %v1242 = vmul.f32 %v718, %v1240
  %v1244 = vlaneseq
  %v1245 = vshrl.u32 %v1244, 7
  %v1246 = vsub.s32 0, %v1245
  %v1247 = vrot.slane %v1235, %v1246
  %v1249 = vadd.f32 %v1242, %v1247
  %1250 = vrot.lane.b32.xlu0 %v1240, 32
  %v1251 = vpop.permute.xlu0 %1250
  %v1253 = vmul.f32 %v718, %v1251
  %1254 = vrot.lane.b32.xlu0 %v1247, 32
  %v1255 = vpop.permute.xlu0 %1254
  %v1257 = vadd.f32 %v1253, %v1255
  %1258 = vrot.lane.b32.xlu0 %v1240, 64
  %v1259 = vpop.permute.xlu0 %1258
  %v1261 = vmul.f32 %v718, %v1259
  %1262 = vrot.lane.b32.xlu0 %v1247, 64
  %v1263 = vpop.permute.xlu0 %1262
  %v1265 = vadd.f32 %v1261, %v1263
  %1267 = vrot.lane.b32.xlu0 %v1257, 96
  %v1268 = vpop.permute.xlu0 %1267
  %v1270 = vmax.f32 %v1249, %v1268
  %1272 = vrot.lane.b32.xlu0 %v1265, 64
  %v1273 = vpop.permute.xlu0 %1272
  %v1275 = vmax.f32 %v1270, %v1273
  %1276 = vrot.lane.b32.xlu0 %v1240, 96
  %v1277 = vpop.permute.xlu0 %1276
  %v1279 = vmul.f32 %v718, %v1277
  %1280 = vrot.lane.b32.xlu0 %v1247, 96
  %v1281 = vpop.permute.xlu0 %1280
  %v1283 = vadd.f32 %v1279, %v1281
  %v1284 = vmul.f32 %v719, %v1240
  %v1285 = vadd.f32 %v1284, %v1247
  %1287 = vrot.lane.b32.xlu0 %v1283, 96
  %v1288 = vpop.permute.xlu0 %1287
  %v1290 = vmax.f32 %v1265, %v1288
  %1292 = vrot.lane.b32.xlu0 %v1285, 64
  %v1293 = vpop.permute.xlu0 %1292
  %v1295 = vmax.f32 %v1290, %v1293
  %v1296 = vmul.f32 %v719, %v1251
  %v1297 = vadd.f32 %v1296, %v1255
  %v1298 = vmul.f32 %v719, %v1259
  %v1299 = vadd.f32 %v1298, %v1263
  %1301 = vrot.lane.b32.xlu0 %v1297, 96
  %v1302 = vpop.permute.xlu0 %1301
  %v1304 = vmax.f32 %v1285, %v1302
  %1306 = vrot.lane.b32.xlu0 %v1299, 64
  %v1307 = vpop.permute.xlu0 %1306
  %v1309 = vmax.f32 %v1304, %v1307
  %v1310 = vmul.f32 %v719, %v1277
  %v1311 = vadd.f32 %v1310, %v1281
  %v1312 = vmul.f32 %v720, %v1240
  %v1313 = vadd.f32 %v1312, %v1247
  %1315 = vrot.lane.b32.xlu0 %v1311, 96
  %v1316 = vpop.permute.xlu0 %1315
  %v1318 = vmax.f32 %v1299, %v1316
  %1320 = vrot.lane.b32.xlu0 %v1313, 64
  %v1321 = vpop.permute.xlu0 %1320
  %v1323 = vmax.f32 %v1318, %v1321
  %v1324 = vmul.f32 %v720, %v1251
  %v1325 = vadd.f32 %v1324, %v1255
  %v1326 = vmul.f32 %v720, %v1259
  %v1327 = vadd.f32 %v1326, %v1263
  %1329 = vrot.lane.b32.xlu0 %v1325, 96
  %v1330 = vpop.permute.xlu0 %1329
  %v1332 = vmax.f32 %v1313, %v1330
  %1334 = vrot.lane.b32.xlu0 %v1327, 64
  %v1335 = vpop.permute.xlu0 %1334
  %v1337 = vmax.f32 %v1332, %v1335
  %v1338 = vmul.f32 %v720, %v1277
  %v1339 = vadd.f32 %v1338, %v1281
  %v1340 = vmul.f32 %v721, %v1240
  %v1341 = vadd.f32 %v1340, %v1247
  %1343 = vrot.lane.b32.xlu0 %v1339, 96
  %v1344 = vpop.permute.xlu0 %1343
  %v1346 = vmax.f32 %v1327, %v1344
  %1348 = vrot.lane.b32.xlu0 %v1341, 64
  %v1349 = vpop.permute.xlu0 %1348
  %v1351 = vmax.f32 %v1346, %v1349
  %v1352 = vmul.f32 %v721, %v1251
  %v1353 = vadd.f32 %v1352, %v1255
  %v1354 = vmul.f32 %v721, %v1259
  %v1355 = vadd.f32 %v1354, %v1263
  %1357 = vrot.lane.b32.xlu0 %v1353, 96
  %v1358 = vpop.permute.xlu0 %1357
  %v1360 = vmax.f32 %v1341, %v1358
  %1362 = vrot.lane.b32.xlu0 %v1355, 64
  %v1363 = vpop.permute.xlu0 %1362
  %v1365 = vmax.f32 %v1360, %v1363
  %v1366 = vmul.f32 %v721, %v1277
  %v1367 = vadd.f32 %v1366, %v1281
  %v1368 = vmul.f32 %v722, %v1240
  %v1369 = vadd.f32 %v1368, %v1247
  %1371 = vrot.lane.b32.xlu0 %v1367, 96
  %v1372 = vpop.permute.xlu0 %1371
  %v1374 = vmax.f32 %v1355, %v1372
  %1376 = vrot.lane.b32.xlu0 %v1369, 64
  %v1377 = vpop.permute.xlu0 %1376
  %v1379 = vmax.f32 %v1374, %v1377
  %v1380 = vmul.f32 %v722, %v1251
  %v1381 = vadd.f32 %v1380, %v1255
  %v1382 = vmul.f32 %v722, %v1259
  %v1383 = vadd.f32 %v1382, %v1263
  %1385 = vrot.lane.b32.xlu0 %v1381, 96
  %v1386 = vpop.permute.xlu0 %1385
  %v1388 = vmax.f32 %v1369, %v1386
  %1390 = vrot.lane.b32.xlu0 %v1383, 64
  %v1391 = vpop.permute.xlu0 %1390
  %v1393 = vmax.f32 %v1388, %v1391
  %v1394 = vmul.f32 %v722, %v1277
  %v1395 = vadd.f32 %v1394, %v1281
  %v1396 = vmul.f32 %v723, %v1240
  %v1397 = vadd.f32 %v1396, %v1247
  %1399 = vrot.lane.b32.xlu0 %v1395, 96
  %v1400 = vpop.permute.xlu0 %1399
  %v1402 = vmax.f32 %v1383, %v1400
  %1404 = vrot.lane.b32.xlu0 %v1397, 64
  %v1405 = vpop.permute.xlu0 %1404
  %v1407 = vmax.f32 %v1402, %v1405
  %v1408 = vmul.f32 %v723, %v1251
  %v1409 = vadd.f32 %v1408, %v1255
  %v1410 = vmul.f32 %v723, %v1259
  %v1411 = vadd.f32 %v1410, %v1263
  %1413 = vrot.lane.b32.xlu0 %v1409, 96
  %v1414 = vpop.permute.xlu0 %1413
  %v1416 = vmax.f32 %v1397, %v1414
  %1418 = vrot.lane.b32.xlu0 %v1411, 64
  %v1419 = vpop.permute.xlu0 %1418
  %v1421 = vmax.f32 %v1416, %v1419
  %v1422 = vmul.f32 %v723, %v1277
  %v1423 = vadd.f32 %v1422, %v1281
  %v1424 = vmul.f32 %v724, %v1240
  %v1425 = vadd.f32 %v1424, %v1247
  %1427 = vrot.lane.b32.xlu0 %v1423, 96
  %v1428 = vpop.permute.xlu0 %1427
  %v1430 = vmax.f32 %v1411, %v1428
  %1432 = vrot.lane.b32.xlu0 %v1425, 64
  %v1433 = vpop.permute.xlu0 %1432
  %v1435 = vmax.f32 %v1430, %v1433
  %v1436 = vmul.f32 %v724, %v1251
  %v1437 = vadd.f32 %v1436, %v1255
  %v1438 = vmul.f32 %v724, %v1259
  %v1439 = vadd.f32 %v1438, %v1263
  %1441 = vrot.lane.b32.xlu0 %v1437, 96
  %v1442 = vpop.permute.xlu0 %1441
  %v1444 = vmax.f32 %v1425, %v1442
  %1446 = vrot.lane.b32.xlu0 %v1439, 64
  %v1447 = vpop.permute.xlu0 %1446
  %v1449 = vmax.f32 %v1444, %v1447
  %v1450 = vmul.f32 %v724, %v1277
  %v1451 = vadd.f32 %v1450, %v1281
  %v1452 = vmul.f32 %v725, %v1240
  %v1453 = vadd.f32 %v1452, %v1247
  %1455 = vrot.lane.b32.xlu0 %v1451, 96
  %v1456 = vpop.permute.xlu0 %1455
  %v1458 = vmax.f32 %v1439, %v1456
  %1460 = vrot.lane.b32.xlu0 %v1453, 64
  %v1461 = vpop.permute.xlu0 %1460
  %v1463 = vmax.f32 %v1458, %v1461
  %v1464 = vmul.f32 %v725, %v1251
  %v1465 = vadd.f32 %v1464, %v1255
  %v1466 = vmul.f32 %v725, %v1259
  %v1467 = vadd.f32 %v1466, %v1263
  %1469 = vrot.lane.b32.xlu0 %v1465, 96
  %v1470 = vpop.permute.xlu0 %1469
  %v1472 = vmax.f32 %v1453, %v1470
  %1474 = vrot.lane.b32.xlu0 %v1467, 64
  %v1475 = vpop.permute.xlu0 %1474
  %v1477 = vmax.f32 %v1472, %v1475
  %v1478 = vmul.f32 %v725, %v1277
  %v1479 = vadd.f32 %v1478, %v1281
  %v1480 = vmul.f32 %v726, %v1240
  %v1481 = vadd.f32 %v1480, %v1247
  %1483 = vrot.lane.b32.xlu0 %v1479, 96
  %v1484 = vpop.permute.xlu0 %1483
  %v1486 = vmax.f32 %v1467, %v1484
  %1488 = vrot.lane.b32.xlu0 %v1481, 64
  %v1489 = vpop.permute.xlu0 %1488
  %v1491 = vmax.f32 %v1486, %v1489
  %v1492 = vmul.f32 %v726, %v1251
  %v1493 = vadd.f32 %v1492, %v1255
  %v1494 = vmul.f32 %v726, %v1259
  %v1495 = vadd.f32 %v1494, %v1263
  %1497 = vrot.lane.b32.xlu0 %v1493, 96
  %v1498 = vpop.permute.xlu0 %1497
  %v1500 = vmax.f32 %v1481, %v1498
  %1502 = vrot.lane.b32.xlu0 %v1495, 64
  %v1503 = vpop.permute.xlu0 %1502
  %v1505 = vmax.f32 %v1500, %v1503
  %v1506 = vmul.f32 %v726, %v1277
  %v1507 = vadd.f32 %v1506, %v1281
  %v1508 = vmul.f32 %v727, %v1240
  %v1509 = vadd.f32 %v1508, %v1247
  %1511 = vrot.lane.b32.xlu0 %v1507, 96
  %v1512 = vpop.permute.xlu0 %1511
  %v1514 = vmax.f32 %v1495, %v1512
  %1516 = vrot.lane.b32.xlu0 %v1509, 64
  %v1517 = vpop.permute.xlu0 %1516
  %v1519 = vmax.f32 %v1514, %v1517
  %v1520 = vmul.f32 %v727, %v1251
  %v1521 = vadd.f32 %v1520, %v1255
  %v1522 = vmul.f32 %v727, %v1259
  %v1523 = vadd.f32 %v1522, %v1263
  %1525 = vrot.lane.b32.xlu0 %v1521, 96
  %v1526 = vpop.permute.xlu0 %1525
  %v1528 = vmax.f32 %v1509, %v1526
  %1530 = vrot.lane.b32.xlu0 %v1523, 64
  %v1531 = vpop.permute.xlu0 %1530
  %v1533 = vmax.f32 %v1528, %v1531
  %v1534 = vmul.f32 %v727, %v1277
  %v1535 = vadd.f32 %v1534, %v1281
  %v1536 = vmul.f32 %v728, %v1240
  %v1537 = vadd.f32 %v1536, %v1247
  %1539 = vrot.lane.b32.xlu0 %v1535, 96
  %v1540 = vpop.permute.xlu0 %1539
  %v1542 = vmax.f32 %v1523, %v1540
  %1544 = vrot.lane.b32.xlu0 %v1537, 64
  %v1545 = vpop.permute.xlu0 %1544
  %v1547 = vmax.f32 %v1542, %v1545
  %1549 = vrot.lane.b32.xlu0 %v1295, 96
  %v1550 = vpop.permute.xlu0 %1549
  %1553 = vrot.lane.b32.xlu0 %v1309, 64
  %v1554 = vpop.permute.xlu0 %1553
  %1557 = vrot.lane.b32.xlu0 %v1323, 32
  %v1558 = vpop.permute.xlu0 %1557
  %1561 = vrot.lane.b32.xlu0 %v1351, 96
  %v1562 = vpop.permute.xlu0 %1561
  %1565 = vrot.lane.b32.xlu0 %v1365, 64
  %v1566 = vpop.permute.xlu0 %1565
  %1569 = vrot.lane.b32.xlu0 %v1379, 32
  %v1570 = vpop.permute.xlu0 %1569
  %1573 = vrot.lane.b32.xlu0 %v1407, 96
  %v1574 = vpop.permute.xlu0 %1573
  %1577 = vrot.lane.b32.xlu0 %v1421, 64
  %v1578 = vpop.permute.xlu0 %1577
  %1581 = vrot.lane.b32.xlu0 %v1435, 32
  %v1582 = vpop.permute.xlu0 %1581
  %1585 = vrot.lane.b32.xlu0 %v1463, 96
  %v1586 = vpop.permute.xlu0 %1585
  %1589 = vrot.lane.b32.xlu0 %v1477, 64
  %v1590 = vpop.permute.xlu0 %1589
  %1593 = vrot.lane.b32.xlu0 %v1491, 32
  %v1594 = vpop.permute.xlu0 %1593
  %vm1596 = vcmask 261120
  %v1597 = vsel %vm1596, %v1275, %v1550
  %vm1598 = vcmask 523264
  %v1599 = vsel %vm1598, %v1597, %v1554
  %vm1600 = vcmask 785408
  %v1601 = vsel %vm1600, %v1599, %v1558
  %v1602 = vsel %vm1596, %v1337, %v1562
  %v1603 = vsel %vm1598, %v1602, %v1566
  %v1604 = vsel %vm1600, %v1603, %v1570
  %v1605 = vsel %vm1596, %v1393, %v1574
  %v1606 = vsel %vm1598, %v1605, %v1578
  %v1607 = vsel %vm1600, %v1606, %v1582
  %v1608 = vsel %vm1596, %v1449, %v1586
  %v1609 = vsel %vm1598, %v1608, %v1590
  %v1610 = vsel %vm1600, %v1609, %v1594
  %1612 = vrot.lane.b32.xlu0 %v1519, 96
  %v1613 = vpop.permute.xlu0 %1612
  %1616 = vrot.lane.b32.xlu0 %v1533, 64
  %v1617 = vpop.permute.xlu0 %1616
  %1620 = vrot.lane.b32.xlu0 %v1547, 32
  %v1621 = vpop.permute.xlu0 %1620
  %v1623 = vsel %vm1596, %v1505, %v1613
  %v1624 = vsel %vm1598, %v1623, %v1617
  %v1625 = vsel %vm1600, %v1624, %v1621
  %v1626 = vld [vmem:[%s5] sm:$0xff]
  %v1627 = vld [vmem:[%s5 + $0x8] sm:$0xff]
  %v1628 = vld [vmem:[%s5 + $0x10] sm:$0xff]
  %v1629 = vld [vmem:[%s5 + $0x18] sm:$0xff]
  %v1630 = vld [vmem:[%s5 + $0x20] sm:$0xff]
  %v1631 = vld [vmem:[%s5 + $0x28] sm:$0xff]
  %v1632 = vld [vmem:[%s5 + $0x30] sm:$0xff]
  %v1633 = vld [vmem:[%s5 + $0x38] sm:$0xff]
  %v1634 = vld [vmem:[%s5 + $0x40] sm:$0xff]
  %v1635 = vld [vmem:[%s5 + $0x48] sm:$0xff]
  %v1636 = vld [vmem:[%s5 + $0x50] sm:$0xff]
  %v1637 = vld [vmem:[%s5 + $0x58] sm:$0xff]
  %v1638 = vld [vmem:[%s5 + $0x60] sm:$0xff]
  %v1639 = vld [vmem:[%s5 + $0x68] sm:$0xff]
  %v1640 = vld [vmem:[%s5 + $0x70] sm:$0xff]
  %v1641 = vld [vmem:[%s5 + $0x78] sm:$0xff]
  %v1642 = vld [vmem:[%s5 + $0x80] sm:$0xff]
  %v1643 = vld [vmem:[%s5 + $0x88] sm:$0xff]
  %v1644 = vld [vmem:[%s5 + $0x90] sm:$0xff]
  %v1645 = vld [vmem:[%s5 + $0x98] sm:$0xff]
  %v1646 = vld [vmem:[%s5 + $0xa0] sm:$0xff]
  %v1647 = vld [vmem:[%s5 + $0xa8] sm:$0xff]
  %v1648 = vld [vmem:[%s5 + $0xb0] sm:$0xff]
  %v1649 = vld [vmem:[%s5 + $0xb8] sm:$0xff]
  %v1650 = vld [vmem:[%s5 + $0xc0] sm:$0xff]
  %v1651 = vld [vmem:[%s5 + $0xc8] sm:$0xff]
  %v1652 = vld [vmem:[%s5 + $0xd0] sm:$0xff]
  %v1653 = vld [vmem:[%s5 + $0xd8] sm:$0xff]
  %v1654 = vld [vmem:[%s5 + $0xe0] sm:$0xff]
  %v1655 = vld [vmem:[%s5 + $0xe8] sm:$0xff]
  %v1656 = vld [vmem:[%s5 + $0xf0] sm:$0xff]
  %v1657 = vld [vmem:[%s5 + $0xf8] sm:$0xff]
  %v1658 = vld [vmem:[%s5 + $0x100] sm:$0xff]
  %v1659 = vld [vmem:[%s5 + $0x108] sm:$0xff]
  %v1660 = vld [vmem:[%s5 + $0x110] sm:$0xff]
  %v1661 = vld [vmem:[%s5 + $0x118] sm:$0xff]
  %v1662 = vld [vmem:[%s5 + $0x120] sm:$0xff]
  %v1663 = vld [vmem:[%s5 + $0x128] sm:$0xff]
  %v1664 = vld [vmem:[%s5 + $0x130] sm:$0xff]
  %v1665 = vld [vmem:[%s5 + $0x138] sm:$0xff]
  %v1666 = vld [vmem:[%s5 + $0x140] sm:$0xff]
  %v1667 = vld [vmem:[%s5 + $0x148] sm:$0xff]
  %v1668 = vld [vmem:[%s5 + $0x150] sm:$0xff]
  %v1669 = vld [vmem:[%s5 + $0x158] sm:$0xff]
  %v1670 = vld [vmem:[%s5 + $0x160] sm:$0xff]
  %v1671 = vld [vmem:[%s5 + $0x168] sm:$0xff]
  %v1672 = vld [vmem:[%s5 + $0x170] sm:$0xff]
  %v1673 = vld [vmem:[%s5 + $0x178] sm:$0xff]
  %v1674 = vld [vmem:[%s5 + $0x180] sm:$0xff]
  %v1675 = vld [vmem:[%s5 + $0x188] sm:$0xff]
  %v1676 = vld [vmem:[%s5 + $0x190] sm:$0xff]
  %v1677 = vld [vmem:[%s5 + $0x198] sm:$0xff]
  %v1678 = vld [vmem:[%s5 + $0x1a0] sm:$0xff]
  %v1679 = vld [vmem:[%s5 + $0x1a8] sm:$0xff]
  %v1680 = vld [vmem:[%s5 + $0x1b0] sm:$0xff]
  %v1681 = vld [vmem:[%s5 + $0x1b8] sm:$0xff]
  %v1682 = vld [vmem:[%s5 + $0x1c0] sm:$0xff]
  %v1683 = vld [vmem:[%s5 + $0x1c8] sm:$0xff]
  %v1684 = vld [vmem:[%s5 + $0x1d0] sm:$0xff]
  %v1685 = vld [vmem:[%s5 + $0x1d8] sm:$0xff]
  %v1686 = vld [vmem:[%s5 + $0x1e0] sm:$0xff]
  %v1687 = vld [vmem:[%s5 + $0x1e8] sm:$0xff]
  %v1688 = vld [vmem:[%s5 + $0x1f0] sm:$0xff]
  %v1689 = vld [vmem:[%s5 + $0x1f8] sm:$0xff]
  %v1690 = vld [vmem:[%s5 + $0x200] sm:$0xff]
  %v1691 = vld [vmem:[%s5 + $0x208] sm:$0xff]
  %v1692 = vld [vmem:[%s5 + $0x210] sm:$0xff]
  %v1693 = vld [vmem:[%s5 + $0x218] sm:$0xff]
  %v1694 = vld [vmem:[%s5 + $0x220] sm:$0xff]
  %v1695 = vld [vmem:[%s5 + $0x228] sm:$0xff]
  %v1696 = vld [vmem:[%s5 + $0x230] sm:$0xff]
  %v1697 = vld [vmem:[%s5 + $0x238] sm:$0xff]
  %v1698 = vld [vmem:[%s5 + $0x240] sm:$0xff]
  %v1699 = vld [vmem:[%s5 + $0x248] sm:$0xff]
  %v1700 = vld [vmem:[%s5 + $0x250] sm:$0xff]
  %v1701 = vld [vmem:[%s5 + $0x258] sm:$0xff]
  %v1702 = vld [vmem:[%s5 + $0x260] sm:$0xff]
  %v1703 = vld [vmem:[%s5 + $0x268] sm:$0xff]
  %v1704 = vld [vmem:[%s5 + $0x270] sm:$0xff]
  %v1705 = vld [vmem:[%s5 + $0x278] sm:$0xff]
  %v1706 = vld [vmem:[%s5 + $0x280] sm:$0xff]
  %v1707 = vld [vmem:[%s5 + $0x288] sm:$0xff]
  %v1708 = vld [vmem:[%s5 + $0x290] sm:$0xff]
  %v1709 = vld [vmem:[%s5 + $0x298] sm:$0xff]
  %v1710 = vld [vmem:[%s5 + $0x2a0] sm:$0xff]
  %v1711 = vld [vmem:[%s5 + $0x2a8] sm:$0xff]
  %v1712 = vld [vmem:[%s5 + $0x2b0] sm:$0xff]
  %v1713 = vld [vmem:[%s5 + $0x2b8] sm:$0xff]
  %v1714 = vld [vmem:[%s5 + $0x2c0] sm:$0xff]
  %v1715 = vld [vmem:[%s5 + $0x2c8] sm:$0xff]
  %v1716 = vld [vmem:[%s5 + $0x2d0] sm:$0xff]
  %v1717 = vld [vmem:[%s5 + $0x2d8] sm:$0xff]
  %v1718 = vld [vmem:[%s5 + $0x2e0] sm:$0xff]
  %v1719 = vld [vmem:[%s5 + $0x2e8] sm:$0xff]
  %v1720 = vld [vmem:[%s5 + $0x2f0] sm:$0xff]
  %v1721 = vld [vmem:[%s5 + $0x2f8] sm:$0xff]
  %v1722 = vld [vmem:[%s5 + $0x300] sm:$0xff]
  %v1723 = vld [vmem:[%s5 + $0x308] sm:$0xff]
  %v1724 = vld [vmem:[%s5 + $0x310] sm:$0xff]
  %v1725 = vld [vmem:[%s5 + $0x318] sm:$0xff]
  %v1726 = vld [vmem:[%s5 + $0x320] sm:$0xff]
  %v1727 = vld [vmem:[%s5 + $0x328] sm:$0xff]
  %v1728 = vld [vmem:[%s5 + $0x330] sm:$0xff]
  %v1729 = vld [vmem:[%s5 + $0x338] sm:$0xff]
  %v1730 = vld [vmem:[%s5 + $0x340] sm:$0xff]
  %v1731 = vld [vmem:[%s5 + $0x348] sm:$0xff]
  %v1732 = vld [vmem:[%s5 + $0x350] sm:$0xff]
  %v1733 = vld [vmem:[%s5 + $0x358] sm:$0xff]
  %v1734 = vld [vmem:[%s5 + $0x360] sm:$0xff]
  %v1735 = vld [vmem:[%s5 + $0x368] sm:$0xff]
  %v1736 = vld [vmem:[%s5 + $0x370] sm:$0xff]
  %v1737 = vld [vmem:[%s5 + $0x378] sm:$0xff]
  %v1738 = vld [vmem:[%s5 + $0x380] sm:$0xff]
  %v1739 = vld [vmem:[%s5 + $0x388] sm:$0xff]
  %v1740 = vld [vmem:[%s5 + $0x390] sm:$0xff]
  %v1741 = vld [vmem:[%s5 + $0x398] sm:$0xff]
  %v1742 = vld [vmem:[%s5 + $0x3a0] sm:$0xff]
  %v1743 = vld [vmem:[%s5 + $0x3a8] sm:$0xff]
  %v1744 = vld [vmem:[%s5 + $0x3b0] sm:$0xff]
  %v1745 = vld [vmem:[%s5 + $0x3b8] sm:$0xff]
  %v1746 = vld [vmem:[%s5 + $0x3c0] sm:$0xff]
  %v1747 = vld [vmem:[%s5 + $0x3c8] sm:$0xff]
  %v1748 = vld [vmem:[%s5 + $0x3d0] sm:$0xff]
  %v1749 = vld [vmem:[%s5 + $0x3d8] sm:$0xff]
  %v1750 = vld [vmem:[%s5 + $0x3e0] sm:$0xff]
  %v1751 = vld [vmem:[%s5 + $0x3e8] sm:$0xff]
  %v1752 = vld [vmem:[%s5 + $0x3f0] sm:$0xff]
  %v1753 = vld [vmem:[%s5 + $0x3f8] sm:$0xff]
  %v1754 = vld [vmem:[%s5 + $0x400] sm:$0xff]
  %v1755 = vld [vmem:[%s5 + $0x408] sm:$0xff]
  %v1756 = vld [vmem:[%s5 + $0x410] sm:$0xff]
  %v1757 = vld [vmem:[%s5 + $0x418] sm:$0xff]
  %v1758 = vld [vmem:[%s5 + $0x420] sm:$0xff]
  %v1759 = vld [vmem:[%s5 + $0x428] sm:$0xff]
  %v1760 = vld [vmem:[%s5 + $0x430] sm:$0xff]
  %v1761 = vld [vmem:[%s5 + $0x438] sm:$0xff]
  %v1762 = vld [vmem:[%s5 + $0x440] sm:$0xff]
  %v1763 = vld [vmem:[%s5 + $0x448] sm:$0xff]
  %v1764 = vld [vmem:[%s5 + $0x450] sm:$0xff]
  %v1765 = vld [vmem:[%s5 + $0x458] sm:$0xff]
  %v1766 = vld [vmem:[%s5 + $0x460] sm:$0xff]
  %v1767 = vld [vmem:[%s5 + $0x468] sm:$0xff]
  %v1768 = vld [vmem:[%s5 + $0x470] sm:$0xff]
  %v1769 = vld [vmem:[%s5 + $0x478] sm:$0xff]
  %v1770 = vld [vmem:[%s5 + $0x480] sm:$0xff]
  %v1771 = vld [vmem:[%s5 + $0x488] sm:$0xff]
  %v1772 = vld [vmem:[%s5 + $0x490] sm:$0xff]
  %v1773 = vld [vmem:[%s5 + $0x498] sm:$0xff]
  %v1774 = vld [vmem:[%s5 + $0x4a0] sm:$0xff]
  %v1775 = vld [vmem:[%s5 + $0x4a8] sm:$0xff]
  %v1776 = vld [vmem:[%s5 + $0x4b0] sm:$0xff]
  %v1777 = vld [vmem:[%s5 + $0x4b8] sm:$0xff]
  %v1778 = vld [vmem:[%s5 + $0x4c0] sm:$0xff]
  %v1779 = vld [vmem:[%s5 + $0x4c8] sm:$0xff]
  %v1780 = vld [vmem:[%s5 + $0x4d0] sm:$0xff]
  %v1781 = vld [vmem:[%s5 + $0x4d8] sm:$0xff]
  %v1782 = vld [vmem:[%s5 + $0x4e0] sm:$0xff]
  %v1783 = vld [vmem:[%s5 + $0x4e8] sm:$0xff]
  %v1784 = vld [vmem:[%s5 + $0x4f0] sm:$0xff]
  %v1785 = vld [vmem:[%s5 + $0x4f8] sm:$0xff]
  %v1786 = vld [vmem:[%s5 + $0x500] sm:$0xff]
  %v1787 = vld [vmem:[%s5 + $0x508] sm:$0xff]
  %v1788 = vld [vmem:[%s5 + $0x510] sm:$0xff]
  %v1789 = vld [vmem:[%s5 + $0x518] sm:$0xff]
  %v1790 = vld [vmem:[%s5 + $0x520] sm:$0xff]
  %v1791 = vld [vmem:[%s5 + $0x528] sm:$0xff]
  %v1792 = vld [vmem:[%s5 + $0x530] sm:$0xff]
  %v1793 = vld [vmem:[%s5 + $0x538] sm:$0xff]
  %v1794 = vld [vmem:[%s5 + $0x540] sm:$0xff]
  %v1795 = vld [vmem:[%s5 + $0x548] sm:$0xff]
  %v1796 = vld [vmem:[%s5 + $0x550] sm:$0xff]
  %v1797 = vld [vmem:[%s5 + $0x558] sm:$0xff]
  %v1798 = vld [vmem:[%s5 + $0x560] sm:$0xff]
  %v1799 = vld [vmem:[%s5 + $0x568] sm:$0xff]
  %v1800 = vld [vmem:[%s5 + $0x570] sm:$0xff]
  %v1801 = vld [vmem:[%s5 + $0x578] sm:$0xff]
  %v1802 = vld [vmem:[%s5 + $0x580] sm:$0xff]
  %v1803 = vld [vmem:[%s5 + $0x588] sm:$0xff]
  %v1804 = vld [vmem:[%s5 + $0x590] sm:$0xff]
  %v1805 = vld [vmem:[%s5 + $0x598] sm:$0xff]
  %v1806 = vld [vmem:[%s5 + $0x5a0] sm:$0xff]
  %v1807 = vld [vmem:[%s5 + $0x5a8] sm:$0xff]
  %v1808 = vld [vmem:[%s5 + $0x5b0] sm:$0xff]
  %v1809 = vld [vmem:[%s5 + $0x5b8] sm:$0xff]
  %v1810 = vld [vmem:[%s5 + $0x5c0] sm:$0xff]
  %v1811 = vld [vmem:[%s5 + $0x5c8] sm:$0xff]
  %v1812 = vld [vmem:[%s5 + $0x5d0] sm:$0xff]
  %v1813 = vld [vmem:[%s5 + $0x5d8] sm:$0xff]
  %v1814 = vld [vmem:[%s5 + $0x5e0] sm:$0xff]
  %v1815 = vld [vmem:[%s5 + $0x5e8] sm:$0xff]
  %v1816 = vld [vmem:[%s5 + $0x5f0] sm:$0xff]
  %v1817 = vld [vmem:[%s5 + $0x5f8] sm:$0xff]
  %v1818 = vld [vmem:[%s5 + $0x600] sm:$0xff]
  %v1819 = vld [vmem:[%s5 + $0x608] sm:$0xff]
  %v1820 = vld [vmem:[%s5 + $0x610] sm:$0xff]
  %v1821 = vld [vmem:[%s5 + $0x618] sm:$0xff]
  %v1822 = vld [vmem:[%s5 + $0x620] sm:$0xff]
  %v1823 = vld [vmem:[%s5 + $0x628] sm:$0xff]
  %v1824 = vld [vmem:[%s5 + $0x630] sm:$0xff]
  %v1825 = vld [vmem:[%s5 + $0x638] sm:$0xff]
  %v1826 = vld [vmem:[%s5 + $0x640] sm:$0xff]
  %v1827 = vld [vmem:[%s5 + $0x648] sm:$0xff]
  %v1828 = vld [vmem:[%s5 + $0x650] sm:$0xff]
  %v1829 = vld [vmem:[%s5 + $0x658] sm:$0xff]
  %v1830 = vld [vmem:[%s5 + $0x660] sm:$0xff]
  %v1831 = vld [vmem:[%s5 + $0x668] sm:$0xff]
  %v1832 = vld [vmem:[%s5 + $0x670] sm:$0xff]
  %v1833 = vld [vmem:[%s5 + $0x678] sm:$0xff]
  %v1834 = vld [vmem:[%s5 + $0x680] sm:$0xff]
  %v1835 = vld [vmem:[%s5 + $0x688] sm:$0xff]
  %v1836 = vld [vmem:[%s5 + $0x690] sm:$0xff]
  %v1837 = vld [vmem:[%s5 + $0x698] sm:$0xff]
  %v1838 = vld [vmem:[%s5 + $0x6a0] sm:$0xff]
  %v1839 = vld [vmem:[%s5 + $0x6a8] sm:$0xff]
  %v1840 = vld [vmem:[%s5 + $0x6b0] sm:$0xff]
  %v1841 = vld [vmem:[%s5 + $0x6b8] sm:$0xff]
  %v1842 = vld [vmem:[%s5 + $0x6c0] sm:$0xff]
  %v1843 = vld [vmem:[%s5 + $0x6c8] sm:$0xff]
  %v1844 = vld [vmem:[%s5 + $0x6d0] sm:$0xff]
  %v1845 = vld [vmem:[%s5 + $0x6d8] sm:$0xff]
  %v1846 = vld [vmem:[%s5 + $0x6e0] sm:$0xff]
  %v1847 = vld [vmem:[%s5 + $0x6e8] sm:$0xff]
  %v1848 = vld [vmem:[%s5 + $0x6f0] sm:$0xff]
  %v1849 = vld [vmem:[%s5 + $0x6f8] sm:$0xff]
  %v1850 = vld [vmem:[%s5 + $0x700] sm:$0xff]
  %v1851 = vld [vmem:[%s5 + $0x708] sm:$0xff]
  %v1852 = vld [vmem:[%s5 + $0x710] sm:$0xff]
  %v1853 = vld [vmem:[%s5 + $0x718] sm:$0xff]
  %v1854 = vld [vmem:[%s5 + $0x720] sm:$0xff]
  %v1855 = vld [vmem:[%s5 + $0x728] sm:$0xff]
  %v1856 = vld [vmem:[%s5 + $0x730] sm:$0xff]
  %v1857 = vld [vmem:[%s5 + $0x738] sm:$0xff]
  %v1858 = vld [vmem:[%s5 + $0x740] sm:$0xff]
  %v1859 = vld [vmem:[%s5 + $0x748] sm:$0xff]
  %v1860 = vld [vmem:[%s5 + $0x750] sm:$0xff]
  %v1861 = vld [vmem:[%s5 + $0x758] sm:$0xff]
  %v1862 = vld [vmem:[%s5 + $0x760] sm:$0xff]
  %v1863 = vld [vmem:[%s5 + $0x768] sm:$0xff]
  %v1864 = vld [vmem:[%s5 + $0x770] sm:$0xff]
  %v1865 = vld [vmem:[%s5 + $0x778] sm:$0xff]
  %v1866 = vld [vmem:[%s6] sm:$0x7]
  %v1868 = vlaneseq
  %v1869 = vshrl.u32 %v1868, 7
  %v1870 = vsub.s32 0, %v1869
  %v1871 = vrot.slane %v1866, %v1870
  %v1872 = vlaneseq
  %v1873 = vshrl.u32 %v1872, 7
  %v1874 = vsub.s32 1, %v1873
  %v1875 = vrot.slane %v1866, %v1874
  %v1876 = vlaneseq
  %v1877 = vshrl.u32 %v1876, 7
  %v1878 = vsub.s32 2, %v1877
  %v1879 = vrot.slane %v1866, %v1878
  %1883 = vmatprep.subr.mxu0 %v1627
  %1884 = vmatpush1.msra.mxu0 %v1626
  %1885 = vmatprep.subr.mxu0 %v1630
  %1886 = vmatpush1.msra.mxu0 %v1629
  %1887 = vmatprep.subr.mxu0 %v1633
  %1888 = vmatpush1.msra.mxu0 %v1632
  %1889 = vmatprep.subr.mxu0 %v1636
  %1890 = vmatpush1.msra.mxu0 %v1635
  %1891 = vmatprep.subr.mxu0 %v1639
  %1892 = vmatpush1.msra.mxu0 %v1638
  %1893 = vmatprep.subr.mxu0 %v1642
  %1894 = vmatpush1.msra.mxu0 %v1641
  %1895 = vmatprep.subr.mxu0 %v1645
  %1896 = vmatpush1.msra.mxu0 %v1644
  %1897 = vmatprep.subr.mxu0 %v1648
  %1898 = vmatpush1.msra.mxu0 %v1647
  %1899 = vmatprep.subr.mxu0 %v1651
  %1900 = vmatpush1.msra.mxu0 %v1650
  %1901 = vmatprep.subr.mxu0 %v1654
  %1902 = vmatpush1.msra.mxu0 %v1653
  %1903 = vmatprep.subr.mxu0 %v1657
  %1904 = vmatpush1.msra.mxu0 %v1656
  %1905 = vmatprep.subr.mxu0 %v1660
  %1906 = vmatpush1.msra.mxu0 %v1659
  %1907 = vmatprep.subr.mxu0 %v1663
  %1908 = vmatpush1.msra.mxu0 %v1662
  %1909 = vmatprep.subr.mxu0 %v1666
  %1910 = vmatpush1.msra.mxu0 %v1665
  %1911 = vmatprep.subr.mxu0 %v1669
  %1912 = vmatpush1.msra.mxu0 %v1668
  %1913 = vmatprep.subr.mxu0 %v1672
  %1914 = vmatpush1.msra.mxu0 %v1671
  %1915 = vmatprep.subr.mxu0 %v1675
  %1916 = vmatpush1.msra.mxu0 %v1674
  %1917 = vmatprep.subr.mxu0 %v1678
  %1918 = vmatpush1.msra.mxu0 %v1677
  %1919 = vmatprep.subr.mxu0 %v1681
  %1920 = vmatpush1.msra.mxu0 %v1680
  %1921 = vmatprep.subr.mxu0 %v1684
  %1922 = vmatpush1.msra.mxu0 %v1683
  %1923 = vmatprep.subr.mxu0 %v1687
  %1924 = vmatpush1.msra.mxu0 %v1686
  %1925 = vmatprep.subr.mxu0 %v1690
  %1926 = vmatpush1.msra.mxu0 %v1689
  %1927 = vmatprep.subr.mxu0 %v1693
  %1928 = vmatpush1.msra.mxu0 %v1692
  %1929 = vmatprep.subr.mxu0 %v1696
  %1930 = vmatpush1.msra.mxu0 %v1695
  %1931 = vmatprep.subr.mxu0 %v1699
  %1932 = vmatpush1.msra.mxu0 %v1698
  %1933 = vmatprep.subr.mxu0 %v1702
  %1934 = vmatpush1.msra.mxu0 %v1701
  %1935 = vmatprep.subr.mxu0 %v1705
  %1936 = vmatpush1.msra.mxu0 %v1704
  %1937 = vmatprep.subr.mxu0 %v1708
  %1938 = vmatpush1.msra.mxu0 %v1707
  %1939 = vmatprep.subr.mxu0 %v1711
  %1940 = vmatpush1.msra.mxu0 %v1710
  %1941 = vmatprep.subr.mxu0 %v1714
  %1942 = vmatpush1.msra.mxu0 %v1713
  %1943 = vmatprep.subr.mxu0 %v1717
  %1944 = vmatpush1.msra.mxu0 %v1716
  %1945 = vmatprep.subr.mxu0 %v1720
  %1946 = vmatpush1.msra.mxu0 %v1719
  %1947 = vmatprep.mubr.f32.mxu0 %v1604
  %1948 = vmatmul.mubr.f32.gmra.mrb[0].mxu0 %v1601
  %v1949 = vpop.f32.mrb[0].mxu0
  %v1950 = vadd.f32 %v1871, %v1949
  %v1951 = vpop.f32.mrb[0].mxu0
  %v1952 = vadd.f32 %v1875, %v1951
  %1953 = vdwg.mxu0
  %1954 = vmatprep.subr.mxu0 %v1723
  %1955 = vmatpush1.msra.mxu0 %v1722
  %1956 = vmatprep.subr.mxu0 %v1726
  %1957 = vmatpush1.msra.mxu0 %v1725
  %1958 = vmatprep.subr.mxu0 %v1729
  %1959 = vmatpush1.msra.mxu0 %v1728
  %1960 = vmatprep.subr.mxu0 %v1732
  %1961 = vmatpush1.msra.mxu0 %v1731
  %1962 = vmatprep.subr.mxu0 %v1735
  %1963 = vmatpush1.msra.mxu0 %v1734
  %1964 = vmatprep.subr.mxu0 %v1738
  %1965 = vmatpush1.msra.mxu0 %v1737
  %1966 = vmatprep.subr.mxu0 %v1741
  %1967 = vmatpush1.msra.mxu0 %v1740
  %1968 = vmatprep.subr.mxu0 %v1744
  %1969 = vmatpush1.msra.mxu0 %v1743
  %1970 = vmatprep.subr.mxu0 %v1747
  %1971 = vmatpush1.msra.mxu0 %v1746
  %1972 = vmatprep.subr.mxu0 %v1750
  %1973 = vmatpush1.msra.mxu0 %v1749
  %1974 = vmatprep.subr.mxu0 %v1753
  %1975 = vmatpush1.msra.mxu0 %v1752
  %1976 = vmatprep.subr.mxu0 %v1756
  %1977 = vmatpush1.msra.mxu0 %v1755
  %1978 = vmatprep.subr.mxu0 %v1759
  %1979 = vmatpush1.msra.mxu0 %v1758
  %1980 = vmatprep.subr.mxu0 %v1762
  %1981 = vmatpush1.msra.mxu0 %v1761
  %1982 = vmatprep.subr.mxu0 %v1765
  %1983 = vmatpush1.msra.mxu0 %v1764
  %1984 = vmatprep.subr.mxu0 %v1768
  %1985 = vmatpush1.msra.mxu0 %v1767
  %1986 = vmatprep.subr.mxu0 %v1771
  %1987 = vmatpush1.msra.mxu0 %v1770
  %1988 = vmatprep.subr.mxu0 %v1774
  %1989 = vmatpush1.msra.mxu0 %v1773
  %1990 = vmatprep.subr.mxu0 %v1777
  %1991 = vmatpush1.msra.mxu0 %v1776
  %1992 = vmatprep.subr.mxu0 %v1780
  %1993 = vmatpush1.msra.mxu0 %v1779
  %1994 = vmatprep.subr.mxu0 %v1783
  %1995 = vmatpush1.msra.mxu0 %v1782
  %1996 = vmatprep.subr.mxu0 %v1786
  %1997 = vmatpush1.msra.mxu0 %v1785
  %1998 = vmatprep.subr.mxu0 %v1789
  %1999 = vmatpush1.msra.mxu0 %v1788
  %2000 = vmatprep.subr.mxu0 %v1792
  %2001 = vmatpush1.msra.mxu0 %v1791
  %2002 = vmatprep.subr.mxu0 %v1795
  %2003 = vmatpush1.msra.mxu0 %v1794
  %2004 = vmatprep.subr.mxu0 %v1798
  %2005 = vmatpush1.msra.mxu0 %v1797
  %2006 = vmatprep.subr.mxu0 %v1801
  %2007 = vmatpush1.msra.mxu0 %v1800
  %2008 = vmatprep.subr.mxu0 %v1804
  %2009 = vmatpush1.msra.mxu0 %v1803
  %2010 = vmatprep.subr.mxu0 %v1807
  %2011 = vmatpush1.msra.mxu0 %v1806
  %2012 = vmatprep.subr.mxu0 %v1810
  %2013 = vmatpush1.msra.mxu0 %v1809
  %2014 = vmatprep.subr.mxu0 %v1813
  %2015 = vmatpush1.msra.mxu0 %v1812
  %2016 = vmatprep.subr.mxu0 %v1816
  %2017 = vmatpush1.msra.mxu0 %v1815
  %2018 = vmatprep.mubr.f32.mxu0 %v1610
  %2019 = vmatmul.mubr.f32.gmra.mrb[0].mxu0 %v1607
  %v2020 = vpop.f32.mrb[0].mxu0
  %v2021 = vadd.f32 %v1950, %v2020
  %v2022 = vpop.f32.mrb[0].mxu0
  %v2023 = vadd.f32 %v1952, %v2022
  %2024 = vdwg.mxu0
  %2025 = vmatprep.subr.mxu0 %v1819
  %2026 = vmatpush1.msra.mxu0 %v1818
  %2027 = vmatprep.subr.mxu0 %v1822
  %2028 = vmatpush1.msra.mxu0 %v1821
  %2029 = vmatprep.subr.mxu0 %v1825
  %2030 = vmatpush1.msra.mxu0 %v1824
  %2031 = vmatprep.subr.mxu0 %v1828
  %2032 = vmatpush1.msra.mxu0 %v1827
  %2033 = vmatprep.subr.mxu0 %v1831
  %2034 = vmatpush1.msra.mxu0 %v1830
  %2035 = vmatprep.subr.mxu0 %v1834
  %2036 = vmatpush1.msra.mxu0 %v1833
  %2037 = vmatprep.subr.mxu0 %v1837
  %2038 = vmatpush1.msra.mxu0 %v1836
  %2039 = vmatprep.subr.mxu0 %v1840
  %2040 = vmatpush1.msra.mxu0 %v1839
  %2041 = vmatprep.subr.mxu0 %v1843
  %2042 = vmatpush1.msra.mxu0 %v1842
  %2043 = vmatprep.subr.mxu0 %v1846
  %2044 = vmatpush1.msra.mxu0 %v1845
  %2045 = vmatprep.subr.mxu0 %v1849
  %2046 = vmatpush1.msra.mxu0 %v1848
  %2047 = vmatprep.subr.mxu0 %v1852
  %2048 = vmatpush1.msra.mxu0 %v1851
  %2049 = vmatprep.subr.mxu0 %v1855
  %2050 = vmatpush1.msra.mxu0 %v1854
  %2051 = vmatprep.subr.mxu0 %v1858
  %2052 = vmatpush1.msra.mxu0 %v1857
  %2053 = vmatprep.subr.mxu0 %v1861
  %2054 = vmatpush1.msra.mxu0 %v1860
  %2055 = vmatprep.subr.mxu0 %v1864
  %2056 = vmatpush1.msra.mxu0 %v1863
  %2057 = vmatprep.subr.mxu0 0.0
  %2058 = vmatpush1.msra.mxu0 0.0
  %2059 = vmatprep.subr.mxu0 0.0
  %2060 = vmatpush1.msra.mxu0 0.0
  %2061 = vmatprep.subr.mxu0 0.0
  %2062 = vmatpush1.msra.mxu0 0.0
  %2063 = vmatprep.subr.mxu0 0.0
  %2064 = vmatpush1.msra.mxu0 0.0
  %2065 = vmatprep.subr.mxu0 0.0
  %2066 = vmatpush1.msra.mxu0 0.0
  %2067 = vmatprep.subr.mxu0 0.0
  %2068 = vmatpush1.msra.mxu0 0.0
  %2069 = vmatprep.subr.mxu0 0.0
  %2070 = vmatpush1.msra.mxu0 0.0
  %2071 = vmatprep.subr.mxu0 0.0
  %2072 = vmatpush1.msra.mxu0 0.0
  %2073 = vmatprep.subr.mxu0 0.0
  %2074 = vmatpush1.msra.mxu0 0.0
  %2075 = vmatprep.subr.mxu0 0.0
  %2076 = vmatpush1.msra.mxu0 0.0
  %2077 = vmatprep.subr.mxu0 0.0
  %2078 = vmatpush1.msra.mxu0 0.0
  %2079 = vmatprep.subr.mxu0 0.0
  %2080 = vmatpush1.msra.mxu0 0.0
  %2081 = vmatprep.subr.mxu0 0.0
  %2082 = vmatpush1.msra.mxu0 0.0
  %2083 = vmatprep.subr.mxu0 0.0
  %2084 = vmatpush1.msra.mxu0 0.0
  %2085 = vmatprep.subr.mxu0 0.0
  %2086 = vmatpush1.msra.mxu0 0.0
  %2087 = vmatprep.subr.mxu0 0.0
  %2088 = vmatpush1.msra.mxu0 0.0
  %2089 = vmatprep.mubr.f32.mxu0 0.0
  %2090 = vmatmul.mubr.f32.gmra.mrb[0].mxu0 %v1625
  %v2091 = vpop.f32.mrb[0].mxu0
  %v2092 = vadd.f32 %v2021, %v2091
  %v2093 = vpop.f32.mrb[0].mxu0
  %v2094 = vadd.f32 %v2023, %v2093
  %2095 = vdwg.mxu0
  %2096 = vmatprep.subr.mxu0 0.0
  %2097 = vmatpush1.msra.mxu0 %v1628
  %2098 = vmatprep.subr.mxu0 0.0
  %2099 = vmatpush1.msra.mxu0 %v1631
  %2100 = vmatprep.subr.mxu0 0.0
  %2101 = vmatpush1.msra.mxu0 %v1634
  %2102 = vmatprep.subr.mxu0 0.0
  %2103 = vmatpush1.msra.mxu0 %v1637
  %2104 = vmatprep.subr.mxu0 0.0
  %2105 = vmatpush1.msra.mxu0 %v1640
  %2106 = vmatprep.subr.mxu0 0.0
  %2107 = vmatpush1.msra.mxu0 %v1643
  %2108 = vmatprep.subr.mxu0 0.0
  %2109 = vmatpush1.msra.mxu0 %v1646
  %2110 = vmatprep.subr.mxu0 0.0
  %2111 = vmatpush1.msra.mxu0 %v1649
  %2112 = vmatprep.subr.mxu0 0.0
  %2113 = vmatpush1.msra.mxu0 %v1652
  %2114 = vmatprep.subr.mxu0 0.0
  %2115 = vmatpush1.msra.mxu0 %v1655
  %2116 = vmatprep.subr.mxu0 0.0
  %2117 = vmatpush1.msra.mxu0 %v1658
  %2118 = vmatprep.subr.mxu0 0.0
  %2119 = vmatpush1.msra.mxu0 %v1661
  %2120 = vmatprep.subr.mxu0 0.0
  %2121 = vmatpush1.msra.mxu0 %v1664
  %2122 = vmatprep.subr.mxu0 0.0
  %2123 = vmatpush1.msra.mxu0 %v1667
  %2124 = vmatprep.subr.mxu0 0.0
  %2125 = vmatpush1.msra.mxu0 %v1670
  %2126 = vmatprep.subr.mxu0 0.0
  %2127 = vmatpush1.msra.mxu0 %v1673
  %2128 = vmatprep.subr.mxu0 0.0
  %2129 = vmatpush1.msra.mxu0 %v1676
  %2130 = vmatprep.subr.mxu0 0.0
  %2131 = vmatpush1.msra.mxu0 %v1679
  %2132 = vmatprep.subr.mxu0 0.0
  %2133 = vmatpush1.msra.mxu0 %v1682
  %2134 = vmatprep.subr.mxu0 0.0
  %2135 = vmatpush1.msra.mxu0 %v1685
  %2136 = vmatprep.subr.mxu0 0.0
  %2137 = vmatpush1.msra.mxu0 %v1688
  %2138 = vmatprep.subr.mxu0 0.0
  %2139 = vmatpush1.msra.mxu0 %v1691
  %2140 = vmatprep.subr.mxu0 0.0
  %2141 = vmatpush1.msra.mxu0 %v1694
  %2142 = vmatprep.subr.mxu0 0.0
  %2143 = vmatpush1.msra.mxu0 %v1697
  %2144 = vmatprep.subr.mxu0 0.0
  %2145 = vmatpush1.msra.mxu0 %v1700
  %2146 = vmatprep.subr.mxu0 0.0
  %2147 = vmatpush1.msra.mxu0 %v1703
  %2148 = vmatprep.subr.mxu0 0.0
  %2149 = vmatpush1.msra.mxu0 %v1706
  %2150 = vmatprep.subr.mxu0 0.0
  %2151 = vmatpush1.msra.mxu0 %v1709
  %2152 = vmatprep.subr.mxu0 0.0
  %2153 = vmatpush1.msra.mxu0 %v1712
  %2154 = vmatprep.subr.mxu0 0.0
  %2155 = vmatpush1.msra.mxu0 %v1715
  %2156 = vmatprep.subr.mxu0 0.0
  %2157 = vmatpush1.msra.mxu0 %v1718
  %2158 = vmatprep.subr.mxu0 0.0
  %2159 = vmatpush1.msra.mxu0 %v1721
  %2160 = vmatprep.mubr.f32.mxu0 %v1604
  %2161 = vmatmul.mubr.f32.gmra.mrb[0].mxu0 %v1601
  %v2162 = vpop.f32.mrb[0].mxu0
  %v2163 = vadd.f32 %v1879, %v2162
  %v2164 = vpop.f32.mrb[0].mxu0
  %2165 = vdwg.mxu0
  %2166 = vmatprep.subr.mxu0 0.0
  %2167 = vmatpush1.msra.mxu0 %v1724
  %2168 = vmatprep.subr.mxu0 0.0
  %2169 = vmatpush1.msra.mxu0 %v1727
  %2170 = vmatprep.subr.mxu0 0.0
  %2171 = vmatpush1.msra.mxu0 %v1730
  %2172 = vmatprep.subr.mxu0 0.0
  %2173 = vmatpush1.msra.mxu0 %v1733
  %2174 = vmatprep.subr.mxu0 0.0
  %2175 = vmatpush1.msra.mxu0 %v1736
  %2176 = vmatprep.subr.mxu0 0.0
  %2177 = vmatpush1.msra.mxu0 %v1739
  %2178 = vmatprep.subr.mxu0 0.0
  %2179 = vmatpush1.msra.mxu0 %v1742
  %2180 = vmatprep.subr.mxu0 0.0
  %2181 = vmatpush1.msra.mxu0 %v1745
  %2182 = vmatprep.subr.mxu0 0.0
  %2183 = vmatpush1.msra.mxu0 %v1748
  %2184 = vmatprep.subr.mxu0 0.0
  %2185 = vmatpush1.msra.mxu0 %v1751
  %2186 = vmatprep.subr.mxu0 0.0
  %2187 = vmatpush1.msra.mxu0 %v1754
  %2188 = vmatprep.subr.mxu0 0.0
  %2189 = vmatpush1.msra.mxu0 %v1757
  %2190 = vmatprep.subr.mxu0 0.0
  %2191 = vmatpush1.msra.mxu0 %v1760
  %2192 = vmatprep.subr.mxu0 0.0
  %2193 = vmatpush1.msra.mxu0 %v1763
  %2194 = vmatprep.subr.mxu0 0.0
  %2195 = vmatpush1.msra.mxu0 %v1766
  %2196 = vmatprep.subr.mxu0 0.0
  %2197 = vmatpush1.msra.mxu0 %v1769
  %2198 = vmatprep.subr.mxu0 0.0
  %2199 = vmatpush1.msra.mxu0 %v1772
  %2200 = vmatprep.subr.mxu0 0.0
  %2201 = vmatpush1.msra.mxu0 %v1775
  %2202 = vmatprep.subr.mxu0 0.0
  %2203 = vmatpush1.msra.mxu0 %v1778
  %2204 = vmatprep.subr.mxu0 0.0
  %2205 = vmatpush1.msra.mxu0 %v1781
  %2206 = vmatprep.subr.mxu0 0.0
  %2207 = vmatpush1.msra.mxu0 %v1784
  %2208 = vmatprep.subr.mxu0 0.0
  %2209 = vmatpush1.msra.mxu0 %v1787
  %2210 = vmatprep.subr.mxu0 0.0
  %2211 = vmatpush1.msra.mxu0 %v1790
  %2212 = vmatprep.subr.mxu0 0.0
  %2213 = vmatpush1.msra.mxu0 %v1793
  %2214 = vmatprep.subr.mxu0 0.0
  %2215 = vmatpush1.msra.mxu0 %v1796
  %2216 = vmatprep.subr.mxu0 0.0
  %2217 = vmatpush1.msra.mxu0 %v1799
  %2218 = vmatprep.subr.mxu0 0.0
  %2219 = vmatpush1.msra.mxu0 %v1802
  %2220 = vmatprep.subr.mxu0 0.0
  %2221 = vmatpush1.msra.mxu0 %v1805
  %2222 = vmatprep.subr.mxu0 0.0
  %2223 = vmatpush1.msra.mxu0 %v1808
  %2224 = vmatprep.subr.mxu0 0.0
  %2225 = vmatpush1.msra.mxu0 %v1811
  %2226 = vmatprep.subr.mxu0 0.0
  %2227 = vmatpush1.msra.mxu0 %v1814
  %2228 = vmatprep.subr.mxu0 0.0
  %2229 = vmatpush1.msra.mxu0 %v1817
  %2230 = vmatprep.mubr.f32.mxu0 %v1610
  %2231 = vmatmul.mubr.f32.gmra.mrb[0].mxu0 %v1607
  %v2232 = vpop.f32.mrb[0].mxu0
  %v2233 = vadd.f32 %v2163, %v2232
  %v2234 = vpop.f32.mrb[0].mxu0
  %2235 = vdwg.mxu0
  %2236 = vmatprep.subr.mxu0 0.0
  %2237 = vmatpush1.msra.mxu0 %v1820
  %2238 = vmatprep.subr.mxu0 0.0
  %2239 = vmatpush1.msra.mxu0 %v1823
  %2240 = vmatprep.subr.mxu0 0.0
  %2241 = vmatpush1.msra.mxu0 %v1826
  %2242 = vmatprep.subr.mxu0 0.0
  %2243 = vmatpush1.msra.mxu0 %v1829
  %2244 = vmatprep.subr.mxu0 0.0
  %2245 = vmatpush1.msra.mxu0 %v1832
  %2246 = vmatprep.subr.mxu0 0.0
  %2247 = vmatpush1.msra.mxu0 %v1835
  %2248 = vmatprep.subr.mxu0 0.0
  %2249 = vmatpush1.msra.mxu0 %v1838
  %2250 = vmatprep.subr.mxu0 0.0
  %2251 = vmatpush1.msra.mxu0 %v1841
  %2252 = vmatprep.subr.mxu0 0.0
  %2253 = vmatpush1.msra.mxu0 %v1844
  %2254 = vmatprep.subr.mxu0 0.0
  %2255 = vmatpush1.msra.mxu0 %v1847
  %2256 = vmatprep.subr.mxu0 0.0
  %2257 = vmatpush1.msra.mxu0 %v1850
  %2258 = vmatprep.subr.mxu0 0.0
  %2259 = vmatpush1.msra.mxu0 %v1853
  %2260 = vmatprep.subr.mxu0 0.0
  %2261 = vmatpush1.msra.mxu0 %v1856
  %2262 = vmatprep.subr.mxu0 0.0
  %2263 = vmatpush1.msra.mxu0 %v1859
  %2264 = vmatprep.subr.mxu0 0.0
  %2265 = vmatpush1.msra.mxu0 %v1862
  %2266 = vmatprep.subr.mxu0 0.0
  %2267 = vmatpush1.msra.mxu0 %v1865
  %2268 = vmatprep.subr.mxu0 0.0
  %2269 = vmatpush1.msra.mxu0 0.0
  %2270 = vmatprep.subr.mxu0 0.0
  %2271 = vmatpush1.msra.mxu0 0.0
  %2272 = vmatprep.subr.mxu0 0.0
  %2273 = vmatpush1.msra.mxu0 0.0
  %2274 = vmatprep.subr.mxu0 0.0
  %2275 = vmatpush1.msra.mxu0 0.0
  %2276 = vmatprep.subr.mxu0 0.0
  %2277 = vmatpush1.msra.mxu0 0.0
  %2278 = vmatprep.subr.mxu0 0.0
  %2279 = vmatpush1.msra.mxu0 0.0
  %2280 = vmatprep.subr.mxu0 0.0
  %2281 = vmatpush1.msra.mxu0 0.0
  %2282 = vmatprep.subr.mxu0 0.0
  %2283 = vmatpush1.msra.mxu0 0.0
  %2284 = vmatprep.subr.mxu0 0.0
  %2285 = vmatpush1.msra.mxu0 0.0
  %2286 = vmatprep.subr.mxu0 0.0
  %2287 = vmatpush1.msra.mxu0 0.0
  %2288 = vmatprep.subr.mxu0 0.0
  %2289 = vmatpush1.msra.mxu0 0.0
  %2290 = vmatprep.subr.mxu0 0.0
  %2291 = vmatpush1.msra.mxu0 0.0
  %2292 = vmatprep.subr.mxu0 0.0
  %2293 = vmatpush1.msra.mxu0 0.0
  %2294 = vmatprep.subr.mxu0 0.0
  %2295 = vmatpush1.msra.mxu0 0.0
  %2296 = vmatprep.subr.mxu0 0.0
  %2297 = vmatpush1.msra.mxu0 0.0
  %2298 = vmatprep.subr.mxu0 0.0
  %2299 = vmatpush1.msra.mxu0 0.0
  %2300 = vmatprep.mubr.f32.mxu0 0.0
  %2301 = vmatmul.mubr.f32.gmra.mrb[0].mxu0 %v1625
  %v2302 = vpop.f32.mrb[0].mxu0
  %v2303 = vadd.f32 %v2233, %v2302
  %v2304 = vpop.f32.mrb[0].mxu0
  %2305 = vdwg.mxu0
  %v2306 = vmax.f32 %v2092, 0.0
  %v2307 = vmax.f32 %v2094, 0.0
  %v2308 = vmax.f32 %v2303, 0.0
  %v2309 = vld [vmem:[%s7] sm:$0x1]
  %v2310 = vld [vmem:[%s8] sm:$0x1]
  %v2311 = vsel %vm731, %v2306, 0.0
  %v2312 = vrot.slane %v2311, 4
  %v2313 = vadd.f32 %v2311, %v2312
  %v2314 = vrot.slane %v2313, 2
  %v2315 = vadd.f32 %v2313, %v2314
  %v2316 = vrot.slane %v2315, 1
  %v2317 = vadd.f32 %v2315, %v2316
  %v2318 = vsel %vm731, %v2307, 0.0
  %v2319 = vrot.slane %v2318, 4
  %v2320 = vadd.f32 %v2318, %v2319
  %v2321 = vrot.slane %v2320, 2
  %v2322 = vadd.f32 %v2320, %v2321
  %v2323 = vrot.slane %v2322, 1
  %v2324 = vadd.f32 %v2322, %v2323
  %v2325 = vsel %vm802, %v2308, 0.0
  %v2326 = vrot.slane %v2325, 4
  %v2327 = vadd.f32 %v2325, %v2326
  %v2328 = vrot.slane %v2327, 2
  %v2329 = vadd.f32 %v2327, %v2328
  %v2330 = vrot.slane %v2329, 1
  %v2331 = vadd.f32 %v2329, %v2330
  %v2332 = vadd.f32 %v2317, 0.0
  %2334 = vrot.lane.b32.xlu0 %v2317, 96
  %v2335 = vpop.permute.xlu0 %2334
  %v2337 = vadd.f32 %v2332, %v2335
  %2338 = vrot.lane.b32.xlu0 %v2317, 64
  %v2339 = vpop.permute.xlu0 %2338
  %v2341 = vadd.f32 %v2337, %v2339
  %2342 = vrot.lane.b32.xlu0 %v2317, 32
  %v2343 = vpop.permute.xlu0 %2342
  %v2345 = vadd.f32 %v2341, %v2343
  %v2346 = vadd.f32 %v2345, %v2324
  %2348 = vrot.lane.b32.xlu0 %v2324, 96
  %v2349 = vpop.permute.xlu0 %2348
  %v2351 = vadd.f32 %v2346, %v2349
  %2352 = vrot.lane.b32.xlu0 %v2324, 64
  %v2353 = vpop.permute.xlu0 %2352
  %v2355 = vadd.f32 %v2351, %v2353
  %2356 = vrot.lane.b32.xlu0 %v2324, 32
  %v2357 = vpop.permute.xlu0 %2356
  %v2359 = vadd.f32 %v2355, %v2357
  %v2360 = vadd.f32 %v2359, %v2331
  %2362 = vrot.lane.b32.xlu0 %v2331, 96
  %v2363 = vpop.permute.xlu0 %2362
  %v2365 = vadd.f32 %v2360, %v2363
  %v2366 = vrcp.pop 40.0
  %v2367 = vmul.f32 %v2365, %v2366
  %v2368 = vlaneseq
  %v2369 = vshrl.u32 %v2368, 7
  %v2370 = vsub.s32 0, %v2369
  %v2371 = vrot.slane %v2367, %v2370
  %v2372 = vsub.f32 %v2306, %v2371
  %v2373 = vmul.f32 %v2372, %v2372
  %v2374 = vadd.f32 %v2373, 0.0
  %2376 = vrot.lane.b32.xlu0 %v2371, 32
  %v2377 = vpop.permute.xlu0 %2376
  %v2379 = vsub.f32 %v2306, %v2377
  %v2380 = vmul.f32 %v2379, %v2379
  %2382 = vrot.lane.b32.xlu0 %v2380, 96
  %v2383 = vpop.permute.xlu0 %2382
  %v2385 = vadd.f32 %v2374, %v2383
  %2386 = vrot.lane.b32.xlu0 %v2371, 64
  %v2387 = vpop.permute.xlu0 %2386
  %v2389 = vsub.f32 %v2306, %v2387
  %v2390 = vmul.f32 %v2389, %v2389
  %2392 = vrot.lane.b32.xlu0 %v2390, 64
  %v2393 = vpop.permute.xlu0 %2392
  %v2395 = vadd.f32 %v2385, %v2393
  %2396 = vrot.lane.b32.xlu0 %v2371, 96
  %v2397 = vpop.permute.xlu0 %2396
  %v2399 = vsub.f32 %v2306, %v2397
  %v2400 = vmul.f32 %v2399, %v2399
  %2402 = vrot.lane.b32.xlu0 %v2400, 32
  %v2403 = vpop.permute.xlu0 %2402
  %v2405 = vadd.f32 %v2395, %v2403
  %v2406 = vsub.f32 %v2307, %v2371
  %v2407 = vmul.f32 %v2406, %v2406
  %v2408 = vadd.f32 %v2405, %v2407
  %v2409 = vsub.f32 %v2307, %v2377
  %v2410 = vmul.f32 %v2409, %v2409
  %2412 = vrot.lane.b32.xlu0 %v2410, 96
  %v2413 = vpop.permute.xlu0 %2412
  %v2415 = vadd.f32 %v2408, %v2413
  %v2416 = vsub.f32 %v2307, %v2387
  %v2417 = vmul.f32 %v2416, %v2416
  %2419 = vrot.lane.b32.xlu0 %v2417, 64
  %v2420 = vpop.permute.xlu0 %2419
  %v2422 = vadd.f32 %v2415, %v2420
  %v2423 = vsub.f32 %v2307, %v2397
  %v2424 = vmul.f32 %v2423, %v2423
  %2426 = vrot.lane.b32.xlu0 %v2424, 32
  %v2427 = vpop.permute.xlu0 %2426
  %v2429 = vadd.f32 %v2422, %v2427
  %v2430 = vsub.f32 %v2308, %v2371
  %v2431 = vmul.f32 %v2430, %v2430
  %v2432 = vadd.f32 %v2429, %v2431
  %v2433 = vsub.f32 %v2308, %v2377
  %v2434 = vmul.f32 %v2433, %v2433
  %2436 = vrot.lane.b32.xlu0 %v2434, 96
  %v2437 = vpop.permute.xlu0 %2436
  %v2439 = vadd.f32 %v2432, %v2437
  %v2440 = vsel %vm1222, %v2439, 0.0
  %v2441 = vrot.slane %v2440, 4
  %v2442 = vadd.f32 %v2440, %v2441
  %v2443 = vrot.slane %v2442, 2
  %v2444 = vadd.f32 %v2442, %v2443
  %v2445 = vrot.slane %v2444, 1
  %v2446 = vadd.f32 %v2444, %v2445
  %v2447 = vmul.f32 %v2446, %v2366
  %v2448 = vadd.f32 %v2447, 1e-05
  %v2449 = vrsqrt.pop %v2448
  %v2450 = vmul.f32 %v2309, %v2449
  %v2451 = vmul.f32 %v2367, %v2450
  %v2452 = vsub.f32 %v2310, %v2451
  %v2454 = vlaneseq
  %v2455 = vshrl.u32 %v2454, 7
  %v2456 = vsub.s32 0, %v2455
  %v2457 = vrot.slane %v2450, %v2456
  %v2459 = vmul.f32 %v2306, %v2457
  %v2461 = vlaneseq
  %v2462 = vshrl.u32 %v2461, 7
  %v2463 = vsub.s32 0, %v2462
  %v2464 = vrot.slane %v2452, %v2463
  %v2466 = vadd.f32 %v2459, %v2464
  %2467 = vrot.lane.b32.xlu0 %v2457, 32
  %v2468 = vpop.permute.xlu0 %2467
  %v2470 = vmul.f32 %v2306, %v2468
  %2471 = vrot.lane.b32.xlu0 %v2464, 32
  %v2472 = vpop.permute.xlu0 %2471
  %v2474 = vadd.f32 %v2470, %v2472
  %2475 = vrot.lane.b32.xlu0 %v2457, 64
  %v2476 = vpop.permute.xlu0 %2475
  %v2478 = vmul.f32 %v2306, %v2476
  %2479 = vrot.lane.b32.xlu0 %v2464, 64
  %v2480 = vpop.permute.xlu0 %2479
  %v2482 = vadd.f32 %v2478, %v2480
  %2484 = vrot.lane.b32.xlu0 %v2474, 96
  %v2485 = vpop.permute.xlu0 %2484
  %v2487 = vmax.f32 %v2466, %v2485
  %2489 = vrot.lane.b32.xlu0 %v2482, 64
  %v2490 = vpop.permute.xlu0 %2489
  %v2492 = vmax.f32 %v2487, %v2490
  %2493 = vrot.lane.b32.xlu0 %v2457, 96
  %v2494 = vpop.permute.xlu0 %2493
  %v2496 = vmul.f32 %v2306, %v2494
  %2497 = vrot.lane.b32.xlu0 %v2464, 96
  %v2498 = vpop.permute.xlu0 %2497
  %v2500 = vadd.f32 %v2496, %v2498
  %v2501 = vmul.f32 %v2307, %v2457
  %v2502 = vadd.f32 %v2501, %v2464
  %2504 = vrot.lane.b32.xlu0 %v2500, 96
  %v2505 = vpop.permute.xlu0 %2504
  %v2507 = vmax.f32 %v2482, %v2505
  %2509 = vrot.lane.b32.xlu0 %v2502, 64
  %v2510 = vpop.permute.xlu0 %2509
  %v2512 = vmax.f32 %v2507, %v2510
  %v2513 = vmul.f32 %v2307, %v2468
  %v2514 = vadd.f32 %v2513, %v2472
  %v2515 = vmul.f32 %v2307, %v2476
  %v2516 = vadd.f32 %v2515, %v2480
  %2518 = vrot.lane.b32.xlu0 %v2514, 96
  %v2519 = vpop.permute.xlu0 %2518
  %v2521 = vmax.f32 %v2502, %v2519
  %2523 = vrot.lane.b32.xlu0 %v2516, 64
  %v2524 = vpop.permute.xlu0 %2523
  %v2526 = vmax.f32 %v2521, %v2524
  %v2527 = vmul.f32 %v2307, %v2494
  %v2528 = vadd.f32 %v2527, %v2498
  %v2529 = vmul.f32 %v2308, %v2457
  %v2530 = vadd.f32 %v2529, %v2464
  %2532 = vrot.lane.b32.xlu0 %v2528, 96
  %v2533 = vpop.permute.xlu0 %2532
  %v2535 = vmax.f32 %v2516, %v2533
  %2537 = vrot.lane.b32.xlu0 %v2530, 64
  %v2538 = vpop.permute.xlu0 %2537
  %v2540 = vmax.f32 %v2535, %v2538
  %2542 = vrot.lane.b32.xlu0 %v2512, 96
  %v2543 = vpop.permute.xlu0 %2542
  %2546 = vrot.lane.b32.xlu0 %v2526, 64
  %v2547 = vpop.permute.xlu0 %2546
  %2550 = vrot.lane.b32.xlu0 %v2540, 32
  %v2551 = vpop.permute.xlu0 %2550
  %v2553 = vsel %vm1596, %v2492, %v2543
  %v2554 = vsel %vm1598, %v2553, %v2547
  %v2555 = vsel %vm1600, %v2554, %v2551
  %v2556 = vld [vmem:[%s9] sm:$0xff]
  %v2557 = vld [vmem:[%s9 + $0x8] sm:$0xff]
  %v2558 = vld [vmem:[%s9 + $0x10] sm:$0xff]
  %v2559 = vld [vmem:[%s9 + $0x18] sm:$0xff]
  %v2560 = vld [vmem:[%s9 + $0x20] sm:$0xff]
  %v2561 = vld [vmem:[%s9 + $0x28] sm:$0xff]
  %v2562 = vld [vmem:[%s9 + $0x30] sm:$0xff]
  %v2563 = vld [vmem:[%s9 + $0x38] sm:$0xff]
  %v2564 = vld [vmem:[%s9 + $0x40] sm:$0xff]
  %v2565 = vld [vmem:[%s9 + $0x48] sm:$0xff]
  %v2566 = vld [vmem:[%s9 + $0x50] sm:$0xff]
  %v2567 = vld [vmem:[%s9 + $0x58] sm:$0xff]
  %v2568 = vld [vmem:[%s9 + $0x60] sm:$0xff]
  %v2569 = vld [vmem:[%s9 + $0x68] sm:$0xff]
  %v2570 = vld [vmem:[%s9 + $0x70] sm:$0xff]
  %v2571 = vld [vmem:[%s9 + $0x78] sm:$0xff]
  %v2572 = vld [vmem:[%s10] sm:$0x1]
  %v2574 = vlaneseq
  %v2575 = vshrl.u32 %v2574, 7
  %v2576 = vsub.s32 0, %v2575
  %v2577 = vrot.slane %v2572, %v2576
  %2579 = vmatprep.subr.mxu0 0.0
  %2580 = vmatpush1.msra.mxu0 %v2556
  %2581 = vmatprep.subr.mxu0 0.0
  %2582 = vmatpush1.msra.mxu0 %v2557
  %2583 = vmatprep.subr.mxu0 0.0
  %2584 = vmatpush1.msra.mxu0 %v2558
  %2585 = vmatprep.subr.mxu0 0.0
  %2586 = vmatpush1.msra.mxu0 %v2559
  %2587 = vmatprep.subr.mxu0 0.0
  %2588 = vmatpush1.msra.mxu0 %v2560
  %2589 = vmatprep.subr.mxu0 0.0
  %2590 = vmatpush1.msra.mxu0 %v2561
  %2591 = vmatprep.subr.mxu0 0.0
  %2592 = vmatpush1.msra.mxu0 %v2562
  %2593 = vmatprep.subr.mxu0 0.0
  %2594 = vmatpush1.msra.mxu0 %v2563
  %2595 = vmatprep.subr.mxu0 0.0
  %2596 = vmatpush1.msra.mxu0 %v2564
  %2597 = vmatprep.subr.mxu0 0.0
  %2598 = vmatpush1.msra.mxu0 %v2565
  %2599 = vmatprep.subr.mxu0 0.0
  %2600 = vmatpush1.msra.mxu0 %v2566
  %2601 = vmatprep.subr.mxu0 0.0
  %2602 = vmatpush1.msra.mxu0 %v2567
  %2603 = vmatprep.subr.mxu0 0.0
  %2604 = vmatpush1.msra.mxu0 %v2568
  %2605 = vmatprep.subr.mxu0 0.0
  %2606 = vmatpush1.msra.mxu0 %v2569
  %2607 = vmatprep.subr.mxu0 0.0
  %2608 = vmatpush1.msra.mxu0 %v2570
  %2609 = vmatprep.subr.mxu0 0.0
  %2610 = vmatpush1.msra.mxu0 %v2571
  %2611 = vmatprep.subr.mxu0 0.0
  %2612 = vmatpush1.msra.mxu0 0.0
  %2613 = vmatprep.subr.mxu0 0.0
  %2614 = vmatpush1.msra.mxu0 0.0
  %2615 = vmatprep.subr.mxu0 0.0
  %2616 = vmatpush1.msra.mxu0 0.0
  %2617 = vmatprep.subr.mxu0 0.0
  %2618 = vmatpush1.msra.mxu0 0.0
  %2619 = vmatprep.subr.mxu0 0.0
  %2620 = vmatpush1.msra.mxu0 0.0
  %2621 = vmatprep.subr.mxu0 0.0
  %2622 = vmatpush1.msra.mxu0 0.0
  %2623 = vmatprep.subr.mxu0 0.0
  %2624 = vmatpush1.msra.mxu0 0.0
  %2625 = vmatprep.subr.mxu0 0.0
  %2626 = vmatpush1.msra.mxu0 0.0
  %2627 = vmatprep.subr.mxu0 0.0
  %2628 = vmatpush1.msra.mxu0 0.0
  %2629 = vmatprep.subr.mxu0 0.0
  %2630 = vmatpush1.msra.mxu0 0.0
  %2631 = vmatprep.subr.mxu0 0.0
  %2632 = vmatpush1.msra.mxu0 0.0
  %2633 = vmatprep.subr.mxu0 0.0
  %2634 = vmatpush1.msra.mxu0 0.0
  %2635 = vmatprep.subr.mxu0 0.0
  %2636 = vmatpush1.msra.mxu0 0.0
  %2637 = vmatprep.subr.mxu0 0.0
  %2638 = vmatpush1.msra.mxu0 0.0
  %2639 = vmatprep.subr.mxu0 0.0
  %2640 = vmatpush1.msra.mxu0 0.0
  %2641 = vmatprep.subr.mxu0 0.0
  %2642 = vmatpush1.msra.mxu0 0.0
  %2643 = vmatprep.mubr.f32.mxu0 0.0
  %2644 = vmatmul.mubr.f32.gmra.mrb[0].mxu0 %v2555
  %v2645 = vpop.f32.mrb[0].mxu0
  %v2646 = vadd.f32 %v2577, %v2645
  %v2647 = vpop.f32.mrb[0].mxu0
  %2648 = vdwg.mxu0
  %v2649 = vmax.f32 %v2646, 0.0
  %2651 = vrot.lane.b32.xlu0 %v57, 32
  %v2652 = vpop.permute.xlu0 %2651
  %v2654 = vsel %vm1596, %v2649, %v2652
  %v2655 = vld [vmem:[%s11] sm:$0xff]
  %v2656 = vld [vmem:[%s11 + $0x8] sm:$0xff]
  %v2657 = vld [vmem:[%s11 + $0x10] sm:$0xff]
  %v2658 = vld [vmem:[%s11 + $0x18] sm:$0xff]
  %v2659 = vld [vmem:[%s11 + $0x20] sm:$0xf]
  %v2660 = vld [vmem:[%s12] sm:$0x1]
  %v2662 = vlaneseq
  %v2663 = vshrl.u32 %v2662, 7
  %v2664 = vsub.s32 0, %v2663
  %v2665 = vrot.slane %v2660, %v2664
  %vm2667 = vcmask 293888
  %v2669 = vsel %vm2667, %v2654, 0
  %v2672 = vsel %vm731, %v2659, 0
  %2674 = vmatprep.subr.mxu0 0.0
  %2675 = vmatpush1.msra.mxu0 %v2655
  %2676 = vmatprep.subr.mxu0 0.0
  %2677 = vmatpush1.msra.mxu0 %v2656
  %2678 = vmatprep.subr.mxu0 0.0
  %2679 = vmatpush1.msra.mxu0 %v2657
  %2680 = vmatprep.subr.mxu0 0.0
  %2681 = vmatpush1.msra.mxu0 %v2658
  %2682 = vmatprep.subr.mxu0 0.0
  %2683 = vmatpush1.msra.mxu0 %v2672
  %2684 = vmatprep.subr.mxu0 0.0
  %2685 = vmatpush1.msra.mxu0 0.0
  %2686 = vmatprep.subr.mxu0 0.0
  %2687 = vmatpush1.msra.mxu0 0.0
  %2688 = vmatprep.subr.mxu0 0.0
  %2689 = vmatpush1.msra.mxu0 0.0
  %2690 = vmatprep.subr.mxu0 0.0
  %2691 = vmatpush1.msra.mxu0 0.0
  %2692 = vmatprep.subr.mxu0 0.0
  %2693 = vmatpush1.msra.mxu0 0.0
  %2694 = vmatprep.subr.mxu0 0.0
  %2695 = vmatpush1.msra.mxu0 0.0
  %2696 = vmatprep.subr.mxu0 0.0
  %2697 = vmatpush1.msra.mxu0 0.0
  %2698 = vmatprep.subr.mxu0 0.0
  %2699 = vmatpush1.msra.mxu0 0.0
  %2700 = vmatprep.subr.mxu0 0.0
  %2701 = vmatpush1.msra.mxu0 0.0
  %2702 = vmatprep.subr.mxu0 0.0
  %2703 = vmatpush1.msra.mxu0 0.0
  %2704 = vmatprep.subr.mxu0 0.0
  %2705 = vmatpush1.msra.mxu0 0.0
  %2706 = vmatprep.subr.mxu0 0.0
  %2707 = vmatpush1.msra.mxu0 0.0
  %2708 = vmatprep.subr.mxu0 0.0
  %2709 = vmatpush1.msra.mxu0 0.0
  %2710 = vmatprep.subr.mxu0 0.0
  %2711 = vmatpush1.msra.mxu0 0.0
  %2712 = vmatprep.subr.mxu0 0.0
  %2713 = vmatpush1.msra.mxu0 0.0
  %2714 = vmatprep.subr.mxu0 0.0
  %2715 = vmatpush1.msra.mxu0 0.0
  %2716 = vmatprep.subr.mxu0 0.0
  %2717 = vmatpush1.msra.mxu0 0.0
  %2718 = vmatprep.subr.mxu0 0.0
  %2719 = vmatpush1.msra.mxu0 0.0
  %2720 = vmatprep.subr.mxu0 0.0
  %2721 = vmatpush1.msra.mxu0 0.0
  %2722 = vmatprep.subr.mxu0 0.0
  %2723 = vmatpush1.msra.mxu0 0.0
  %2724 = vmatprep.subr.mxu0 0.0
  %2725 = vmatpush1.msra.mxu0 0.0
  %2726 = vmatprep.subr.mxu0 0.0
  %2727 = vmatpush1.msra.mxu0 0.0
  %2728 = vmatprep.subr.mxu0 0.0
  %2729 = vmatpush1.msra.mxu0 0.0
  %2730 = vmatprep.subr.mxu0 0.0
  %2731 = vmatpush1.msra.mxu0 0.0
  %2732 = vmatprep.subr.mxu0 0.0
  %2733 = vmatpush1.msra.mxu0 0.0
  %2734 = vmatprep.subr.mxu0 0.0
  %2735 = vmatpush1.msra.mxu0 0.0
  %2736 = vmatprep.subr.mxu0 0.0
  %2737 = vmatpush1.msra.mxu0 0.0
  %2738 = vmatprep.mubr.f32.mxu0 0.0
  %2739 = vmatmul.mubr.f32.gmra.mrb[0].mxu0 %v2669
  %v2740 = vpop.f32.mrb[0].mxu0
  %v2741 = vadd.f32 %v2665, %v2740
  %v2742 = vpop.f32.mrb[0].mxu0
  %2743 = vdwg.mxu0
  %v2744 = vmax.f32 %v2741, 0.0
  %v2745 = vld [vmem:[%s13] sm:$0xff]
  %v2746 = vld [vmem:[%s13 + $0x8] sm:$0xff]
  %v2747 = vld [vmem:[%s13 + $0x10] sm:$0xff]
  %v2748 = vld [vmem:[%s13 + $0x18] sm:$0xff]
  %v2749 = vld [vmem:[%s13 + $0x20] sm:$0xff]
  %v2750 = vld [vmem:[%s13 + $0x28] sm:$0xff]
  %v2751 = vld [vmem:[%s13 + $0x30] sm:$0xff]
  %v2752 = vld [vmem:[%s13 + $0x38] sm:$0xff]
  %v2753 = vld [vmem:[%s14] sm:$0x1]
  %v2755 = vlaneseq
  %v2756 = vshrl.u32 %v2755, 7
  %v2757 = vsub.s32 0, %v2756
  %v2758 = vrot.slane %v2753, %v2757
  %v2761 = vsel %vm1598, %v2744, 0
  %2763 = vmatprep.subr.mxu0 0.0
  %2764 = vmatpush1.msra.mxu0 %v2745
  %2765 = vmatprep.subr.mxu0 0.0
  %2766 = vmatpush1.msra.mxu0 %v2746
  %2767 = vmatprep.subr.mxu0 0.0
  %2768 = vmatpush1.msra.mxu0 %v2747
  %2769 = vmatprep.subr.mxu0 0.0
  %2770 = vmatpush1.msra.mxu0 %v2748
  %2771 = vmatprep.subr.mxu0 0.0
  %2772 = vmatpush1.msra.mxu0 %v2749
  %2773 = vmatprep.subr.mxu0 0.0
  %2774 = vmatpush1.msra.mxu0 %v2750
  %2775 = vmatprep.subr.mxu0 0.0
  %2776 = vmatpush1.msra.mxu0 %v2751
  %2777 = vmatprep.subr.mxu0 0.0
  %2778 = vmatpush1.msra.mxu0 %v2752
  %2779 = vmatprep.subr.mxu0 0.0
  %2780 = vmatpush1.msra.mxu0 0.0
  %2781 = vmatprep.subr.mxu0 0.0
  %2782 = vmatpush1.msra.mxu0 0.0
  %2783 = vmatprep.subr.mxu0 0.0
  %2784 = vmatpush1.msra.mxu0 0.0
  %2785 = vmatprep.subr.mxu0 0.0
  %2786 = vmatpush1.msra.mxu0 0.0
  %2787 = vmatprep.subr.mxu0 0.0
  %2788 = vmatpush1.msra.mxu0 0.0
  %2789 = vmatprep.subr.mxu0 0.0
  %2790 = vmatpush1.msra.mxu0 0.0
  %2791 = vmatprep.subr.mxu0 0.0
  %2792 = vmatpush1.msra.mxu0 0.0
  %2793 = vmatprep.subr.mxu0 0.0
  %2794 = vmatpush1.msra.mxu0 0.0
  %2795 = vmatprep.subr.mxu0 0.0
  %2796 = vmatpush1.msra.mxu0 0.0
  %2797 = vmatprep.subr.mxu0 0.0
  %2798 = vmatpush1.msra.mxu0 0.0
  %2799 = vmatprep.subr.mxu0 0.0
  %2800 = vmatpush1.msra.mxu0 0.0
  %2801 = vmatprep.subr.mxu0 0.0
  %2802 = vmatpush1.msra.mxu0 0.0
  %2803 = vmatprep.subr.mxu0 0.0
  %2804 = vmatpush1.msra.mxu0 0.0
  %2805 = vmatprep.subr.mxu0 0.0
  %2806 = vmatpush1.msra.mxu0 0.0
  %2807 = vmatprep.subr.mxu0 0.0
  %2808 = vmatpush1.msra.mxu0 0.0
  %2809 = vmatprep.subr.mxu0 0.0
  %2810 = vmatpush1.msra.mxu0 0.0
  %2811 = vmatprep.subr.mxu0 0.0
  %2812 = vmatpush1.msra.mxu0 0.0
  %2813 = vmatprep.subr.mxu0 0.0
  %2814 = vmatpush1.msra.mxu0 0.0
  %2815 = vmatprep.subr.mxu0 0.0
  %2816 = vmatpush1.msra.mxu0 0.0
  %2817 = vmatprep.subr.mxu0 0.0
  %2818 = vmatpush1.msra.mxu0 0.0
  %2819 = vmatprep.subr.mxu0 0.0
  %2820 = vmatpush1.msra.mxu0 0.0
  %2821 = vmatprep.subr.mxu0 0.0
  %2822 = vmatpush1.msra.mxu0 0.0
  %2823 = vmatprep.subr.mxu0 0.0
  %2824 = vmatpush1.msra.mxu0 0.0
  %2825 = vmatprep.subr.mxu0 0.0
  %2826 = vmatpush1.msra.mxu0 0.0
  %2827 = vmatprep.mubr.f32.mxu0 0.0
  %2828 = vmatmul.mubr.f32.gmra.mrb[0].mxu0 %v2761
  %v2829 = vpop.f32.mrb[0].mxu0
  %v2830 = vadd.f32 %v2758, %v2829
  %v2831 = vpop.f32.mrb[0].mxu0
  %2832 = vdwg.mxu0
  %v2833 = vmax.f32 %v2830, 0.0
  %v2834 = vld [vmem:[%s15] sm:$0xff]
  %v2835 = vld [vmem:[%s15 + $0x8] sm:$0xff]
  %v2836 = vld [vmem:[%s15 + $0x10] sm:$0xff]
  %v2837 = vld [vmem:[%s15 + $0x18] sm:$0xff]
  %v2838 = vld [vmem:[%s15 + $0x20] sm:$0xff]
  %v2839 = vld [vmem:[%s15 + $0x28] sm:$0xff]
  %v2840 = vld [vmem:[%s15 + $0x30] sm:$0xff]
  %v2841 = vld [vmem:[%s15 + $0x38] sm:$0xff]
  %v2842 = vld [vmem:[%s16] sm:$0x1]
  %v2844 = vlaneseq
  %v2845 = vshrl.u32 %v2844, 7
  %v2846 = vsub.s32 0, %v2845
  %v2847 = vrot.slane %v2842, %v2846
  %v2850 = vsel %vm1598, %v2833, 0
  %2852 = vmatprep.subr.mxu0 0.0
  %2853 = vmatpush1.msra.mxu0 %v2834
  %2854 = vmatprep.subr.mxu0 0.0
  %2855 = vmatpush1.msra.mxu0 %v2835
  %2856 = vmatprep.subr.mxu0 0.0
  %2857 = vmatpush1.msra.mxu0 %v2836
  %2858 = vmatprep.subr.mxu0 0.0
  %2859 = vmatpush1.msra.mxu0 %v2837
  %2860 = vmatprep.subr.mxu0 0.0
  %2861 = vmatpush1.msra.mxu0 %v2838
  %2862 = vmatprep.subr.mxu0 0.0
  %2863 = vmatpush1.msra.mxu0 %v2839
  %2864 = vmatprep.subr.mxu0 0.0
  %2865 = vmatpush1.msra.mxu0 %v2840
  %2866 = vmatprep.subr.mxu0 0.0
  %2867 = vmatpush1.msra.mxu0 %v2841
  %2868 = vmatprep.subr.mxu0 0.0
  %2869 = vmatpush1.msra.mxu0 0.0
  %2870 = vmatprep.subr.mxu0 0.0
  %2871 = vmatpush1.msra.mxu0 0.0
  %2872 = vmatprep.subr.mxu0 0.0
  %2873 = vmatpush1.msra.mxu0 0.0
  %2874 = vmatprep.subr.mxu0 0.0
  %2875 = vmatpush1.msra.mxu0 0.0
  %2876 = vmatprep.subr.mxu0 0.0
  %2877 = vmatpush1.msra.mxu0 0.0
  %2878 = vmatprep.subr.mxu0 0.0
  %2879 = vmatpush1.msra.mxu0 0.0
  %2880 = vmatprep.subr.mxu0 0.0
  %2881 = vmatpush1.msra.mxu0 0.0
  %2882 = vmatprep.subr.mxu0 0.0
  %2883 = vmatpush1.msra.mxu0 0.0
  %2884 = vmatprep.subr.mxu0 0.0
  %2885 = vmatpush1.msra.mxu0 0.0
  %2886 = vmatprep.subr.mxu0 0.0
  %2887 = vmatpush1.msra.mxu0 0.0
  %2888 = vmatprep.subr.mxu0 0.0
  %2889 = vmatpush1.msra.mxu0 0.0
  %2890 = vmatprep.subr.mxu0 0.0
  %2891 = vmatpush1.msra.mxu0 0.0
  %2892 = vmatprep.subr.mxu0 0.0
  %2893 = vmatpush1.msra.mxu0 0.0
  %2894 = vmatprep.subr.mxu0 0.0
  %2895 = vmatpush1.msra.mxu0 0.0
  %2896 = vmatprep.subr.mxu0 0.0
  %2897 = vmatpush1.msra.mxu0 0.0
  %2898 = vmatprep.subr.mxu0 0.0
  %2899 = vmatpush1.msra.mxu0 0.0
  %2900 = vmatprep.subr.mxu0 0.0
  %2901 = vmatpush1.msra.mxu0 0.0
  %2902 = vmatprep.subr.mxu0 0.0
  %2903 = vmatpush1.msra.mxu0 0.0
  %2904 = vmatprep.subr.mxu0 0.0
  %2905 = vmatpush1.msra.mxu0 0.0
  %2906 = vmatprep.subr.mxu0 0.0
  %2907 = vmatpush1.msra.mxu0 0.0
  %2908 = vmatprep.subr.mxu0 0.0
  %2909 = vmatpush1.msra.mxu0 0.0
  %2910 = vmatprep.subr.mxu0 0.0
  %2911 = vmatpush1.msra.mxu0 0.0
  %2912 = vmatprep.subr.mxu0 0.0
  %2913 = vmatpush1.msra.mxu0 0.0
  %2914 = vmatprep.subr.mxu0 0.0
  %2915 = vmatpush1.msra.mxu0 0.0
  %2916 = vmatprep.mubr.f32.mxu0 0.0
  %2917 = vmatmul.mubr.f32.gmra.mrb[0].mxu0 %v2850
  %v2918 = vpop.f32.mrb[0].mxu0
  %v2919 = vadd.f32 %v2847, %v2918
  %v2920 = vpop.f32.mrb[0].mxu0
  %2921 = vdwg.mxu0
  %v2922 = vlaneseq
  %v2923 = vand.u32 %v2922, 127
  %vm2924 = vcmp.le.s32.totalorder %v2923, 1
  %v2925 = vtanh.pop %v2919
  %v2926 = vsel %vm2924, %v2925, %v2919
  %vm2927 = vcmask 11264
  %2928 = vst.msk [vmem:[%s17] sm:$0xf] %vm2927, %v2926
  // Predicated region
  $region70: #{tpu_custom_call.1} parent=0 // pred_check
    _
  $region71: #{tpu_custom_call.1} parent=0 // pred_check_branch
    %2930 = sbr.rel (0) target = $region73
  $region72: #{tpu_custom_call.1} parent=0 // pred_region
    _
  $region73: #{tpu_custom_call.1} parent=0 // pred_fallthru
    _
  // Predicated region
  $region74: #{tpu_custom_call.1} parent=0 // pred_check
    _
  $region75: #{tpu_custom_call.1} parent=0 // pred_check_branch
    %2932 = sbr.rel (0) target = $region77
  $region76: #{tpu_custom_call.1} parent=0 // pred_region
    _
  $region77: #{tpu_custom_call.1} parent=0 // pred_fallthru
    _

</llo_original>
